<compile_context>
chip_gen: v6e
topology: v6e:2x2x1
jax: 0.10.0
libtpu: 0.0.40
codegen_flags: <defaults>
</compile_context>

<pallas_src>
import functools

import jax
import jax.numpy as jnp
from jax.experimental import pallas as pl
from jax.experimental.pallas import tpu as pltpu


_VMEM_LIMIT = 32 * 1024 * 1024    # > v5e's 16 MiB scoped default, < v7x physical
_CONV_TILE_ROWS = 1024            # target pooled-pixel rows per grid step
_FC_TILE_ROWS = 1024              # target batch rows per grid step


def _pick_tile_rows(total_rows, target, grain):
    """Largest divisor of total_rows that is a multiple of `grain` and <= target,
    preferring choices that leave >= 2 grid steps (keeps both v7x TCs busy)."""
    divisors = [d for d in range(grain, min(total_rows, target) + 1, grain)
                if total_rows % d == 0]
    multi_step = [d for d in divisors if total_rows // d >= 2]
    if multi_step:
        return multi_step[-1]
    if divisors:
        return divisors[-1]
    return total_rows


# ----------------------------- Pallas kernels ------------------------------ #

def _conv_pool_kernel(p00_ref, p01_ref, p10_ref, p11_ref, w_ref, b_ref, o_ref):
    """Fused conv(3x3, pad=1) + bias + ReLU + MaxPool2d(2,2).

    Each p*_ref holds bf16 im2col patches for one position of the 2x2 pooling
    window, rows ordered (n, h_out, w_out).  Pooling is therefore just an
    elementwise max of the four MXU results.  bias+ReLU commute with the max,
    so they run once on the pooled f32 accumulator.
    """
    w = w_ref[...]
    acc = jnp.dot(p00_ref[...], w, preferred_element_type=jnp.float32)
    acc = jnp.maximum(acc, jnp.dot(p01_ref[...], w,
                                   preferred_element_type=jnp.float32))
    acc = jnp.maximum(acc, jnp.dot(p10_ref[...], w,
                                   preferred_element_type=jnp.float32))
    acc = jnp.maximum(acc, jnp.dot(p11_ref[...], w,
                                   preferred_element_type=jnp.float32))
    o_ref[...] = jnp.maximum(acc + b_ref[...], 0.0)


def _matmul_bias_act_kernel(a_ref, w_ref, b_ref, o_ref, *, apply_relu):
    acc = jnp.dot(a_ref[...], w_ref[...], preferred_element_type=jnp.float32)
    acc = acc + b_ref[...]
    if apply_relu:
        acc = jnp.maximum(acc, 0.0)
    o_ref[...] = acc


# ------------------------------ layer wrappers ------------------------------ #

def conv3x3_relu_pool(x_nhwc, w_hwio, b):
    """Conv2d(k=3, pad=1) + ReLU + MaxPool2d(2,2); NHWC in, NHWC out (f32)."""
    n, h, w, cin = x_nhwc.shape
    cout = w_hwio.shape[-1]
    h2, w2 = h // 2, w // 2
    m4 = n * h2 * w2                      # pooled output pixels
    k_raw = 9 * cin
    k = ((k_raw + 15) // 16) * 16         # pad K (27 -> 32 for conv1)

    # im2col in bf16, one patch matrix per 2x2-pool position (XLA glue).
    xp = jnp.pad(x_nhwc.astype(jnp.bfloat16), ((0, 0), (1, 1), (1, 1), (0, 0)))
    quads = []
    for dy in range(2):
        for dx in range(2):
            cols = [xp[:, dy + kh:dy + kh + h:2, dx + kw:dx + kw + w:2, :]
                    for kh in range(3) for kw in range(3)]
            q = jnp.concatenate(cols, axis=-1).reshape(m4, k_raw)
            if k != k_raw:
                q = jnp.pad(q, ((0, 0), (0, k - k_raw)))
            quads.append(q)

    wmat = w_hwio.reshape(k_raw, cout)
    if k != k_raw:
        wmat = jnp.pad(wmat, ((0, k - k_raw), (0, 0)))
    wmat = wmat.astype(jnp.bfloat16)
    bias = b.reshape(1, cout).astype(jnp.float32)

    tile = _pick_tile_rows(m4, _CONV_TILE_ROWS, 16)
    grid = (m4 // tile,)
    patch_spec = pl.BlockSpec((tile, k), lambda i: (i, 0))

    out = pl.pallas_call(
        _conv_pool_kernel,
        out_shape=jax.ShapeDtypeStruct((m4, cout), jnp.float32),
        grid_spec=pltpu.PrefetchScalarGridSpec(
            num_scalar_prefetch=0,
            grid=grid,
            in_specs=[patch_spec, patch_spec, patch_spec, patch_spec,
                      pl.BlockSpec((k, cout), lambda i: (0, 0)),
                      pl.BlockSpec((1, cout), lambda i: (0, 0))],
            out_specs=pl.BlockSpec((tile, cout), lambda i: (i, 0)),
        ),
        compiler_params=pltpu.CompilerParams(
            dimension_semantics=("parallel",),
            vmem_limit_bytes=_VMEM_LIMIT),
    )(*quads, wmat, bias)
    return out.reshape(n, h2, w2, cout)


def matmul_bias_act(a, w, b, *, apply_relu):
    """out = act(a @ w + b); a:(M,K) f32, w:(K,N) f32, b:(1,N) f32 -> (M,N) f32.
    MXU inputs in bf16 (f32 accumulate); output dim padded to a 128 multiple."""
    m, kdim = a.shape
    n = w.shape[1]
    n_pad = ((n + 127) // 128) * 128
    if n_pad != n:
        w = jnp.pad(w, ((0, 0), (0, n_pad - n)))
        b = jnp.pad(b, ((0, 0), (0, n_pad - n)))
    a_bf = a.astype(jnp.bfloat16)
    w_bf = w.astype(jnp.bfloat16)
    b_f32 = b.astype(jnp.float32)

    if m > _FC_TILE_ROWS:
        tile_m = _FC_TILE_ROWS
        m_pad = ((m + tile_m - 1) // tile_m) * tile_m
        if m_pad != m:
            a_bf = jnp.pad(a_bf, ((0, m_pad - m), (0, 0)))
    else:
        tile_m, m_pad = m, m
    grid = (m_pad // tile_m,)

    kernel = functools.partial(_matmul_bias_act_kernel, apply_relu=apply_relu)
    out = pl.pallas_call(
        kernel,
        out_shape=jax.ShapeDtypeStruct((m_pad, n_pad), jnp.float32),
        grid_spec=pltpu.PrefetchScalarGridSpec(
            num_scalar_prefetch=0,
            grid=grid,
            in_specs=[pl.BlockSpec((tile_m, kdim), lambda i: (i, 0)),
                      pl.BlockSpec((kdim, n_pad), lambda i: (0, 0)),
                      pl.BlockSpec((1, n_pad), lambda i: (0, 0))],
            out_specs=pl.BlockSpec((tile_m, n_pad), lambda i: (i, 0)),
        ),
        compiler_params=pltpu.CompilerParams(
            dimension_semantics=("parallel",),
            vmem_limit_bytes=_VMEM_LIMIT),
    )(a_bf, w_bf, b_f32)
    return out[:m, :n]


# --------------------------------- params ----------------------------------- #

def init_params(key, num_classes=10):
    ks = jax.random.split(key, 10)

    def conv_w(k, cin, cout):
        return (jax.random.normal(k, (3, 3, cin, cout), jnp.float32)
                * (2.0 / (9 * cin)) ** 0.5)

    def lin_w(k, fin, fout):
        return (jax.random.normal(k, (fin, fout), jnp.float32)
                * (2.0 / fin) ** 0.5)

    def bias(k, n):
        return jax.random.normal(k, (n,), jnp.float32) * 0.01

    return {
        "w1": conv_w(ks[0], 3, 32),    "b1": bias(ks[5], 32),
        "w2": conv_w(ks[1], 32, 64),   "b2": bias(ks[6], 64),
        "w3": conv_w(ks[2], 64, 128),  "b3": bias(ks[7], 128),
        "w4": lin_w(ks[3], 128 * 4 * 4, 256), "b4": bias(ks[8], 256),
        "w5": lin_w(ks[4], 256, num_classes), "b5": bias(ks[9], num_classes),
    }


def prepare_params(params):
    """One-time prep for the Pallas path: permute fc1 rows from PyTorch's NCHW
    flatten order to the NHWC flatten order produced by the conv stack, so the
    forward pass needs no runtime transpose before the classifier."""
    c, hh, ww = 128, 4, 4
    w4 = params["w4"].reshape(c, hh, ww, -1)
    w4 = jnp.transpose(w4, (1, 2, 0, 3)).reshape(c * hh * ww, -1)
    out = dict(params)
    out["w4"] = w4
    return out


# -------------------------------- forward ----------------------------------- #

def simple_cnn_forward(params, x_nchw):
    """Matches SimpleCNN.forward; expects `prepare_params` params.
    x_nchw: (N, 3, 32, 32) float32 (PyTorch layout)."""
    x = jnp.transpose(x_nchw, (0, 2, 3, 1))                    # NCHW -> NHWC
    x = conv3x3_relu_pool(x, params["w1"], params["b1"])       # (N, 16, 16,  32)
    x = conv3x3_relu_pool(x, params["w2"], params["b2"])       # (N,  8,  8,  64)
    x = conv3x3_relu_pool(x, params["w3"], params["b3"])       # (N,  4,  4, 128)
    n = x.shape[0]
    flat = x.reshape(n, 4 * 4 * 128)                           # NHWC flatten (w4 pre-permuted)
    h = matmul_bias_act(flat, params["w4"], params["b4"].reshape(1, -1),
                        apply_relu=True)                       # (N, 256)
    return matmul_bias_act(h, params["w5"], params["b5"].reshape(1, -1),
                           apply_relu=False)                   # (N, 10)


def reference_forward(params, x_nchw):
    """Pure-JAX/XLA reference with the same bf16-input / f32-accumulate
    convention, using original params and PyTorch NCHW flatten semantics."""
    x = jnp.transpose(x_nchw, (0, 2, 3, 1))

    def block(x, w, b):
        y = jax.lax.conv_general_dilated(
            x.astype(jnp.bfloat16), w.astype(jnp.bfloat16),
            window_strides=(1, 1), padding="SAME",
            dimension_numbers=("NHWC", "HWIO", "NHWC"),
            preferred_element_type=jnp.float32)
        y = jax.nn.relu(y + b)
        n, h, ww, c = y.shape
        return y.reshape(n, h // 2, 2, ww // 2, 2, c).max(axis=(2, 4))

    x = block(x, params["w1"], params["b1"])
    x = block(x, params["w2"], params["b2"])
    x = block(x, params["w3"], params["b3"])
    n = x.shape[0]
    flat = jnp.transpose(x, (0, 3, 1, 2)).reshape(n, -1)       # PyTorch view(N, -1)
    h = jax.nn.relu(
        jnp.dot(flat.astype(jnp.bfloat16), params["w4"].astype(jnp.bfloat16),
                preferred_element_type=jnp.float32) + params["b4"])
    return (jnp.dot(h.astype(jnp.bfloat16), params["w5"].astype(jnp.bfloat16),
                    preferred_element_type=jnp.float32) + params["b5"])


if __name__ == "__main__":
    key = jax.random.PRNGKey(0)
    pkey, xkey = jax.random.split(key)
    params = init_params(pkey, num_classes=10)
    # Classifier expects 128*4*4 features -> spatial size must be 32x32.
    x = jax.random.normal(xkey, (2, 3, 32, 32), jnp.float32)   # NCHW, like PyTorch

    pallas_params = prepare_params(params)
    out = jax.jit(simple_cnn_forward)(pallas_params, x)
    out = jax.block_until_ready(out)
    assert out.shape == (2, 10), out.shape

    ref = reference_forward(params, x)
    if not jnp.allclose(out, ref, rtol=1e-2, atol=1e-2):
        err = float(jnp.max(jnp.abs(out - ref)))
        raise AssertionError(
            f"Pallas forward does not match JAX reference (max abs err {err})")

    print("KERNEL_OK")
</pallas_src>

<mosaic_0001>
module attributes {stable_mosaic.version = 11 : i64} {
  func.func @_conv_pool_kernel(%arg0: i32, %arg1: memref<256x32xbf16, #tpu.memory_space<vmem>>, %arg2: memref<256x32xbf16, #tpu.memory_space<vmem>>, %arg3: memref<256x32xbf16, #tpu.memory_space<vmem>>, %arg4: memref<256x32xbf16, #tpu.memory_space<vmem>>, %arg5: memref<32x32xbf16, #tpu.memory_space<vmem>>, %arg6: memref<1x32xf32, #tpu.memory_space<vmem>>, %arg7: memref<256x32xf32, #tpu.memory_space<vmem>>) attributes {dimension_semantics = [#tpu.dimension_semantics<parallel>], iteration_bounds = array<i64: 2>, scalar_prefetch = 0 : i64, scratch_operands = 0 : i64, tpu.core_type = #tpu.core_type<tc>, window_params = [{transform_indices = @transform_0, window_bounds = array<i64: 256, 32>}, {transform_indices = @transform_1, window_bounds = array<i64: 256, 32>}, {transform_indices = @transform_2, window_bounds = array<i64: 256, 32>}, {transform_indices = @transform_3, window_bounds = array<i64: 256, 32>}, {pipeline_mode = #tpu.pipeline_mode<synchronous>, transform_indices = @transform_4, window_bounds = array<i64: 32, 32>}, {pipeline_mode = #tpu.pipeline_mode<synchronous>, transform_indices = @transform_5, window_bounds = array<i64: 1, 32>}, {transform_indices = @transform_6, window_bounds = array<i64: 256, 32>}]} {
    %c0 = arith.constant 0 : index
    %c0_0 = arith.constant 0 : index
    %0 = vector.load %arg5[%c0, %c0_0] : memref<32x32xbf16, #tpu.memory_space<vmem>>, vector<32x32xbf16>
    %c0_1 = arith.constant 0 : index
    %c0_2 = arith.constant 0 : index
    %1 = vector.load %arg1[%c0_1, %c0_2] : memref<256x32xbf16, #tpu.memory_space<vmem>>, vector<256x32xbf16>
    %cst = arith.constant dense<0.000000e+00> : vector<256x32xf32>
    %2 = tpu.matmul %1, %0, %cst {dimension_numbers = #tpu.dot_dimension_numbers<[1], [0], [0], [1], [0, 0, 1, 1], [], []>} : vector<256x32xbf16>, vector<32x32xbf16>, vector<256x32xf32> -> vector<256x32xf32>
    %c0_3 = arith.constant 0 : index
    %c0_4 = arith.constant 0 : index
    %3 = vector.load %arg2[%c0_3, %c0_4] : memref<256x32xbf16, #tpu.memory_space<vmem>>, vector<256x32xbf16>
    %cst_5 = arith.constant dense<0.000000e+00> : vector<256x32xf32>
    %4 = tpu.matmul %3, %0, %cst_5 {dimension_numbers = #tpu.dot_dimension_numbers<[1], [0], [0], [1], [0, 0, 1, 1], [], []>} : vector<256x32xbf16>, vector<32x32xbf16>, vector<256x32xf32> -> vector<256x32xf32>
    %5 = arith.maximumf %2, %4 : vector<256x32xf32>
    %c0_6 = arith.constant 0 : index
    %c0_7 = arith.constant 0 : index
    %6 = vector.load %arg3[%c0_6, %c0_7] : memref<256x32xbf16, #tpu.memory_space<vmem>>, vector<256x32xbf16>
    %cst_8 = arith.constant dense<0.000000e+00> : vector<256x32xf32>
    %7 = tpu.matmul %6, %0, %cst_8 {dimension_numbers = #tpu.dot_dimension_numbers<[1], [0], [0], [1], [0, 0, 1, 1], [], []>} : vector<256x32xbf16>, vector<32x32xbf16>, vector<256x32xf32> -> vector<256x32xf32>
    %8 = arith.maximumf %5, %7 : vector<256x32xf32>
    %c0_9 = arith.constant 0 : index
    %c0_10 = arith.constant 0 : index
    %9 = vector.load %arg4[%c0_9, %c0_10] : memref<256x32xbf16, #tpu.memory_space<vmem>>, vector<256x32xbf16>
    %cst_11 = arith.constant dense<0.000000e+00> : vector<256x32xf32>
    %10 = tpu.matmul %9, %0, %cst_11 {dimension_numbers = #tpu.dot_dimension_numbers<[1], [0], [0], [1], [0, 0, 1, 1], [], []>} : vector<256x32xbf16>, vector<32x32xbf16>, vector<256x32xf32> -> vector<256x32xf32>
    %11 = arith.maximumf %8, %10 : vector<256x32xf32>
    %c0_12 = arith.constant 0 : index
    %c0_13 = arith.constant 0 : index
    %12 = vector.load %arg6[%c0_12, %c0_13] : memref<1x32xf32, #tpu.memory_space<vmem>>, vector<1x32xf32>
    %13 = vector.broadcast %12 : vector<1x32xf32> to vector<256x32xf32>
    %14 = arith.addf %11, %13 : vector<256x32xf32>
    %cst_14 = arith.constant 0.000000e+00 : f32
    %15 = vector.broadcast %cst_14 : f32 to vector<256x32xf32>
    %16 = arith.maximumf %14, %15 : vector<256x32xf32>
    %c0_15 = arith.constant 0 : index
    %c0_16 = arith.constant 0 : index
    %17 = vector.load %arg7[%c0_15, %c0_16] : memref<256x32xf32, #tpu.memory_space<vmem>>, vector<256x32xf32>
    tpu.vector_store %arg7[%c0_15, %c0_16], %16 {strides = array<i32>} : memref<256x32xf32, #tpu.memory_space<vmem>>, vector<256x32xf32>,
    return
  }
  func.func @transform_0(%arg0: i32) -> (i32, i32) {
    %c0_i32 = arith.constant 0 : i32
    %c0_i32_0 = arith.constant 0 : i32
    return %arg0, %c0_i32 : i32, i32
  }
  func.func @transform_1(%arg0: i32) -> (i32, i32) {
    %c0_i32 = arith.constant 0 : i32
    %c0_i32_0 = arith.constant 0 : i32
    return %arg0, %c0_i32 : i32, i32
  }
  func.func @transform_2(%arg0: i32) -> (i32, i32) {
    %c0_i32 = arith.constant 0 : i32
    %c0_i32_0 = arith.constant 0 : i32
    return %arg0, %c0_i32 : i32, i32
  }
  func.func @transform_3(%arg0: i32) -> (i32, i32) {
    %c0_i32 = arith.constant 0 : i32
    %c0_i32_0 = arith.constant 0 : i32
    return %arg0, %c0_i32 : i32, i32
  }
  func.func @transform_4(%arg0: i32) -> (i32, i32) {
    %c0_i32 = arith.constant 0 : i32
    %c0_i32_0 = arith.constant 0 : i32
    %c0_i32_1 = arith.constant 0 : i32
    return %c0_i32, %c0_i32_0 : i32, i32
  }
  func.func @transform_5(%arg0: i32) -> (i32, i32) {
    %c0_i32 = arith.constant 0 : i32
    %c0_i32_0 = arith.constant 0 : i32
    %c0_i32_1 = arith.constant 0 : i32
    return %c0_i32, %c0_i32_0 : i32, i32
  }
  func.func @transform_6(%arg0: i32) -> (i32, i32) {
    %c0_i32 = arith.constant 0 : i32
    %c0_i32_0 = arith.constant 0 : i32
    return %arg0, %c0_i32 : i32, i32
  }
}

module attributes {stable_mosaic.version = 11 : i64} {
  func.func @_conv_pool_kernel(%arg0: i32, %arg1: memref<64x288xbf16, #tpu.memory_space<vmem>>, %arg2: memref<64x288xbf16, #tpu.memory_space<vmem>>, %arg3: memref<64x288xbf16, #tpu.memory_space<vmem>>, %arg4: memref<64x288xbf16, #tpu.memory_space<vmem>>, %arg5: memref<288x64xbf16, #tpu.memory_space<vmem>>, %arg6: memref<1x64xf32, #tpu.memory_space<vmem>>, %arg7: memref<64x64xf32, #tpu.memory_space<vmem>>) attributes {dimension_semantics = [#tpu.dimension_semantics<parallel>], iteration_bounds = array<i64: 2>, scalar_prefetch = 0 : i64, scratch_operands = 0 : i64, tpu.core_type = #tpu.core_type<tc>, window_params = [{transform_indices = @transform_0, window_bounds = array<i64: 64, 288>}, {transform_indices = @transform_1, window_bounds = array<i64: 64, 288>}, {transform_indices = @transform_2, window_bounds = array<i64: 64, 288>}, {transform_indices = @transform_3, window_bounds = array<i64: 64, 288>}, {pipeline_mode = #tpu.pipeline_mode<synchronous>, transform_indices = @transform_4, window_bounds = array<i64: 288, 64>}, {pipeline_mode = #tpu.pipeline_mode<synchronous>, transform_indices = @transform_5, window_bounds = array<i64: 1, 64>}, {transform_indices = @transform_6, window_bounds = array<i64: 64, 64>}]} {
    %c0 = arith.constant 0 : index
    %c0_0 = arith.constant 0 : index
    %0 = vector.load %arg5[%c0, %c0_0] : memref<288x64xbf16, #tpu.memory_space<vmem>>, vector<288x64xbf16>
    %c0_1 = arith.constant 0 : index
    %c0_2 = arith.constant 0 : index
    %1 = vector.load %arg1[%c0_1, %c0_2] : memref<64x288xbf16, #tpu.memory_space<vmem>>, vector<64x288xbf16>
    %cst = arith.constant dense<0.000000e+00> : vector<64x64xf32>
    %2 = tpu.matmul %1, %0, %cst {dimension_numbers = #tpu.dot_dimension_numbers<[1], [0], [0], [1], [0, 0, 1, 1], [], []>} : vector<64x288xbf16>, vector<288x64xbf16>, vector<64x64xf32> -> vector<64x64xf32>
    %c0_3 = arith.constant 0 : index
    %c0_4 = arith.constant 0 : index
    %3 = vector.load %arg2[%c0_3, %c0_4] : memref<64x288xbf16, #tpu.memory_space<vmem>>, vector<64x288xbf16>
    %cst_5 = arith.constant dense<0.000000e+00> : vector<64x64xf32>
    %4 = tpu.matmul %3, %0, %cst_5 {dimension_numbers = #tpu.dot_dimension_numbers<[1], [0], [0], [1], [0, 0, 1, 1], [], []>} : vector<64x288xbf16>, vector<288x64xbf16>, vector<64x64xf32> -> vector<64x64xf32>
    %5 = arith.maximumf %2, %4 : vector<64x64xf32>
    %c0_6 = arith.constant 0 : index
    %c0_7 = arith.constant 0 : index
    %6 = vector.load %arg3[%c0_6, %c0_7] : memref<64x288xbf16, #tpu.memory_space<vmem>>, vector<64x288xbf16>
    %cst_8 = arith.constant dense<0.000000e+00> : vector<64x64xf32>
    %7 = tpu.matmul %6, %0, %cst_8 {dimension_numbers = #tpu.dot_dimension_numbers<[1], [0], [0], [1], [0, 0, 1, 1], [], []>} : vector<64x288xbf16>, vector<288x64xbf16>, vector<64x64xf32> -> vector<64x64xf32>
    %8 = arith.maximumf %5, %7 : vector<64x64xf32>
    %c0_9 = arith.constant 0 : index
    %c0_10 = arith.constant 0 : index
    %9 = vector.load %arg4[%c0_9, %c0_10] : memref<64x288xbf16, #tpu.memory_space<vmem>>, vector<64x288xbf16>
    %cst_11 = arith.constant dense<0.000000e+00> : vector<64x64xf32>
    %10 = tpu.matmul %9, %0, %cst_11 {dimension_numbers = #tpu.dot_dimension_numbers<[1], [0], [0], [1], [0, 0, 1, 1], [], []>} : vector<64x288xbf16>, vector<288x64xbf16>, vector<64x64xf32> -> vector<64x64xf32>
    %11 = arith.maximumf %8, %10 : vector<64x64xf32>
    %c0_12 = arith.constant 0 : index
    %c0_13 = arith.constant 0 : index
    %12 = vector.load %arg6[%c0_12, %c0_13] : memref<1x64xf32, #tpu.memory_space<vmem>>, vector<1x64xf32>
    %13 = vector.broadcast %12 : vector<1x64xf32> to vector<64x64xf32>
    %14 = arith.addf %11, %13 : vector<64x64xf32>
    %cst_14 = arith.constant 0.000000e+00 : f32
    %15 = vector.broadcast %cst_14 : f32 to vector<64x64xf32>
    %16 = arith.maximumf %14, %15 : vector<64x64xf32>
    %c0_15 = arith.constant 0 : index
    %c0_16 = arith.constant 0 : index
    %17 = vector.load %arg7[%c0_15, %c0_16] : memref<64x64xf32, #tpu.memory_space<vmem>>, vector<64x64xf32>
    tpu.vector_store %arg7[%c0_15, %c0_16], %16 {strides = array<i32>} : memref<64x64xf32, #tpu.memory_space<vmem>>, vector<64x64xf32>,
    return
  }
  func.func @transform_0(%arg0: i32) -> (i32, i32) {
    %c0_i32 = arith.constant 0 : i32
    %c0_i32_0 = arith.constant 0 : i32
    return %arg0, %c0_i32 : i32, i32
  }
  func.func @transform_1(%arg0: i32) -> (i32, i32) {
    %c0_i32 = arith.constant 0 : i32
    %c0_i32_0 = arith.constant 0 : i32
    return %arg0, %c0_i32 : i32, i32
  }
  func.func @transform_2(%arg0: i32) -> (i32, i32) {
    %c0_i32 = arith.constant 0 : i32
    %c0_i32_0 = arith.constant 0 : i32
    return %arg0, %c0_i32 : i32, i32
  }
  func.func @transform_3(%arg0: i32) -> (i32, i32) {
    %c0_i32 = arith.constant 0 : i32
    %c0_i32_0 = arith.constant 0 : i32
    return %arg0, %c0_i32 : i32, i32
  }
  func.func @transform_4(%arg0: i32) -> (i32, i32) {
    %c0_i32 = arith.constant 0 : i32
    %c0_i32_0 = arith.constant 0 : i32
    %c0_i32_1 = arith.constant 0 : i32
    return %c0_i32, %c0_i32_0 : i32, i32
  }
  func.func @transform_5(%arg0: i32) -> (i32, i32) {
    %c0_i32 = arith.constant 0 : i32
    %c0_i32_0 = arith.constant 0 : i32
    %c0_i32_1 = arith.constant 0 : i32
    return %c0_i32, %c0_i32_0 : i32, i32
  }
  func.func @transform_6(%arg0: i32) -> (i32, i32) {
    %c0_i32 = arith.constant 0 : i32
    %c0_i32_0 = arith.constant 0 : i32
    return %arg0, %c0_i32 : i32, i32
  }
}

module attributes {stable_mosaic.version = 11 : i64} {
  func.func @_conv_pool_kernel(%arg0: i32, %arg1: memref<16x576xbf16, #tpu.memory_space<vmem>>, %arg2: memref<16x576xbf16, #tpu.memory_space<vmem>>, %arg3: memref<16x576xbf16, #tpu.memory_space<vmem>>, %arg4: memref<16x576xbf16, #tpu.memory_space<vmem>>, %arg5: memref<576x128xbf16, #tpu.memory_space<vmem>>, %arg6: memref<1x128xf32, #tpu.memory_space<vmem>>, %arg7: memref<16x128xf32, #tpu.memory_space<vmem>>) attributes {dimension_semantics = [#tpu.dimension_semantics<parallel>], iteration_bounds = array<i64: 2>, scalar_prefetch = 0 : i64, scratch_operands = 0 : i64, tpu.core_type = #tpu.core_type<tc>, window_params = [{transform_indices = @transform_0, window_bounds = array<i64: 16, 576>}, {transform_indices = @transform_1, window_bounds = array<i64: 16, 576>}, {transform_indices = @transform_2, window_bounds = array<i64: 16, 576>}, {transform_indices = @transform_3, window_bounds = array<i64: 16, 576>}, {pipeline_mode = #tpu.pipeline_mode<synchronous>, transform_indices = @transform_4, window_bounds = array<i64: 576, 128>}, {pipeline_mode = #tpu.pipeline_mode<synchronous>, transform_indices = @transform_5, window_bounds = array<i64: 1, 128>}, {transform_indices = @transform_6, window_bounds = array<i64: 16, 128>}]} {
    %c0 = arith.constant 0 : index
    %c0_0 = arith.constant 0 : index
    %0 = vector.load %arg5[%c0, %c0_0] : memref<576x128xbf16, #tpu.memory_space<vmem>>, vector<576x128xbf16>
    %c0_1 = arith.constant 0 : index
    %c0_2 = arith.constant 0 : index
    %1 = vector.load %arg1[%c0_1, %c0_2] : memref<16x576xbf16, #tpu.memory_space<vmem>>, vector<16x576xbf16>
    %cst = arith.constant dense<0.000000e+00> : vector<16x128xf32>
    %2 = tpu.matmul %1, %0, %cst {dimension_numbers = #tpu.dot_dimension_numbers<[1], [0], [0], [1], [0, 0, 1, 1], [], []>} : vector<16x576xbf16>, vector<576x128xbf16>, vector<16x128xf32> -> vector<16x128xf32>
    %c0_3 = arith.constant 0 : index
    %c0_4 = arith.constant 0 : index
    %3 = vector.load %arg2[%c0_3, %c0_4] : memref<16x576xbf16, #tpu.memory_space<vmem>>, vector<16x576xbf16>
    %cst_5 = arith.constant dense<0.000000e+00> : vector<16x128xf32>
    %4 = tpu.matmul %3, %0, %cst_5 {dimension_numbers = #tpu.dot_dimension_numbers<[1], [0], [0], [1], [0, 0, 1, 1], [], []>} : vector<16x576xbf16>, vector<576x128xbf16>, vector<16x128xf32> -> vector<16x128xf32>
    %5 = arith.maximumf %2, %4 : vector<16x128xf32>
    %c0_6 = arith.constant 0 : index
    %c0_7 = arith.constant 0 : index
    %6 = vector.load %arg3[%c0_6, %c0_7] : memref<16x576xbf16, #tpu.memory_space<vmem>>, vector<16x576xbf16>
    %cst_8 = arith.constant dense<0.000000e+00> : vector<16x128xf32>
    %7 = tpu.matmul %6, %0, %cst_8 {dimension_numbers = #tpu.dot_dimension_numbers<[1], [0], [0], [1], [0, 0, 1, 1], [], []>} : vector<16x576xbf16>, vector<576x128xbf16>, vector<16x128xf32> -> vector<16x128xf32>
    %8 = arith.maximumf %5, %7 : vector<16x128xf32>
    %c0_9 = arith.constant 0 : index
    %c0_10 = arith.constant 0 : index
    %9 = vector.load %arg4[%c0_9, %c0_10] : memref<16x576xbf16, #tpu.memory_space<vmem>>, vector<16x576xbf16>
    %cst_11 = arith.constant dense<0.000000e+00> : vector<16x128xf32>
    %10 = tpu.matmul %9, %0, %cst_11 {dimension_numbers = #tpu.dot_dimension_numbers<[1], [0], [0], [1], [0, 0, 1, 1], [], []>} : vector<16x576xbf16>, vector<576x128xbf16>, vector<16x128xf32> -> vector<16x128xf32>
    %11 = arith.maximumf %8, %10 : vector<16x128xf32>
    %c0_12 = arith.constant 0 : index
    %c0_13 = arith.constant 0 : index
    %12 = vector.load %arg6[%c0_12, %c0_13] : memref<1x128xf32, #tpu.memory_space<vmem>>, vector<1x128xf32>
    %13 = vector.broadcast %12 : vector<1x128xf32> to vector<16x128xf32>
    %14 = arith.addf %11, %13 : vector<16x128xf32>
    %cst_14 = arith.constant 0.000000e+00 : f32
    %15 = vector.broadcast %cst_14 : f32 to vector<16x128xf32>
    %16 = arith.maximumf %14, %15 : vector<16x128xf32>
    %c0_15 = arith.constant 0 : index
    %c0_16 = arith.constant 0 : index
    %17 = vector.load %arg7[%c0_15, %c0_16] : memref<16x128xf32, #tpu.memory_space<vmem>>, vector<16x128xf32>
    tpu.vector_store %arg7[%c0_15, %c0_16], %16 {strides = array<i32>} : memref<16x128xf32, #tpu.memory_space<vmem>>, vector<16x128xf32>,
    return
  }
  func.func @transform_0(%arg0: i32) -> (i32, i32) {
    %c0_i32 = arith.constant 0 : i32
    %c0_i32_0 = arith.constant 0 : i32
    return %arg0, %c0_i32 : i32, i32
  }
  func.func @transform_1(%arg0: i32) -> (i32, i32) {
    %c0_i32 = arith.constant 0 : i32
    %c0_i32_0 = arith.constant 0 : i32
    return %arg0, %c0_i32 : i32, i32
  }
  func.func @transform_2(%arg0: i32) -> (i32, i32) {
    %c0_i32 = arith.constant 0 : i32
    %c0_i32_0 = arith.constant 0 : i32
    return %arg0, %c0_i32 : i32, i32
  }
  func.func @transform_3(%arg0: i32) -> (i32, i32) {
    %c0_i32 = arith.constant 0 : i32
    %c0_i32_0 = arith.constant 0 : i32
    return %arg0, %c0_i32 : i32, i32
  }
  func.func @transform_4(%arg0: i32) -> (i32, i32) {
    %c0_i32 = arith.constant 0 : i32
    %c0_i32_0 = arith.constant 0 : i32
    %c0_i32_1 = arith.constant 0 : i32
    return %c0_i32, %c0_i32_0 : i32, i32
  }
  func.func @transform_5(%arg0: i32) -> (i32, i32) {
    %c0_i32 = arith.constant 0 : i32
    %c0_i32_0 = arith.constant 0 : i32
    %c0_i32_1 = arith.constant 0 : i32
    return %c0_i32, %c0_i32_0 : i32, i32
  }
  func.func @transform_6(%arg0: i32) -> (i32, i32) {
    %c0_i32 = arith.constant 0 : i32
    %c0_i32_0 = arith.constant 0 : i32
    return %arg0, %c0_i32 : i32, i32
  }
}

module attributes {stable_mosaic.version = 11 : i64} {
  func.func @_matmul_bias_act_kernel(%arg0: i32, %arg1: memref<2x2048xbf16, #tpu.memory_space<vmem>>, %arg2: memref<2048x256xbf16, #tpu.memory_space<vmem>>, %arg3: memref<1x256xf32, #tpu.memory_space<vmem>>, %arg4: memref<2x256xf32, #tpu.memory_space<vmem>>) attributes {dimension_semantics = [#tpu.dimension_semantics<parallel>], iteration_bounds = array<i64: 1>, scalar_prefetch = 0 : i64, scratch_operands = 0 : i64, tpu.core_type = #tpu.core_type<tc>, window_params = [{transform_indices = @transform_0, window_bounds = array<i64: 2, 2048>}, {pipeline_mode = #tpu.pipeline_mode<synchronous>, transform_indices = @transform_1, window_bounds = array<i64: 2048, 256>}, {pipeline_mode = #tpu.pipeline_mode<synchronous>, transform_indices = @transform_2, window_bounds = array<i64: 1, 256>}, {transform_indices = @transform_3, window_bounds = array<i64: 2, 256>}]} {
    %c0 = arith.constant 0 : index
    %c0_0 = arith.constant 0 : index
    %0 = vector.load %arg1[%c0, %c0_0] : memref<2x2048xbf16, #tpu.memory_space<vmem>>, vector<2x2048xbf16>
    %c0_1 = arith.constant 0 : index
    %c0_2 = arith.constant 0 : index
    %1 = vector.load %arg2[%c0_1, %c0_2] : memref<2048x256xbf16, #tpu.memory_space<vmem>>, vector<2048x256xbf16>
    %cst = arith.constant dense<0.000000e+00> : vector<2x256xf32>
    %2 = tpu.matmul %0, %1, %cst {dimension_numbers = #tpu.dot_dimension_numbers<[1], [0], [0], [1], [0, 0, 1, 1], [], []>} : vector<2x2048xbf16>, vector<2048x256xbf16>, vector<2x256xf32> -> vector<2x256xf32>
    %c0_3 = arith.constant 0 : index
    %c0_4 = arith.constant 0 : index
    %3 = vector.load %arg3[%c0_3, %c0_4] : memref<1x256xf32, #tpu.memory_space<vmem>>, vector<1x256xf32>
    %4 = vector.broadcast %3 : vector<1x256xf32> to vector<2x256xf32>
    %5 = arith.addf %2, %4 : vector<2x256xf32>
    %cst_5 = arith.constant 0.000000e+00 : f32
    %6 = vector.broadcast %cst_5 : f32 to vector<2x256xf32>
    %7 = arith.maximumf %5, %6 : vector<2x256xf32>
    %c0_6 = arith.constant 0 : index
    %c0_7 = arith.constant 0 : index
    %8 = vector.load %arg4[%c0_6, %c0_7] : memref<2x256xf32, #tpu.memory_space<vmem>>, vector<2x256xf32>
    tpu.vector_store %arg4[%c0_6, %c0_7], %7 {strides = array<i32>} : memref<2x256xf32, #tpu.memory_space<vmem>>, vector<2x256xf32>,
    return
  }
  func.func @transform_0(%arg0: i32) -> (i32, i32) {
    %c0_i32 = arith.constant 0 : i32
    %c0_i32_0 = arith.constant 0 : i32
    return %arg0, %c0_i32 : i32, i32
  }
  func.func @transform_1(%arg0: i32) -> (i32, i32) {
    %c0_i32 = arith.constant 0 : i32
    %c0_i32_0 = arith.constant 0 : i32
    %c0_i32_1 = arith.constant 0 : i32
    return %c0_i32, %c0_i32_0 : i32, i32
  }
  func.func @transform_2(%arg0: i32) -> (i32, i32) {
    %c0_i32 = arith.constant 0 : i32
    %c0_i32_0 = arith.constant 0 : i32
    %c0_i32_1 = arith.constant 0 : i32
    return %c0_i32, %c0_i32_0 : i32, i32
  }
  func.func @transform_3(%arg0: i32) -> (i32, i32) {
    %c0_i32 = arith.constant 0 : i32
    %c0_i32_0 = arith.constant 0 : i32
    return %arg0, %c0_i32 : i32, i32
  }
}

module attributes {stable_mosaic.version = 11 : i64} {
  func.func @_matmul_bias_act_kernel(%arg0: i32, %arg1: memref<2x256xbf16, #tpu.memory_space<vmem>>, %arg2: memref<256x128xbf16, #tpu.memory_space<vmem>>, %arg3: memref<1x128xf32, #tpu.memory_space<vmem>>, %arg4: memref<2x128xf32, #tpu.memory_space<vmem>>) attributes {dimension_semantics = [#tpu.dimension_semantics<parallel>], iteration_bounds = array<i64: 1>, scalar_prefetch = 0 : i64, scratch_operands = 0 : i64, tpu.core_type = #tpu.core_type<tc>, window_params = [{transform_indices = @transform_0, window_bounds = array<i64: 2, 256>}, {pipeline_mode = #tpu.pipeline_mode<synchronous>, transform_indices = @transform_1, window_bounds = array<i64: 256, 128>}, {pipeline_mode = #tpu.pipeline_mode<synchronous>, transform_indices = @transform_2, window_bounds = array<i64: 1, 128>}, {transform_indices = @transform_3, window_bounds = array<i64: 2, 128>}]} {
    %c0 = arith.constant 0 : index
    %c0_0 = arith.constant 0 : index
    %0 = vector.load %arg1[%c0, %c0_0] : memref<2x256xbf16, #tpu.memory_space<vmem>>, vector<2x256xbf16>
    %c0_1 = arith.constant 0 : index
    %c0_2 = arith.constant 0 : index
    %1 = vector.load %arg2[%c0_1, %c0_2] : memref<256x128xbf16, #tpu.memory_space<vmem>>, vector<256x128xbf16>
    %cst = arith.constant dense<0.000000e+00> : vector<2x128xf32>
    %2 = tpu.matmul %0, %1, %cst {dimension_numbers = #tpu.dot_dimension_numbers<[1], [0], [0], [1], [0, 0, 1, 1], [], []>} : vector<2x256xbf16>, vector<256x128xbf16>, vector<2x128xf32> -> vector<2x128xf32>
    %c0_3 = arith.constant 0 : index
    %c0_4 = arith.constant 0 : index
    %3 = vector.load %arg3[%c0_3, %c0_4] : memref<1x128xf32, #tpu.memory_space<vmem>>, vector<1x128xf32>
    %4 = vector.broadcast %3 : vector<1x128xf32> to vector<2x128xf32>
    %5 = arith.addf %2, %4 : vector<2x128xf32>
    %c0_5 = arith.constant 0 : index
    %c0_6 = arith.constant 0 : index
    %6 = vector.load %arg4[%c0_5, %c0_6] : memref<2x128xf32, #tpu.memory_space<vmem>>, vector<2x128xf32>
    tpu.vector_store %arg4[%c0_5, %c0_6], %5 {strides = array<i32>} : memref<2x128xf32, #tpu.memory_space<vmem>>, vector<2x128xf32>,
    return
  }
  func.func @transform_0(%arg0: i32) -> (i32, i32) {
    %c0_i32 = arith.constant 0 : i32
    %c0_i32_0 = arith.constant 0 : i32
    return %arg0, %c0_i32 : i32, i32
  }
  func.func @transform_1(%arg0: i32) -> (i32, i32) {
    %c0_i32 = arith.constant 0 : i32
    %c0_i32_0 = arith.constant 0 : i32
    %c0_i32_1 = arith.constant 0 : i32
    return %c0_i32, %c0_i32_0 : i32, i32
  }
  func.func @transform_2(%arg0: i32) -> (i32, i32) {
    %c0_i32 = arith.constant 0 : i32
    %c0_i32_0 = arith.constant 0 : i32
    %c0_i32_1 = arith.constant 0 : i32
    return %c0_i32, %c0_i32_0 : i32, i32
  }
  func.func @transform_3(%arg0: i32) -> (i32, i32) {
    %c0_i32 = arith.constant 0 : i32
    %c0_i32_0 = arith.constant 0 : i32
    return %arg0, %c0_i32 : i32, i32
  }
}

</mosaic_0001>

<llo_original>
// kernel: simple_cnn_forward.5
$region0: #{simple_cnn_forward.5}
  #allocation0 [shape = 'u32[]', space=smem, size = 0x4, offset = 0x4, fixed_abs, tag = 'smem constant byte address 0x4 - core index']
  #allocation1 [shape = 'u32[144,128]{1,0:T(1,128)}', space=vmem, size = 0x12000, scoped, tag = 'internal scratch']
  %s0 = inlined_call_operand.vmem [shape: bf16[512,32], index: 0, kind: input, shape index: {}]
  %s1 = inlined_call_operand.vmem [shape: bf16[512,32], index: 1, kind: input, shape index: {}]
  %s2 = inlined_call_operand.vmem [shape: bf16[512,32], index: 2, kind: input, shape index: {}]
  %s3 = inlined_call_operand.vmem [shape: bf16[512,32], index: 3, kind: input, shape index: {}]
  %s4 = inlined_call_operand.vmem [shape: bf16[32,32], index: 4, kind: input, shape index: {}]
  %s5 = inlined_call_operand.vmem [shape: f32[1,32], index: 5, kind: input, shape index: {}]
  %s6 = inlined_call_operand.vmem [shape: f32[512,32], index: 6, kind: output, shape index: {}]
  %s7 = sld [smem:[#allocation0]]
  $region57: #{simple_cnn_forward.5} parent=0
    _
  %s9 = ssub.s32 1, %s7
  %s10 = scalar_select 0, %s9, %s7
  loop: start=0, step=1, limit=4
  $region2: #{simple_cnn_forward.5} parent=0 // loop_pre_header
    _
  $region3: #{simple_cnn_forward.5} parent=0 // loop_header
    %s12 = sphi 0, %s16
    %p13 = scmp.ge.s32.totalorder %s12, 4
    %s22 = sphi 0, %s24
    %s25 = sphi 0, %s22
    %s26 = sphi 0, %s25
    %s42 = sphi 0, %s26
    %s48 = sphi 0, %s50
    %s51 = sphi 0, %s48
    %s52 = sphi 0, %s51
    %s68 = sphi 0, %s52
    %s74 = sphi 0, %s76
    %s77 = sphi 0, %s74
    %s78 = sphi 0, %s77
    %s94 = sphi 0, %s78
    %s100 = sphi 0, %s102
    %s103 = sphi 0, %s100
    %s104 = sphi 0, %s103
    %s120 = sphi 0, %s104
    %s124 = sphi 0, %s124
    %s126 = sphi 0, %s124
    %s127 = sphi 0, %s126
    %s141 = sphi 0, %s127
    %s145 = sphi 0, %s145
    %s147 = sphi 0, %s145
    %s148 = sphi 0, %s147
    %s162 = sphi 0, %s148
    %s168 = sphi 0, %s170
    %s171 = sphi 0, %s168
    %s172 = sphi 0, %s171
    %s188 = sphi 0, %s172
  $region4: #{simple_cnn_forward.5} parent=0 // loop_header_branch
    %15 = sbr.rel (%p13) target = $region8
  $region5: #{simple_cnn_forward.5} parent=0 // loop_body
    %s17 = ssub.s32 %s12, 1
    %s18 = ssub.s32 %s12, 2
    %s19 = sadd.s32 %s12, 1
    %s20 = ssub.s32 %s12, %s19
    %p21 = scmp.eq.s32.totalorder %s20, 0
    %s23 = sadd.s32 %s22, 1
    %s24 = scalar_select %p21, %s22, %s23
    %p27 = pneg %p21
    %p28 = scmp.eq.s32.totalorder %s12, 1
    %p29 = por %p27, %p28
    %p30 = scmp.ne.s32.totalorder %s22, %s25
    %p31 = scmp.eq.s32.totalorder %s12, 0
    %p32 = por %p30, %p31
    %p33 = scmp.ne.s32.totalorder %s22, %s25
    %p34 = scmp.eq.s32.totalorder %s17, 1
    %p35 = por %p33, %p34
    %p36 = scmp.ne.s32.totalorder %s25, %s26
    %p37 = scmp.eq.s32.totalorder %s17, 0
    %p38 = por %p36, %p37
    %p39 = scmp.ne.s32.totalorder %s25, %s26
    %p40 = scmp.eq.s32.totalorder %s18, 1
    %p41 = por %p39, %p40
    %p43 = scmp.ne.s32.totalorder %s26, %s42
    %p44 = scmp.eq.s32.totalorder %s18, 0
    %p45 = por %p43, %p44
    %s46 = ssub.s32 %s12, %s19
    %p47 = scmp.eq.s32.totalorder %s46, 0
    %s49 = sadd.s32 %s48, 1
    %s50 = scalar_select %p47, %s48, %s49
    %p53 = pneg %p47
    %p54 = scmp.eq.s32.totalorder %s12, 1
    %p55 = por %p53, %p54
    %p56 = scmp.ne.s32.totalorder %s48, %s51
    %p57 = scmp.eq.s32.totalorder %s12, 0
    %p58 = por %p56, %p57
    %p59 = scmp.ne.s32.totalorder %s48, %s51
    %p60 = scmp.eq.s32.totalorder %s17, 1
    %p61 = por %p59, %p60
    %p62 = scmp.ne.s32.totalorder %s51, %s52
    %p63 = scmp.eq.s32.totalorder %s17, 0
    %p64 = por %p62, %p63
    %p65 = scmp.ne.s32.totalorder %s51, %s52
    %p66 = scmp.eq.s32.totalorder %s18, 1
    %p67 = por %p65, %p66
    %p69 = scmp.ne.s32.totalorder %s52, %s68
    %p70 = scmp.eq.s32.totalorder %s18, 0
    %p71 = por %p69, %p70
    %s72 = ssub.s32 %s12, %s19
    %p73 = scmp.eq.s32.totalorder %s72, 0
    %s75 = sadd.s32 %s74, 1
    %s76 = scalar_select %p73, %s74, %s75
    %p79 = pneg %p73
    %p80 = scmp.eq.s32.totalorder %s12, 1
    %p81 = por %p79, %p80
    %p82 = scmp.ne.s32.totalorder %s74, %s77
    %p83 = scmp.eq.s32.totalorder %s12, 0
    %p84 = por %p82, %p83
    %p85 = scmp.ne.s32.totalorder %s74, %s77
    %p86 = scmp.eq.s32.totalorder %s17, 1
    %p87 = por %p85, %p86
    %p88 = scmp.ne.s32.totalorder %s77, %s78
    %p89 = scmp.eq.s32.totalorder %s17, 0
    %p90 = por %p88, %p89
    %p91 = scmp.ne.s32.totalorder %s77, %s78
    %p92 = scmp.eq.s32.totalorder %s18, 1
    %p93 = por %p91, %p92
    %p95 = scmp.ne.s32.totalorder %s78, %s94
    %p96 = scmp.eq.s32.totalorder %s18, 0
    %p97 = por %p95, %p96
    %s98 = ssub.s32 %s12, %s19
    %p99 = scmp.eq.s32.totalorder %s98, 0
    %s101 = sadd.s32 %s100, 1
    %s102 = scalar_select %p99, %s100, %s101
    %p105 = pneg %p99
    %p106 = scmp.eq.s32.totalorder %s12, 1
    %p107 = por %p105, %p106
    %p108 = scmp.ne.s32.totalorder %s100, %s103
    %p109 = scmp.eq.s32.totalorder %s12, 0
    %p110 = por %p108, %p109
    %p111 = scmp.ne.s32.totalorder %s100, %s103
    %p112 = scmp.eq.s32.totalorder %s17, 1
    %p113 = por %p111, %p112
    %p114 = scmp.ne.s32.totalorder %s103, %s104
    %p115 = scmp.eq.s32.totalorder %s17, 0
    %p116 = por %p114, %p115
    %p117 = scmp.ne.s32.totalorder %s103, %s104
    %p118 = scmp.eq.s32.totalorder %s18, 1
    %p119 = por %p117, %p118
    %p121 = scmp.ne.s32.totalorder %s104, %s120
    %p122 = scmp.eq.s32.totalorder %s18, 0
    %p123 = por %p121, %p122
    %s125 = sadd.s32 %s124, 1
    %p128 = scmp.eq.s32.totalorder %s12, 1
    %p129 = scmp.ne.s32.totalorder %s124, %s126
    %p130 = scmp.eq.s32.totalorder %s12, 0
    %p131 = por %p129, %p130
    %p132 = scmp.ne.s32.totalorder %s124, %s126
    %p133 = scmp.eq.s32.totalorder %s17, 1
    %p134 = por %p132, %p133
    %p135 = scmp.ne.s32.totalorder %s126, %s127
    %p136 = scmp.eq.s32.totalorder %s17, 0
    %p137 = por %p135, %p136
    %p138 = scmp.ne.s32.totalorder %s126, %s127
    %p139 = scmp.eq.s32.totalorder %s18, 1
    %p140 = por %p138, %p139
    %p142 = scmp.ne.s32.totalorder %s127, %s141
    %p143 = scmp.eq.s32.totalorder %s18, 0
    %p144 = por %p142, %p143
    %s146 = sadd.s32 %s145, 1
    %p149 = scmp.eq.s32.totalorder %s12, 1
    %p150 = scmp.ne.s32.totalorder %s145, %s147
    %p151 = scmp.eq.s32.totalorder %s12, 0
    %p152 = por %p150, %p151
    %p153 = scmp.ne.s32.totalorder %s145, %s147
    %p154 = scmp.eq.s32.totalorder %s17, 1
    %p155 = por %p153, %p154
    %p156 = scmp.ne.s32.totalorder %s147, %s148
    %p157 = scmp.eq.s32.totalorder %s17, 0
    %p158 = por %p156, %p157
    %p159 = scmp.ne.s32.totalorder %s147, %s148
    %p160 = scmp.eq.s32.totalorder %s18, 1
    %p161 = por %p159, %p160
    %p163 = scmp.ne.s32.totalorder %s148, %s162
    %p164 = scmp.eq.s32.totalorder %s18, 0
    %p165 = por %p163, %p164
    %s166 = ssub.s32 %s12, %s19
    %p167 = scmp.eq.s32.totalorder %s166, 0
    %s169 = sadd.s32 %s168, 1
    %s170 = scalar_select %p167, %s168, %s169
    %p173 = pneg %p167
    %p174 = scmp.eq.s32.totalorder %s12, 1
    %p175 = por %p173, %p174
    %p176 = scmp.ne.s32.totalorder %s168, %s171
    %p177 = scmp.eq.s32.totalorder %s12, 0
    %p178 = por %p176, %p177
    %p179 = scmp.ne.s32.totalorder %s168, %s171
    %p180 = scmp.eq.s32.totalorder %s17, 1
    %p181 = por %p179, %p180
    %p182 = scmp.ne.s32.totalorder %s171, %s172
    %p183 = scmp.eq.s32.totalorder %s17, 0
    %p184 = por %p182, %p183
    %p185 = scmp.ne.s32.totalorder %s171, %s172
    %p186 = scmp.eq.s32.totalorder %s18, 1
    %p187 = por %p185, %p186
    %p189 = scmp.ne.s32.totalorder %s172, %s188
    %p190 = scmp.eq.s32.totalorder %s18, 0
    %p191 = por %p189, %p190
    %p192 = scmp.le.s32.totalorder 1, %s12
    %p193 = scmp.lt.s32.totalorder %s12, 3
    %p194 = pnand %p192, %p193
    %p195 = pneg %p194
    // Predicated region
    $region9: #{simple_cnn_forward.5} parent=5 // pred_check
      _
    $region10: #{simple_cnn_forward.5} parent=5 // pred_check_branch
      %197 = sbr.rel (%p194) target = $region12
    $region11: #{simple_cnn_forward.5} parent=5 // pred_region
      %s198 = ssub.s32 %s12, 1
      // Predicated region
      $region13: #{simple_cnn_forward.5} parent=11 // pred_check
        %p199 = pneg %p137
      $region14: #{simple_cnn_forward.5} parent=11 // pred_check_branch
        %201 = sbr.rel (%p199) target = $region16
      $region15: #{simple_cnn_forward.5} parent=11 // pred_region
        _
      $region16: #{simple_cnn_forward.5} parent=11 // pred_fallthru
        _
      // Predicated region
      $region17: #{simple_cnn_forward.5} parent=11 // pred_check
        %p202 = pneg %p158
      $region18: #{simple_cnn_forward.5} parent=11 // pred_check_branch
        %204 = sbr.rel (%p202) target = $region20
      $region19: #{simple_cnn_forward.5} parent=11 // pred_region
        _
      $region20: #{simple_cnn_forward.5} parent=11 // pred_fallthru
        _
    $region12: #{simple_cnn_forward.5} parent=5 // pred_fallthru
      _
    %p205 = scmp.lt.s32.totalorder %s12, 2
    // Predicated region
    $region21: #{simple_cnn_forward.5} parent=5 // pred_check
      %p206 = pneg %p205
    $region22: #{simple_cnn_forward.5} parent=5 // pred_check_branch
      %208 = sbr.rel (%p206) target = $region24
    $region23: #{simple_cnn_forward.5} parent=5 // pred_region
      // Predicated region
      $region25: #{simple_cnn_forward.5} parent=23 // pred_check
        %p209 = pneg %p32
      $region26: #{simple_cnn_forward.5} parent=23 // pred_check_branch
        %211 = sbr.rel (%p209) target = $region28
      $region27: #{simple_cnn_forward.5} parent=23 // pred_region
        %s212 = smul.u32 32, %s12
        %p213 = scmp.lt.s32.totalorder %s212, 63
        %s214 = scalar_select %p213, %s212, 63
        %s215 = smul.addr %s214, 4
        %s216 = scalar_lea.vmem %s0, %s215
        %s217 = smul.u32 32, %s12
      $region28: #{simple_cnn_forward.5} parent=23 // pred_fallthru
        _
      // Predicated region
      $region29: #{simple_cnn_forward.5} parent=23 // pred_check
        %p218 = pneg %p58
      $region30: #{simple_cnn_forward.5} parent=23 // pred_check_branch
        %220 = sbr.rel (%p218) target = $region32
      $region31: #{simple_cnn_forward.5} parent=23 // pred_region
        %s221 = smul.u32 32, %s12
        %p222 = scmp.lt.s32.totalorder %s221, 63
        %s223 = scalar_select %p222, %s221, 63
        %s224 = smul.addr %s223, 4
        %s225 = scalar_lea.vmem %s1, %s224
        %s226 = smul.u32 32, %s12
      $region32: #{simple_cnn_forward.5} parent=23 // pred_fallthru
        _
      // Predicated region
      $region33: #{simple_cnn_forward.5} parent=23 // pred_check
        %p227 = pneg %p84
      $region34: #{simple_cnn_forward.5} parent=23 // pred_check_branch
        %229 = sbr.rel (%p227) target = $region36
      $region35: #{simple_cnn_forward.5} parent=23 // pred_region
        %s230 = smul.u32 32, %s12
        %p231 = scmp.lt.s32.totalorder %s230, 63
        %s232 = scalar_select %p231, %s230, 63
        %s233 = smul.addr %s232, 4
        %s234 = scalar_lea.vmem %s2, %s233
        %s235 = smul.u32 32, %s12
      $region36: #{simple_cnn_forward.5} parent=23 // pred_fallthru
        _
      // Predicated region
      $region37: #{simple_cnn_forward.5} parent=23 // pred_check
        %p236 = pneg %p110
      $region38: #{simple_cnn_forward.5} parent=23 // pred_check_branch
        %238 = sbr.rel (%p236) target = $region40
      $region39: #{simple_cnn_forward.5} parent=23 // pred_region
        %s239 = smul.u32 32, %s12
        %p240 = scmp.lt.s32.totalorder %s239, 63
        %s241 = scalar_select %p240, %s239, 63
        %s242 = smul.addr %s241, 4
        %s243 = scalar_lea.vmem %s3, %s242
        %s244 = smul.u32 32, %s12
      $region40: #{simple_cnn_forward.5} parent=23 // pred_fallthru
        _
    $region24: #{simple_cnn_forward.5} parent=5 // pred_fallthru
      _
    %p245 = scmp.le.s32.totalorder 1, %s12
    %p246 = scmp.lt.s32.totalorder %s12, 3
    %p247 = pnand %p245, %p246
    %p248 = pneg %p247
    // Predicated region
    $region41: #{simple_cnn_forward.5} parent=5 // pred_check
      _
    $region42: #{simple_cnn_forward.5} parent=5 // pred_check_branch
      %250 = sbr.rel (%p247) target = $region44
    $region43: #{simple_cnn_forward.5} parent=5 // pred_region
      %s251 = ssub.s32 %s12, 1
      %s252 = smul.u32 32, %s17
      %p253 = scmp.lt.s32.totalorder %s252, 63
      %s254 = scalar_select %p253, %s252, 63
      %s255 = smul.addr %s254, 4
      %s256 = scalar_lea.vmem %s0, %s255
      %p257 = pneg %p38
      %p258 = pneg %p35
      %s259 = smul.u32 32, %s17
      %p260 = scmp.lt.s32.totalorder %s259, 63
      %s261 = scalar_select %p260, %s259, 63
      %s262 = smul.addr %s261, 4
      %s263 = scalar_lea.vmem %s1, %s262
      %p264 = pneg %p64
      %p265 = pneg %p61
      %s266 = smul.u32 32, %s17
      %p267 = scmp.lt.s32.totalorder %s266, 63
      %s268 = scalar_select %p267, %s266, 63
      %s269 = smul.addr %s268, 4
      %s270 = scalar_lea.vmem %s2, %s269
      %p271 = pneg %p90
      %p272 = pneg %p87
      %s273 = smul.u32 32, %s17
      %p274 = scmp.lt.s32.totalorder %s273, 63
      %s275 = scalar_select %p274, %s273, 63
      %s276 = smul.addr %s275, 4
      %s277 = scalar_lea.vmem %s3, %s276
      %p278 = pneg %p116
      %p279 = pneg %p113
      %p280 = pneg %p137
      %p281 = pneg %p134
      %p282 = pneg %p158
      %p283 = pneg %p155
      %p284 = pneg %p184
      %p285 = pneg %p181
      %s286 = smul.u32 32, %s17
      %p287 = scmp.lt.s32.totalorder %s286, 63
      %s288 = scalar_select %p287, %s286, 63
      %s289 = smul.addr %s288, 8
      %s290 = scalar_lea.vmem %s6, %s289
      %s291 = smul.u32 32, %s17
      %p292 = scmp.lt.s32.totalorder %s291, 63
      %s293 = scalar_select %p292, %s291, 63
      %s294 = smul.addr %s293, 4
      %s295 = scalar_lea.vmem %s0, %s294
      %s296 = smul.u32 32, %s17
      %s297 = smul.u32 32, %s17
      %p298 = scmp.lt.s32.totalorder %s297, 63
      %s299 = scalar_select %p298, %s297, 63
      %s300 = smul.addr %s299, 4
      %s301 = scalar_lea.vmem %s1, %s300
      %s302 = smul.u32 32, %s17
      %s303 = smul.u32 32, %s17
      %p304 = scmp.lt.s32.totalorder %s303, 63
      %s305 = scalar_select %p304, %s303, 63
      %s306 = smul.addr %s305, 4
      %s307 = scalar_lea.vmem %s2, %s306
      %s308 = smul.u32 32, %s17
      %s309 = smul.u32 32, %s17
      %p310 = scmp.lt.s32.totalorder %s309, 63
      %s311 = scalar_select %p310, %s309, 63
      %s312 = smul.addr %s311, 4
      %s313 = scalar_lea.vmem %s3, %s312
      %s314 = smul.u32 32, %s17
      %s315 = smul.u32 32, %s17
      %p316 = scmp.lt.s32.totalorder %s315, 63
      %s317 = scalar_select %p316, %s315, 63
      %s318 = smul.addr %s317, 8
      %s319 = scalar_lea.vmem %s6, %s318
      %s320 = smul.u32 32, %s17
      %v322 = vld [vmem:[%s4] sm:$0xf]
      %v323 = vld [vmem:[%s4 + $0x4] sm:$0xf]
      %v324 = vld [vmem:[%s4 + $0x8] sm:$0xf]
      %v325 = vld [vmem:[%s4 + $0xc] sm:$0xf]
      %v326 = vld [vmem:[%s295] sm:$0xf]
      %v327 = vld [vmem:[%s295 + $0x4] sm:$0xf]
      %v328 = vld [vmem:[%s295 + $0x8] sm:$0xf]
      %v329 = vld [vmem:[%s295 + $0xc] sm:$0xf]
      %v330 = vld [vmem:[%s295 + $0x10] sm:$0xf]
      %v331 = vld [vmem:[%s295 + $0x14] sm:$0xf]
      %v332 = vld [vmem:[%s295 + $0x18] sm:$0xf]
      %v333 = vld [vmem:[%s295 + $0x1c] sm:$0xf]
      %v334 = vld [vmem:[%s295 + $0x20] sm:$0xf]
      %v335 = vld [vmem:[%s295 + $0x24] sm:$0xf]
      %v336 = vld [vmem:[%s295 + $0x28] sm:$0xf]
      %v337 = vld [vmem:[%s295 + $0x2c] sm:$0xf]
      %v338 = vld [vmem:[%s295 + $0x30] sm:$0xf]
      %v339 = vld [vmem:[%s295 + $0x34] sm:$0xf]
      %v340 = vld [vmem:[%s295 + $0x38] sm:$0xf]
      %v341 = vld [vmem:[%s295 + $0x3c] sm:$0xf]
      %v342 = vld [vmem:[%s295 + $0x40] sm:$0xf]
      %v343 = vld [vmem:[%s295 + $0x44] sm:$0xf]
      %v344 = vld [vmem:[%s295 + $0x48] sm:$0xf]
      %v345 = vld [vmem:[%s295 + $0x4c] sm:$0xf]
      %v346 = vld [vmem:[%s295 + $0x50] sm:$0xf]
      %v347 = vld [vmem:[%s295 + $0x54] sm:$0xf]
      %v348 = vld [vmem:[%s295 + $0x58] sm:$0xf]
      %v349 = vld [vmem:[%s295 + $0x5c] sm:$0xf]
      %v350 = vld [vmem:[%s295 + $0x60] sm:$0xf]
      %v351 = vld [vmem:[%s295 + $0x64] sm:$0xf]
      %v352 = vld [vmem:[%s295 + $0x68] sm:$0xf]
      %v353 = vld [vmem:[%s295 + $0x6c] sm:$0xf]
      %v354 = vld [vmem:[%s295 + $0x70] sm:$0xf]
      %v355 = vld [vmem:[%s295 + $0x74] sm:$0xf]
      %v356 = vld [vmem:[%s295 + $0x78] sm:$0xf]
      %v357 = vld [vmem:[%s295 + $0x7c] sm:$0xf]
      %v390 = vunpack.c.l.b16 %v326
      %v391 = vunpack.c.l.b16 %v327
      %v392 = vunpack.c.l.b16 %v328
      %v393 = vunpack.c.l.b16 %v329
      %v394 = vunpack.c.l.b16 %v330
      %v395 = vunpack.c.l.b16 %v331
      %v396 = vunpack.c.l.b16 %v332
      %v397 = vunpack.c.l.b16 %v333
      %v398 = vunpack.c.l.b16 %v334
      %v399 = vunpack.c.l.b16 %v335
      %v400 = vunpack.c.l.b16 %v336
      %v401 = vunpack.c.l.b16 %v337
      %v402 = vunpack.c.l.b16 %v338
      %v403 = vunpack.c.l.b16 %v339
      %v404 = vunpack.c.l.b16 %v340
      %v405 = vunpack.c.l.b16 %v341
      %v406 = vunpack.c.l.b16 %v342
      %v407 = vunpack.c.l.b16 %v343
      %v408 = vunpack.c.l.b16 %v344
      %v409 = vunpack.c.l.b16 %v345
      %v410 = vunpack.c.l.b16 %v346
      %v411 = vunpack.c.l.b16 %v347
      %v412 = vunpack.c.l.b16 %v348
      %v413 = vunpack.c.l.b16 %v349
      %v414 = vunpack.c.l.b16 %v350
      %v415 = vunpack.c.l.b16 %v351
      %v416 = vunpack.c.l.b16 %v352
      %v417 = vunpack.c.l.b16 %v353
      %v418 = vunpack.c.l.b16 %v354
      %v419 = vunpack.c.l.b16 %v355
      %v420 = vunpack.c.l.b16 %v356
      %v421 = vunpack.c.l.b16 %v357
      %v422 = vpack.c.b16 %v391, %v390
      %v423 = vpack.c.b16 %v393, %v392
      %v424 = vpack.c.b16 %v395, %v394
      %v425 = vpack.c.b16 %v397, %v396
      %v426 = vpack.c.b16 %v399, %v398
      %v427 = vpack.c.b16 %v401, %v400
      %v428 = vpack.c.b16 %v403, %v402
      %v429 = vpack.c.b16 %v405, %v404
      %v430 = vpack.c.b16 %v407, %v406
      %v431 = vpack.c.b16 %v409, %v408
      %v432 = vpack.c.b16 %v411, %v410
      %v433 = vpack.c.b16 %v413, %v412
      %v434 = vpack.c.b16 %v415, %v414
      %v435 = vpack.c.b16 %v417, %v416
      %v436 = vpack.c.b16 %v419, %v418
      %v437 = vpack.c.b16 %v421, %v420
      %v442 = vunpack.c.l.b16 %v322
      %v443 = vunpack.c.l.b16 %v323
      %v444 = vunpack.c.l.b16 %v324
      %v445 = vunpack.c.l.b16 %v325
      %v446 = vpack.c.b16 %v443, %v442
      %v447 = vpack.c.b16 %v445, %v444
      %vm450 = vcmask 261120
      %v452 = vsel %vm450, %v422, 0
      %v455 = vsel %vm450, %v423, 0
      %v458 = vsel %vm450, %v424, 0
      %v461 = vsel %vm450, %v425, 0
      %v464 = vsel %vm450, %v426, 0
      %v467 = vsel %vm450, %v427, 0
      %v470 = vsel %vm450, %v428, 0
      %v473 = vsel %vm450, %v429, 0
      %v476 = vsel %vm450, %v430, 0
      %v479 = vsel %vm450, %v431, 0
      %v482 = vsel %vm450, %v432, 0
      %v485 = vsel %vm450, %v433, 0
      %v488 = vsel %vm450, %v434, 0
      %v491 = vsel %vm450, %v435, 0
      %v494 = vsel %vm450, %v436, 0
      %v497 = vsel %vm450, %v437, 0
      %499 = vmatprep.subr.bf16.mxu0 0
      %500 = vmatpush1.bf16.msra.mxu0 0
      %501 = vmatprep.subr.bf16.mxu0 0
      %502 = vmatpush1.bf16.msra.mxu0 0
      %503 = vmatprep.subr.bf16.mxu0 0
      %504 = vmatpush1.bf16.msra.mxu0 0
      %505 = vmatprep.subr.bf16.mxu0 0
      %506 = vmatpush1.bf16.msra.mxu0 0
      %507 = vmatprep.subr.bf16.mxu0 0
      %508 = vmatpush1.bf16.msra.mxu0 0
      %509 = vmatprep.subr.bf16.mxu0 0
      %510 = vmatpush1.bf16.msra.mxu0 0
      %511 = vmatprep.subr.bf16.mxu0 0
      %512 = vmatpush1.bf16.msra.mxu0 %v447
      %513 = vmatprep.subr.bf16.mxu0 0
      %514 = vmatpush1.bf16.msra.mxu0 %v446
      %515 = vmatprep.subr.bf16.mxu0 0
      %516 = vmatpush2.bf16.msra.mxu0 0
      %517 = vmatprep.subr.bf16.mxu0 0
      %518 = vmatpush2.bf16.msra.mxu0 0
      %519 = vmatprep.subr.bf16.mxu0 0
      %520 = vmatpush2.bf16.msra.mxu0 0
      %521 = vmatprep.subr.bf16.mxu0 0
      %522 = vmatpush2.bf16.msra.mxu0 0
      %523 = vmatprep.subr.bf16.mxu0 0
      %524 = vmatpush2.bf16.msra.mxu0 0
      %525 = vmatprep.subr.bf16.mxu0 0
      %526 = vmatpush2.bf16.msra.mxu0 0
      %527 = vmatprep.subr.bf16.mxu0 0
      %528 = vmatpush2.bf16.msra.mxu0 0
      %529 = vmatprep.subr.bf16.mxu0 0
      %530 = vmatpush2.bf16.msra.mxu0 0
      %531 = vmatprep.mubr.bf16.mxu0 0
      %532 = vmatmul.mubr.bf16.gmra.mxu0 %v452
      %v533 = vpop.f32.mrf.mxu0
      %v534 = vadd.f32 0.0, %v533
      %v535 = vpop.f32.mrf.mxu0
      %v536 = vpop.f32.mrf.mxu0
      %v537 = vadd.f32 0.0, %v536
      %v538 = vpop.f32.mrf.mxu0
      %539 = vmatprep.mubr.bf16.mxu0 0
      %540 = vmatmul.mubr.bf16.gmra.mxu0 %v455
      %v541 = vpop.f32.mrf.mxu0
      %v542 = vadd.f32 0.0, %v541
      %v543 = vpop.f32.mrf.mxu0
      %v544 = vpop.f32.mrf.mxu0
      %v545 = vadd.f32 0.0, %v544
      %v546 = vpop.f32.mrf.mxu0
      %547 = vmatprep.mubr.bf16.mxu0 0
      %548 = vmatmul.mubr.bf16.gmra.mxu0 %v458
      %v549 = vpop.f32.mrf.mxu0
      %v550 = vadd.f32 0.0, %v549
      %v551 = vpop.f32.mrf.mxu0
      %v552 = vpop.f32.mrf.mxu0
      %v553 = vadd.f32 0.0, %v552
      %v554 = vpop.f32.mrf.mxu0
      %555 = vmatprep.mubr.bf16.mxu0 0
      %556 = vmatmul.mubr.bf16.gmra.mxu0 %v461
      %v557 = vpop.f32.mrf.mxu0
      %v558 = vadd.f32 0.0, %v557
      %v559 = vpop.f32.mrf.mxu0
      %v560 = vpop.f32.mrf.mxu0
      %v561 = vadd.f32 0.0, %v560
      %v562 = vpop.f32.mrf.mxu0
      %563 = vmatprep.mubr.bf16.mxu0 0
      %564 = vmatmul.mubr.bf16.gmra.mxu0 %v464
      %v565 = vpop.f32.mrf.mxu0
      %v566 = vadd.f32 0.0, %v565
      %v567 = vpop.f32.mrf.mxu0
      %v568 = vpop.f32.mrf.mxu0
      %v569 = vadd.f32 0.0, %v568
      %v570 = vpop.f32.mrf.mxu0
      %571 = vmatprep.mubr.bf16.mxu0 0
      %572 = vmatmul.mubr.bf16.gmra.mxu0 %v467
      %v573 = vpop.f32.mrf.mxu0
      %v574 = vadd.f32 0.0, %v573
      %v575 = vpop.f32.mrf.mxu0
      %v576 = vpop.f32.mrf.mxu0
      %v577 = vadd.f32 0.0, %v576
      %v578 = vpop.f32.mrf.mxu0
      %579 = vmatprep.mubr.bf16.mxu0 0
      %580 = vmatmul.mubr.bf16.gmra.mxu0 %v470
      %v581 = vpop.f32.mrf.mxu0
      %v582 = vadd.f32 0.0, %v581
      %v583 = vpop.f32.mrf.mxu0
      %v584 = vpop.f32.mrf.mxu0
      %v585 = vadd.f32 0.0, %v584
      %v586 = vpop.f32.mrf.mxu0
      %587 = vmatprep.mubr.bf16.mxu0 0
      %588 = vmatmul.mubr.bf16.gmra.mxu0 %v473
      %v589 = vpop.f32.mrf.mxu0
      %v590 = vadd.f32 0.0, %v589
      %v591 = vpop.f32.mrf.mxu0
      %v592 = vpop.f32.mrf.mxu0
      %v593 = vadd.f32 0.0, %v592
      %v594 = vpop.f32.mrf.mxu0
      %595 = vmatprep.mubr.bf16.mxu0 0
      %596 = vmatmul.mubr.bf16.gmra.mxu0 %v476
      %v597 = vpop.f32.mrf.mxu0
      %v598 = vadd.f32 0.0, %v597
      %v599 = vpop.f32.mrf.mxu0
      %v600 = vpop.f32.mrf.mxu0
      %v601 = vadd.f32 0.0, %v600
      %v602 = vpop.f32.mrf.mxu0
      %603 = vmatprep.mubr.bf16.mxu0 0
      %604 = vmatmul.mubr.bf16.gmra.mxu0 %v479
      %v605 = vpop.f32.mrf.mxu0
      %v606 = vadd.f32 0.0, %v605
      %v607 = vpop.f32.mrf.mxu0
      %v608 = vpop.f32.mrf.mxu0
      %v609 = vadd.f32 0.0, %v608
      %v610 = vpop.f32.mrf.mxu0
      %611 = vmatprep.mubr.bf16.mxu0 0
      %612 = vmatmul.mubr.bf16.gmra.mxu0 %v482
      %v613 = vpop.f32.mrf.mxu0
      %v614 = vadd.f32 0.0, %v613
      %v615 = vpop.f32.mrf.mxu0
      %v616 = vpop.f32.mrf.mxu0
      %v617 = vadd.f32 0.0, %v616
      %v618 = vpop.f32.mrf.mxu0
      %619 = vmatprep.mubr.bf16.mxu0 0
      %620 = vmatmul.mubr.bf16.gmra.mxu0 %v485
      %v621 = vpop.f32.mrf.mxu0
      %v622 = vadd.f32 0.0, %v621
      %v623 = vpop.f32.mrf.mxu0
      %v624 = vpop.f32.mrf.mxu0
      %v625 = vadd.f32 0.0, %v624
      %v626 = vpop.f32.mrf.mxu0
      %627 = vmatprep.mubr.bf16.mxu0 0
      %628 = vmatmul.mubr.bf16.gmra.mxu0 %v488
      %v629 = vpop.f32.mrf.mxu0
      %v630 = vadd.f32 0.0, %v629
      %v631 = vpop.f32.mrf.mxu0
      %v632 = vpop.f32.mrf.mxu0
      %v633 = vadd.f32 0.0, %v632
      %v634 = vpop.f32.mrf.mxu0
      %635 = vmatprep.mubr.bf16.mxu0 0
      %636 = vmatmul.mubr.bf16.gmra.mxu0 %v491
      %v637 = vpop.f32.mrf.mxu0
      %v638 = vadd.f32 0.0, %v637
      %v639 = vpop.f32.mrf.mxu0
      %v640 = vpop.f32.mrf.mxu0
      %v641 = vadd.f32 0.0, %v640
      %v642 = vpop.f32.mrf.mxu0
      %643 = vmatprep.mubr.bf16.mxu0 0
      %644 = vmatmul.mubr.bf16.gmra.mxu0 %v494
      %v645 = vpop.f32.mrf.mxu0
      %v646 = vadd.f32 0.0, %v645
      %v647 = vpop.f32.mrf.mxu0
      %v648 = vpop.f32.mrf.mxu0
      %v649 = vadd.f32 0.0, %v648
      %v650 = vpop.f32.mrf.mxu0
      %651 = vmatprep.mubr.bf16.mxu0 0
      %652 = vmatmul.mubr.bf16.gmra.mxu0 %v497
      %v653 = vpop.f32.mrf.mxu0
      %v654 = vadd.f32 0.0, %v653
      %v655 = vpop.f32.mrf.mxu0
      %v656 = vpop.f32.mrf.mxu0
      %v657 = vadd.f32 0.0, %v656
      %v658 = vpop.f32.mrf.mxu0
      %659 = vdwg.mxu0
      %v660 = vld [vmem:[%s301] sm:$0xf]
      %v661 = vld [vmem:[%s301 + $0x4] sm:$0xf]
      %v662 = vld [vmem:[%s301 + $0x8] sm:$0xf]
      %v663 = vld [vmem:[%s301 + $0xc] sm:$0xf]
      %v664 = vld [vmem:[%s301 + $0x10] sm:$0xf]
      %v665 = vld [vmem:[%s301 + $0x14] sm:$0xf]
      %v666 = vld [vmem:[%s301 + $0x18] sm:$0xf]
      %v667 = vld [vmem:[%s301 + $0x1c] sm:$0xf]
      %v668 = vld [vmem:[%s301 + $0x20] sm:$0xf]
      %v669 = vld [vmem:[%s301 + $0x24] sm:$0xf]
      %v670 = vld [vmem:[%s301 + $0x28] sm:$0xf]
      %v671 = vld [vmem:[%s301 + $0x2c] sm:$0xf]
      %v672 = vld [vmem:[%s301 + $0x30] sm:$0xf]
      %v673 = vld [vmem:[%s301 + $0x34] sm:$0xf]
      %v674 = vld [vmem:[%s301 + $0x38] sm:$0xf]
      %v675 = vld [vmem:[%s301 + $0x3c] sm:$0xf]
      %v676 = vld [vmem:[%s301 + $0x40] sm:$0xf]
      %v677 = vld [vmem:[%s301 + $0x44] sm:$0xf]
      %v678 = vld [vmem:[%s301 + $0x48] sm:$0xf]
      %v679 = vld [vmem:[%s301 + $0x4c] sm:$0xf]
      %v680 = vld [vmem:[%s301 + $0x50] sm:$0xf]
      %v681 = vld [vmem:[%s301 + $0x54] sm:$0xf]
      %v682 = vld [vmem:[%s301 + $0x58] sm:$0xf]
      %v683 = vld [vmem:[%s301 + $0x5c] sm:$0xf]
      %v684 = vld [vmem:[%s301 + $0x60] sm:$0xf]
      %v685 = vld [vmem:[%s301 + $0x64] sm:$0xf]
      %v686 = vld [vmem:[%s301 + $0x68] sm:$0xf]
      %v687 = vld [vmem:[%s301 + $0x6c] sm:$0xf]
      %v688 = vld [vmem:[%s301 + $0x70] sm:$0xf]
      %v689 = vld [vmem:[%s301 + $0x74] sm:$0xf]
      %v690 = vld [vmem:[%s301 + $0x78] sm:$0xf]
      %v691 = vld [vmem:[%s301 + $0x7c] sm:$0xf]
      %v724 = vunpack.c.l.b16 %v660
      %v725 = vunpack.c.l.b16 %v661
      %v726 = vunpack.c.l.b16 %v662
      %v727 = vunpack.c.l.b16 %v663
      %v728 = vunpack.c.l.b16 %v664
      %v729 = vunpack.c.l.b16 %v665
      %v730 = vunpack.c.l.b16 %v666
      %v731 = vunpack.c.l.b16 %v667
      %v732 = vunpack.c.l.b16 %v668
      %v733 = vunpack.c.l.b16 %v669
      %v734 = vunpack.c.l.b16 %v670
      %v735 = vunpack.c.l.b16 %v671
      %v736 = vunpack.c.l.b16 %v672
      %v737 = vunpack.c.l.b16 %v673
      %v738 = vunpack.c.l.b16 %v674
      %v739 = vunpack.c.l.b16 %v675
      %v740 = vunpack.c.l.b16 %v676
      %v741 = vunpack.c.l.b16 %v677
      %v742 = vunpack.c.l.b16 %v678
      %v743 = vunpack.c.l.b16 %v679
      %v744 = vunpack.c.l.b16 %v680
      %v745 = vunpack.c.l.b16 %v681
      %v746 = vunpack.c.l.b16 %v682
      %v747 = vunpack.c.l.b16 %v683
      %v748 = vunpack.c.l.b16 %v684
      %v749 = vunpack.c.l.b16 %v685
      %v750 = vunpack.c.l.b16 %v686
      %v751 = vunpack.c.l.b16 %v687
      %v752 = vunpack.c.l.b16 %v688
      %v753 = vunpack.c.l.b16 %v689
      %v754 = vunpack.c.l.b16 %v690
      %v755 = vunpack.c.l.b16 %v691
      %v756 = vpack.c.b16 %v725, %v724
      %v757 = vpack.c.b16 %v727, %v726
      %v758 = vpack.c.b16 %v729, %v728
      %v759 = vpack.c.b16 %v731, %v730
      %v760 = vpack.c.b16 %v733, %v732
      %v761 = vpack.c.b16 %v735, %v734
      %v762 = vpack.c.b16 %v737, %v736
      %v763 = vpack.c.b16 %v739, %v738
      %v764 = vpack.c.b16 %v741, %v740
      %v765 = vpack.c.b16 %v743, %v742
      %v766 = vpack.c.b16 %v745, %v744
      %v767 = vpack.c.b16 %v747, %v746
      %v768 = vpack.c.b16 %v749, %v748
      %v769 = vpack.c.b16 %v751, %v750
      %v770 = vpack.c.b16 %v753, %v752
      %v771 = vpack.c.b16 %v755, %v754
      %v773 = vsel %vm450, %v756, 0
      %v776 = vsel %vm450, %v757, 0
      %v779 = vsel %vm450, %v758, 0
      %v782 = vsel %vm450, %v759, 0
      %v785 = vsel %vm450, %v760, 0
      %v788 = vsel %vm450, %v761, 0
      %v791 = vsel %vm450, %v762, 0
      %v794 = vsel %vm450, %v763, 0
      %v797 = vsel %vm450, %v764, 0
      %v800 = vsel %vm450, %v765, 0
      %v803 = vsel %vm450, %v766, 0
      %v806 = vsel %vm450, %v767, 0
      %v809 = vsel %vm450, %v768, 0
      %v812 = vsel %vm450, %v769, 0
      %v815 = vsel %vm450, %v770, 0
      %v818 = vsel %vm450, %v771, 0
      %820 = vmatprep.subr.bf16.mxu0 0
      %821 = vmatpush1.bf16.msra.mxu0 0
      %822 = vmatprep.subr.bf16.mxu0 0
      %823 = vmatpush1.bf16.msra.mxu0 0
      %824 = vmatprep.subr.bf16.mxu0 0
      %825 = vmatpush1.bf16.msra.mxu0 0
      %826 = vmatprep.subr.bf16.mxu0 0
      %827 = vmatpush1.bf16.msra.mxu0 0
      %828 = vmatprep.subr.bf16.mxu0 0
      %829 = vmatpush1.bf16.msra.mxu0 0
      %830 = vmatprep.subr.bf16.mxu0 0
      %831 = vmatpush1.bf16.msra.mxu0 0
      %832 = vmatprep.subr.bf16.mxu0 0
      %833 = vmatpush1.bf16.msra.mxu0 %v447
      %834 = vmatprep.subr.bf16.mxu0 0
      %835 = vmatpush1.bf16.msra.mxu0 %v446
      %836 = vmatprep.subr.bf16.mxu0 0
      %837 = vmatpush2.bf16.msra.mxu0 0
      %838 = vmatprep.subr.bf16.mxu0 0
      %839 = vmatpush2.bf16.msra.mxu0 0
      %840 = vmatprep.subr.bf16.mxu0 0
      %841 = vmatpush2.bf16.msra.mxu0 0
      %842 = vmatprep.subr.bf16.mxu0 0
      %843 = vmatpush2.bf16.msra.mxu0 0
      %844 = vmatprep.subr.bf16.mxu0 0
      %845 = vmatpush2.bf16.msra.mxu0 0
      %846 = vmatprep.subr.bf16.mxu0 0
      %847 = vmatpush2.bf16.msra.mxu0 0
      %848 = vmatprep.subr.bf16.mxu0 0
      %849 = vmatpush2.bf16.msra.mxu0 0
      %850 = vmatprep.subr.bf16.mxu0 0
      %851 = vmatpush2.bf16.msra.mxu0 0
      %852 = vmatprep.mubr.bf16.mxu0 0
      %853 = vmatmul.mubr.bf16.gmra.mxu0 %v773
      %v854 = vpop.f32.mrf.mxu0
      %v855 = vadd.f32 0.0, %v854
      %v856 = vpop.f32.mrf.mxu0
      %v857 = vpop.f32.mrf.mxu0
      %v858 = vadd.f32 0.0, %v857
      %v859 = vpop.f32.mrf.mxu0
      %860 = vmatprep.mubr.bf16.mxu0 0
      %861 = vmatmul.mubr.bf16.gmra.mxu0 %v776
      %v862 = vpop.f32.mrf.mxu0
      %v863 = vadd.f32 0.0, %v862
      %v864 = vpop.f32.mrf.mxu0
      %v865 = vpop.f32.mrf.mxu0
      %v866 = vadd.f32 0.0, %v865
      %v867 = vpop.f32.mrf.mxu0
      %868 = vmatprep.mubr.bf16.mxu0 0
      %869 = vmatmul.mubr.bf16.gmra.mxu0 %v779
      %v870 = vpop.f32.mrf.mxu0
      %v871 = vadd.f32 0.0, %v870
      %v872 = vpop.f32.mrf.mxu0
      %v873 = vpop.f32.mrf.mxu0
      %v874 = vadd.f32 0.0, %v873
      %v875 = vpop.f32.mrf.mxu0
      %876 = vmatprep.mubr.bf16.mxu0 0
      %877 = vmatmul.mubr.bf16.gmra.mxu0 %v782
      %v878 = vpop.f32.mrf.mxu0
      %v879 = vadd.f32 0.0, %v878
      %v880 = vpop.f32.mrf.mxu0
      %v881 = vpop.f32.mrf.mxu0
      %v882 = vadd.f32 0.0, %v881
      %v883 = vpop.f32.mrf.mxu0
      %884 = vmatprep.mubr.bf16.mxu0 0
      %885 = vmatmul.mubr.bf16.gmra.mxu0 %v785
      %v886 = vpop.f32.mrf.mxu0
      %v887 = vadd.f32 0.0, %v886
      %v888 = vpop.f32.mrf.mxu0
      %v889 = vpop.f32.mrf.mxu0
      %v890 = vadd.f32 0.0, %v889
      %v891 = vpop.f32.mrf.mxu0
      %892 = vmatprep.mubr.bf16.mxu0 0
      %893 = vmatmul.mubr.bf16.gmra.mxu0 %v788
      %v894 = vpop.f32.mrf.mxu0
      %v895 = vadd.f32 0.0, %v894
      %v896 = vpop.f32.mrf.mxu0
      %v897 = vpop.f32.mrf.mxu0
      %v898 = vadd.f32 0.0, %v897
      %v899 = vpop.f32.mrf.mxu0
      %900 = vmatprep.mubr.bf16.mxu0 0
      %901 = vmatmul.mubr.bf16.gmra.mxu0 %v791
      %v902 = vpop.f32.mrf.mxu0
      %v903 = vadd.f32 0.0, %v902
      %v904 = vpop.f32.mrf.mxu0
      %v905 = vpop.f32.mrf.mxu0
      %v906 = vadd.f32 0.0, %v905
      %v907 = vpop.f32.mrf.mxu0
      %908 = vmatprep.mubr.bf16.mxu0 0
      %909 = vmatmul.mubr.bf16.gmra.mxu0 %v794
      %v910 = vpop.f32.mrf.mxu0
      %v911 = vadd.f32 0.0, %v910
      %v912 = vpop.f32.mrf.mxu0
      %v913 = vpop.f32.mrf.mxu0
      %v914 = vadd.f32 0.0, %v913
      %v915 = vpop.f32.mrf.mxu0
      %916 = vmatprep.mubr.bf16.mxu0 0
      %917 = vmatmul.mubr.bf16.gmra.mxu0 %v797
      %v918 = vpop.f32.mrf.mxu0
      %v919 = vadd.f32 0.0, %v918
      %v920 = vpop.f32.mrf.mxu0
      %v921 = vpop.f32.mrf.mxu0
      %v922 = vadd.f32 0.0, %v921
      %v923 = vpop.f32.mrf.mxu0
      %924 = vmatprep.mubr.bf16.mxu0 0
      %925 = vmatmul.mubr.bf16.gmra.mxu0 %v800
      %v926 = vpop.f32.mrf.mxu0
      %v927 = vadd.f32 0.0, %v926
      %v928 = vpop.f32.mrf.mxu0
      %v929 = vpop.f32.mrf.mxu0
      %v930 = vadd.f32 0.0, %v929
      %v931 = vpop.f32.mrf.mxu0
      %932 = vmatprep.mubr.bf16.mxu0 0
      %933 = vmatmul.mubr.bf16.gmra.mxu0 %v803
      %v934 = vpop.f32.mrf.mxu0
      %v935 = vadd.f32 0.0, %v934
      %v936 = vpop.f32.mrf.mxu0
      %v937 = vpop.f32.mrf.mxu0
      %v938 = vadd.f32 0.0, %v937
      %v939 = vpop.f32.mrf.mxu0
      %940 = vmatprep.mubr.bf16.mxu0 0
      %941 = vmatmul.mubr.bf16.gmra.mxu0 %v806
      %v942 = vpop.f32.mrf.mxu0
      %v943 = vadd.f32 0.0, %v942
      %v944 = vpop.f32.mrf.mxu0
      %v945 = vpop.f32.mrf.mxu0
      %v946 = vadd.f32 0.0, %v945
      %v947 = vpop.f32.mrf.mxu0
      %948 = vmatprep.mubr.bf16.mxu0 0
      %949 = vmatmul.mubr.bf16.gmra.mxu0 %v809
      %v950 = vpop.f32.mrf.mxu0
      %v951 = vadd.f32 0.0, %v950
      %v952 = vpop.f32.mrf.mxu0
      %v953 = vpop.f32.mrf.mxu0
      %v954 = vadd.f32 0.0, %v953
      %v955 = vpop.f32.mrf.mxu0
      %956 = vmatprep.mubr.bf16.mxu0 0
      %957 = vmatmul.mubr.bf16.gmra.mxu0 %v812
      %v958 = vpop.f32.mrf.mxu0
      %v959 = vadd.f32 0.0, %v958
      %v960 = vpop.f32.mrf.mxu0
      %v961 = vpop.f32.mrf.mxu0
      %v962 = vadd.f32 0.0, %v961
      %v963 = vpop.f32.mrf.mxu0
      %964 = vmatprep.mubr.bf16.mxu0 0
      %965 = vmatmul.mubr.bf16.gmra.mxu0 %v815
      %v966 = vpop.f32.mrf.mxu0
      %v967 = vadd.f32 0.0, %v966
      %v968 = vpop.f32.mrf.mxu0
      %v969 = vpop.f32.mrf.mxu0
      %v970 = vadd.f32 0.0, %v969
      %v971 = vpop.f32.mrf.mxu0
      %972 = vmatprep.mubr.bf16.mxu0 0
      %973 = vmatmul.mubr.bf16.gmra.mxu0 %v818
      %v974 = vpop.f32.mrf.mxu0
      %v975 = vadd.f32 0.0, %v974
      %v976 = vpop.f32.mrf.mxu0
      %v977 = vpop.f32.mrf.mxu0
      %v978 = vadd.f32 0.0, %v977
      %v979 = vpop.f32.mrf.mxu0
      %980 = vdwg.mxu0
      %v981 = vmax.f32 %v534, %v855
      %v982 = vmax.f32 %v537, %v858
      %v983 = vmax.f32 %v542, %v863
      %v984 = vmax.f32 %v545, %v866
      %v985 = vmax.f32 %v550, %v871
      %v986 = vmax.f32 %v553, %v874
      %v987 = vmax.f32 %v558, %v879
      %v988 = vmax.f32 %v561, %v882
      %v989 = vmax.f32 %v566, %v887
      %v990 = vmax.f32 %v569, %v890
      %v991 = vmax.f32 %v574, %v895
      %v992 = vmax.f32 %v577, %v898
      %v993 = vmax.f32 %v582, %v903
      %v994 = vmax.f32 %v585, %v906
      %v995 = vmax.f32 %v590, %v911
      %v996 = vmax.f32 %v593, %v914
      %v997 = vmax.f32 %v598, %v919
      %v998 = vmax.f32 %v601, %v922
      %v999 = vmax.f32 %v606, %v927
      %v1000 = vmax.f32 %v609, %v930
      %v1001 = vmax.f32 %v614, %v935
      %v1002 = vmax.f32 %v617, %v938
      %v1003 = vmax.f32 %v622, %v943
      %v1004 = vmax.f32 %v625, %v946
      %v1005 = vmax.f32 %v630, %v951
      %v1006 = vmax.f32 %v633, %v954
      %v1007 = vmax.f32 %v638, %v959
      %v1008 = vmax.f32 %v641, %v962
      %v1009 = vmax.f32 %v646, %v967
      %v1010 = vmax.f32 %v649, %v970
      %v1011 = vmax.f32 %v654, %v975
      %v1012 = vmax.f32 %v657, %v978
      %v1013 = vld [vmem:[%s307] sm:$0xf]
      %v1014 = vld [vmem:[%s307 + $0x4] sm:$0xf]
      %v1015 = vld [vmem:[%s307 + $0x8] sm:$0xf]
      %v1016 = vld [vmem:[%s307 + $0xc] sm:$0xf]
      %v1017 = vld [vmem:[%s307 + $0x10] sm:$0xf]
      %v1018 = vld [vmem:[%s307 + $0x14] sm:$0xf]
      %v1019 = vld [vmem:[%s307 + $0x18] sm:$0xf]
      %v1020 = vld [vmem:[%s307 + $0x1c] sm:$0xf]
      %v1021 = vld [vmem:[%s307 + $0x20] sm:$0xf]
      %v1022 = vld [vmem:[%s307 + $0x24] sm:$0xf]
      %v1023 = vld [vmem:[%s307 + $0x28] sm:$0xf]
      %v1024 = vld [vmem:[%s307 + $0x2c] sm:$0xf]
      %v1025 = vld [vmem:[%s307 + $0x30] sm:$0xf]
      %v1026 = vld [vmem:[%s307 + $0x34] sm:$0xf]
      %v1027 = vld [vmem:[%s307 + $0x38] sm:$0xf]
      %v1028 = vld [vmem:[%s307 + $0x3c] sm:$0xf]
      %v1029 = vld [vmem:[%s307 + $0x40] sm:$0xf]
      %v1030 = vld [vmem:[%s307 + $0x44] sm:$0xf]
      %v1031 = vld [vmem:[%s307 + $0x48] sm:$0xf]
      %v1032 = vld [vmem:[%s307 + $0x4c] sm:$0xf]
      %v1033 = vld [vmem:[%s307 + $0x50] sm:$0xf]
      %v1034 = vld [vmem:[%s307 + $0x54] sm:$0xf]
      %v1035 = vld [vmem:[%s307 + $0x58] sm:$0xf]
      %v1036 = vld [vmem:[%s307 + $0x5c] sm:$0xf]
      %v1037 = vld [vmem:[%s307 + $0x60] sm:$0xf]
      %v1038 = vld [vmem:[%s307 + $0x64] sm:$0xf]
      %v1039 = vld [vmem:[%s307 + $0x68] sm:$0xf]
      %v1040 = vld [vmem:[%s307 + $0x6c] sm:$0xf]
      %v1041 = vld [vmem:[%s307 + $0x70] sm:$0xf]
      %v1042 = vld [vmem:[%s307 + $0x74] sm:$0xf]
      %v1043 = vld [vmem:[%s307 + $0x78] sm:$0xf]
      %v1044 = vld [vmem:[%s307 + $0x7c] sm:$0xf]
      %v1077 = vunpack.c.l.b16 %v1013
      %v1078 = vunpack.c.l.b16 %v1014
      %v1079 = vunpack.c.l.b16 %v1015
      %v1080 = vunpack.c.l.b16 %v1016
      %v1081 = vunpack.c.l.b16 %v1017
      %v1082 = vunpack.c.l.b16 %v1018
      %v1083 = vunpack.c.l.b16 %v1019
      %v1084 = vunpack.c.l.b16 %v1020
      %v1085 = vunpack.c.l.b16 %v1021
      %v1086 = vunpack.c.l.b16 %v1022
      %v1087 = vunpack.c.l.b16 %v1023
      %v1088 = vunpack.c.l.b16 %v1024
      %v1089 = vunpack.c.l.b16 %v1025
      %v1090 = vunpack.c.l.b16 %v1026
      %v1091 = vunpack.c.l.b16 %v1027
      %v1092 = vunpack.c.l.b16 %v1028
      %v1093 = vunpack.c.l.b16 %v1029
      %v1094 = vunpack.c.l.b16 %v1030
      %v1095 = vunpack.c.l.b16 %v1031
      %v1096 = vunpack.c.l.b16 %v1032
      %v1097 = vunpack.c.l.b16 %v1033
      %v1098 = vunpack.c.l.b16 %v1034
      %v1099 = vunpack.c.l.b16 %v1035
      %v1100 = vunpack.c.l.b16 %v1036
      %v1101 = vunpack.c.l.b16 %v1037
      %v1102 = vunpack.c.l.b16 %v1038
      %v1103 = vunpack.c.l.b16 %v1039
      %v1104 = vunpack.c.l.b16 %v1040
      %v1105 = vunpack.c.l.b16 %v1041
      %v1106 = vunpack.c.l.b16 %v1042
      %v1107 = vunpack.c.l.b16 %v1043
      %v1108 = vunpack.c.l.b16 %v1044
      %v1109 = vpack.c.b16 %v1078, %v1077
      %v1110 = vpack.c.b16 %v1080, %v1079
      %v1111 = vpack.c.b16 %v1082, %v1081
      %v1112 = vpack.c.b16 %v1084, %v1083
      %v1113 = vpack.c.b16 %v1086, %v1085
      %v1114 = vpack.c.b16 %v1088, %v1087
      %v1115 = vpack.c.b16 %v1090, %v1089
      %v1116 = vpack.c.b16 %v1092, %v1091
      %v1117 = vpack.c.b16 %v1094, %v1093
      %v1118 = vpack.c.b16 %v1096, %v1095
      %v1119 = vpack.c.b16 %v1098, %v1097
      %v1120 = vpack.c.b16 %v1100, %v1099
      %v1121 = vpack.c.b16 %v1102, %v1101
      %v1122 = vpack.c.b16 %v1104, %v1103
      %v1123 = vpack.c.b16 %v1106, %v1105
      %v1124 = vpack.c.b16 %v1108, %v1107
      %v1126 = vsel %vm450, %v1109, 0
      %v1129 = vsel %vm450, %v1110, 0
      %v1132 = vsel %vm450, %v1111, 0
      %v1135 = vsel %vm450, %v1112, 0
      %v1138 = vsel %vm450, %v1113, 0
      %v1141 = vsel %vm450, %v1114, 0
      %v1144 = vsel %vm450, %v1115, 0
      %v1147 = vsel %vm450, %v1116, 0
      %v1150 = vsel %vm450, %v1117, 0
      %v1153 = vsel %vm450, %v1118, 0
      %v1156 = vsel %vm450, %v1119, 0
      %v1159 = vsel %vm450, %v1120, 0
      %v1162 = vsel %vm450, %v1121, 0
      %v1165 = vsel %vm450, %v1122, 0
      %v1168 = vsel %vm450, %v1123, 0
      %v1171 = vsel %vm450, %v1124, 0
      %1173 = vmatprep.subr.bf16.mxu0 0
      %1174 = vmatpush1.bf16.msra.mxu0 0
      %1175 = vmatprep.subr.bf16.mxu0 0
      %1176 = vmatpush1.bf16.msra.mxu0 0
      %1177 = vmatprep.subr.bf16.mxu0 0
      %1178 = vmatpush1.bf16.msra.mxu0 0
      %1179 = vmatprep.subr.bf16.mxu0 0
      %1180 = vmatpush1.bf16.msra.mxu0 0
      %1181 = vmatprep.subr.bf16.mxu0 0
      %1182 = vmatpush1.bf16.msra.mxu0 0
      %1183 = vmatprep.subr.bf16.mxu0 0
      %1184 = vmatpush1.bf16.msra.mxu0 0
      %1185 = vmatprep.subr.bf16.mxu0 0
      %1186 = vmatpush1.bf16.msra.mxu0 %v447
      %1187 = vmatprep.subr.bf16.mxu0 0
      %1188 = vmatpush1.bf16.msra.mxu0 %v446
      %1189 = vmatprep.subr.bf16.mxu0 0
      %1190 = vmatpush2.bf16.msra.mxu0 0
      %1191 = vmatprep.subr.bf16.mxu0 0
      %1192 = vmatpush2.bf16.msra.mxu0 0
      %1193 = vmatprep.subr.bf16.mxu0 0
      %1194 = vmatpush2.bf16.msra.mxu0 0
      %1195 = vmatprep.subr.bf16.mxu0 0
      %1196 = vmatpush2.bf16.msra.mxu0 0
      %1197 = vmatprep.subr.bf16.mxu0 0
      %1198 = vmatpush2.bf16.msra.mxu0 0
      %1199 = vmatprep.subr.bf16.mxu0 0
      %1200 = vmatpush2.bf16.msra.mxu0 0
      %1201 = vmatprep.subr.bf16.mxu0 0
      %1202 = vmatpush2.bf16.msra.mxu0 0
      %1203 = vmatprep.subr.bf16.mxu0 0
      %1204 = vmatpush2.bf16.msra.mxu0 0
      %1205 = vmatprep.mubr.bf16.mxu0 0
      %1206 = vmatmul.mubr.bf16.gmra.mxu0 %v1126
      %v1207 = vpop.f32.mrf.mxu0
      %v1208 = vadd.f32 0.0, %v1207
      %v1209 = vpop.f32.mrf.mxu0
      %v1210 = vpop.f32.mrf.mxu0
      %v1211 = vadd.f32 0.0, %v1210
      %v1212 = vpop.f32.mrf.mxu0
      %1213 = vmatprep.mubr.bf16.mxu0 0
      %1214 = vmatmul.mubr.bf16.gmra.mxu0 %v1129
      %v1215 = vpop.f32.mrf.mxu0
      %v1216 = vadd.f32 0.0, %v1215
      %v1217 = vpop.f32.mrf.mxu0
      %v1218 = vpop.f32.mrf.mxu0
      %v1219 = vadd.f32 0.0, %v1218
      %v1220 = vpop.f32.mrf.mxu0
      %1221 = vmatprep.mubr.bf16.mxu0 0
      %1222 = vmatmul.mubr.bf16.gmra.mxu0 %v1132
      %v1223 = vpop.f32.mrf.mxu0
      %v1224 = vadd.f32 0.0, %v1223
      %v1225 = vpop.f32.mrf.mxu0
      %v1226 = vpop.f32.mrf.mxu0
      %v1227 = vadd.f32 0.0, %v1226
      %v1228 = vpop.f32.mrf.mxu0
      %1229 = vmatprep.mubr.bf16.mxu0 0
      %1230 = vmatmul.mubr.bf16.gmra.mxu0 %v1135
      %v1231 = vpop.f32.mrf.mxu0
      %v1232 = vadd.f32 0.0, %v1231
      %v1233 = vpop.f32.mrf.mxu0
      %v1234 = vpop.f32.mrf.mxu0
      %v1235 = vadd.f32 0.0, %v1234
      %v1236 = vpop.f32.mrf.mxu0
      %1237 = vmatprep.mubr.bf16.mxu0 0
      %1238 = vmatmul.mubr.bf16.gmra.mxu0 %v1138
      %v1239 = vpop.f32.mrf.mxu0
      %v1240 = vadd.f32 0.0, %v1239
      %v1241 = vpop.f32.mrf.mxu0
      %v1242 = vpop.f32.mrf.mxu0
      %v1243 = vadd.f32 0.0, %v1242
      %v1244 = vpop.f32.mrf.mxu0
      %1245 = vmatprep.mubr.bf16.mxu0 0
      %1246 = vmatmul.mubr.bf16.gmra.mxu0 %v1141
      %v1247 = vpop.f32.mrf.mxu0
      %v1248 = vadd.f32 0.0, %v1247
      %v1249 = vpop.f32.mrf.mxu0
      %v1250 = vpop.f32.mrf.mxu0
      %v1251 = vadd.f32 0.0, %v1250
      %v1252 = vpop.f32.mrf.mxu0
      %1253 = vmatprep.mubr.bf16.mxu0 0
      %1254 = vmatmul.mubr.bf16.gmra.mxu0 %v1144
      %v1255 = vpop.f32.mrf.mxu0
      %v1256 = vadd.f32 0.0, %v1255
      %v1257 = vpop.f32.mrf.mxu0
      %v1258 = vpop.f32.mrf.mxu0
      %v1259 = vadd.f32 0.0, %v1258
      %v1260 = vpop.f32.mrf.mxu0
      %1261 = vmatprep.mubr.bf16.mxu0 0
      %1262 = vmatmul.mubr.bf16.gmra.mxu0 %v1147
      %v1263 = vpop.f32.mrf.mxu0
      %v1264 = vadd.f32 0.0, %v1263
      %v1265 = vpop.f32.mrf.mxu0
      %v1266 = vpop.f32.mrf.mxu0
      %v1267 = vadd.f32 0.0, %v1266
      %v1268 = vpop.f32.mrf.mxu0
      %1269 = vmatprep.mubr.bf16.mxu0 0
      %1270 = vmatmul.mubr.bf16.gmra.mxu0 %v1150
      %v1271 = vpop.f32.mrf.mxu0
      %v1272 = vadd.f32 0.0, %v1271
      %v1273 = vpop.f32.mrf.mxu0
      %v1274 = vpop.f32.mrf.mxu0
      %v1275 = vadd.f32 0.0, %v1274
      %v1276 = vpop.f32.mrf.mxu0
      %1277 = vmatprep.mubr.bf16.mxu0 0
      %1278 = vmatmul.mubr.bf16.gmra.mxu0 %v1153
      %v1279 = vpop.f32.mrf.mxu0
      %v1280 = vadd.f32 0.0, %v1279
      %v1281 = vpop.f32.mrf.mxu0
      %v1282 = vpop.f32.mrf.mxu0
      %v1283 = vadd.f32 0.0, %v1282
      %v1284 = vpop.f32.mrf.mxu0
      %1285 = vmatprep.mubr.bf16.mxu0 0
      %1286 = vmatmul.mubr.bf16.gmra.mxu0 %v1156
      %v1287 = vpop.f32.mrf.mxu0
      %v1288 = vadd.f32 0.0, %v1287
      %v1289 = vpop.f32.mrf.mxu0
      %v1290 = vpop.f32.mrf.mxu0
      %v1291 = vadd.f32 0.0, %v1290
      %v1292 = vpop.f32.mrf.mxu0
      %1293 = vmatprep.mubr.bf16.mxu0 0
      %1294 = vmatmul.mubr.bf16.gmra.mxu0 %v1159
      %v1295 = vpop.f32.mrf.mxu0
      %v1296 = vadd.f32 0.0, %v1295
      %v1297 = vpop.f32.mrf.mxu0
      %v1298 = vpop.f32.mrf.mxu0
      %v1299 = vadd.f32 0.0, %v1298
      %v1300 = vpop.f32.mrf.mxu0
      %1301 = vmatprep.mubr.bf16.mxu0 0
      %1302 = vmatmul.mubr.bf16.gmra.mxu0 %v1162
      %v1303 = vpop.f32.mrf.mxu0
      %v1304 = vadd.f32 0.0, %v1303
      %v1305 = vpop.f32.mrf.mxu0
      %v1306 = vpop.f32.mrf.mxu0
      %v1307 = vadd.f32 0.0, %v1306
      %v1308 = vpop.f32.mrf.mxu0
      %1309 = vmatprep.mubr.bf16.mxu0 0
      %1310 = vmatmul.mubr.bf16.gmra.mxu0 %v1165
      %v1311 = vpop.f32.mrf.mxu0
      %v1312 = vadd.f32 0.0, %v1311
      %v1313 = vpop.f32.mrf.mxu0
      %v1314 = vpop.f32.mrf.mxu0
      %v1315 = vadd.f32 0.0, %v1314
      %v1316 = vpop.f32.mrf.mxu0
      %1317 = vmatprep.mubr.bf16.mxu0 0
      %1318 = vmatmul.mubr.bf16.gmra.mxu0 %v1168
      %v1319 = vpop.f32.mrf.mxu0
      %v1320 = vadd.f32 0.0, %v1319
      %v1321 = vpop.f32.mrf.mxu0
      %v1322 = vpop.f32.mrf.mxu0
      %v1323 = vadd.f32 0.0, %v1322
      %v1324 = vpop.f32.mrf.mxu0
      %1325 = vmatprep.mubr.bf16.mxu0 0
      %1326 = vmatmul.mubr.bf16.gmra.mxu0 %v1171
      %v1327 = vpop.f32.mrf.mxu0
      %v1328 = vadd.f32 0.0, %v1327
      %v1329 = vpop.f32.mrf.mxu0
      %v1330 = vpop.f32.mrf.mxu0
      %v1331 = vadd.f32 0.0, %v1330
      %v1332 = vpop.f32.mrf.mxu0
      %1333 = vdwg.mxu0
      %v1334 = vmax.f32 %v981, %v1208
      %v1335 = vmax.f32 %v982, %v1211
      %v1336 = vmax.f32 %v983, %v1216
      %v1337 = vmax.f32 %v984, %v1219
      %v1338 = vmax.f32 %v985, %v1224
      %v1339 = vmax.f32 %v986, %v1227
      %v1340 = vmax.f32 %v987, %v1232
      %v1341 = vmax.f32 %v988, %v1235
      %v1342 = vmax.f32 %v989, %v1240
      %v1343 = vmax.f32 %v990, %v1243
      %v1344 = vmax.f32 %v991, %v1248
      %v1345 = vmax.f32 %v992, %v1251
      %v1346 = vmax.f32 %v993, %v1256
      %v1347 = vmax.f32 %v994, %v1259
      %v1348 = vmax.f32 %v995, %v1264
      %v1349 = vmax.f32 %v996, %v1267
      %v1350 = vmax.f32 %v997, %v1272
      %v1351 = vmax.f32 %v998, %v1275
      %v1352 = vmax.f32 %v999, %v1280
      %v1353 = vmax.f32 %v1000, %v1283
      %v1354 = vmax.f32 %v1001, %v1288
      %v1355 = vmax.f32 %v1002, %v1291
      %v1356 = vmax.f32 %v1003, %v1296
      %v1357 = vmax.f32 %v1004, %v1299
      %v1358 = vmax.f32 %v1005, %v1304
      %v1359 = vmax.f32 %v1006, %v1307
      %v1360 = vmax.f32 %v1007, %v1312
      %v1361 = vmax.f32 %v1008, %v1315
      %v1362 = vmax.f32 %v1009, %v1320
      %v1363 = vmax.f32 %v1010, %v1323
      %v1364 = vmax.f32 %v1011, %v1328
      %v1365 = vmax.f32 %v1012, %v1331
      %v1366 = vld [vmem:[%s313] sm:$0xf]
      %v1367 = vld [vmem:[%s313 + $0x4] sm:$0xf]
      %v1368 = vld [vmem:[%s313 + $0x8] sm:$0xf]
      %v1369 = vld [vmem:[%s313 + $0xc] sm:$0xf]
      %v1370 = vld [vmem:[%s313 + $0x10] sm:$0xf]
      %v1371 = vld [vmem:[%s313 + $0x14] sm:$0xf]
      %v1372 = vld [vmem:[%s313 + $0x18] sm:$0xf]
      %v1373 = vld [vmem:[%s313 + $0x1c] sm:$0xf]
      %v1374 = vld [vmem:[%s313 + $0x20] sm:$0xf]
      %v1375 = vld [vmem:[%s313 + $0x24] sm:$0xf]
      %v1376 = vld [vmem:[%s313 + $0x28] sm:$0xf]
      %v1377 = vld [vmem:[%s313 + $0x2c] sm:$0xf]
      %v1378 = vld [vmem:[%s313 + $0x30] sm:$0xf]
      %v1379 = vld [vmem:[%s313 + $0x34] sm:$0xf]
      %v1380 = vld [vmem:[%s313 + $0x38] sm:$0xf]
      %v1381 = vld [vmem:[%s313 + $0x3c] sm:$0xf]
      %v1382 = vld [vmem:[%s313 + $0x40] sm:$0xf]
      %v1383 = vld [vmem:[%s313 + $0x44] sm:$0xf]
      %v1384 = vld [vmem:[%s313 + $0x48] sm:$0xf]
      %v1385 = vld [vmem:[%s313 + $0x4c] sm:$0xf]
      %v1386 = vld [vmem:[%s313 + $0x50] sm:$0xf]
      %v1387 = vld [vmem:[%s313 + $0x54] sm:$0xf]
      %v1388 = vld [vmem:[%s313 + $0x58] sm:$0xf]
      %v1389 = vld [vmem:[%s313 + $0x5c] sm:$0xf]
      %v1390 = vld [vmem:[%s313 + $0x60] sm:$0xf]
      %v1391 = vld [vmem:[%s313 + $0x64] sm:$0xf]
      %v1392 = vld [vmem:[%s313 + $0x68] sm:$0xf]
      %v1393 = vld [vmem:[%s313 + $0x6c] sm:$0xf]
      %v1394 = vld [vmem:[%s313 + $0x70] sm:$0xf]
      %v1395 = vld [vmem:[%s313 + $0x74] sm:$0xf]
      %v1396 = vld [vmem:[%s313 + $0x78] sm:$0xf]
      %v1397 = vld [vmem:[%s313 + $0x7c] sm:$0xf]
      %v1430 = vunpack.c.l.b16 %v1366
      %v1431 = vunpack.c.l.b16 %v1367
      %v1432 = vunpack.c.l.b16 %v1368
      %v1433 = vunpack.c.l.b16 %v1369
      %v1434 = vunpack.c.l.b16 %v1370
      %v1435 = vunpack.c.l.b16 %v1371
      %v1436 = vunpack.c.l.b16 %v1372
      %v1437 = vunpack.c.l.b16 %v1373
      %v1438 = vunpack.c.l.b16 %v1374
      %v1439 = vunpack.c.l.b16 %v1375
      %v1440 = vunpack.c.l.b16 %v1376
      %v1441 = vunpack.c.l.b16 %v1377
      %v1442 = vunpack.c.l.b16 %v1378
      %v1443 = vunpack.c.l.b16 %v1379
      %v1444 = vunpack.c.l.b16 %v1380
      %v1445 = vunpack.c.l.b16 %v1381
      %v1446 = vunpack.c.l.b16 %v1382
      %v1447 = vunpack.c.l.b16 %v1383
      %v1448 = vunpack.c.l.b16 %v1384
      %v1449 = vunpack.c.l.b16 %v1385
      %v1450 = vunpack.c.l.b16 %v1386
      %v1451 = vunpack.c.l.b16 %v1387
      %v1452 = vunpack.c.l.b16 %v1388
      %v1453 = vunpack.c.l.b16 %v1389
      %v1454 = vunpack.c.l.b16 %v1390
      %v1455 = vunpack.c.l.b16 %v1391
      %v1456 = vunpack.c.l.b16 %v1392
      %v1457 = vunpack.c.l.b16 %v1393
      %v1458 = vunpack.c.l.b16 %v1394
      %v1459 = vunpack.c.l.b16 %v1395
      %v1460 = vunpack.c.l.b16 %v1396
      %v1461 = vunpack.c.l.b16 %v1397
      %v1462 = vpack.c.b16 %v1431, %v1430
      %v1463 = vpack.c.b16 %v1433, %v1432
      %v1464 = vpack.c.b16 %v1435, %v1434
      %v1465 = vpack.c.b16 %v1437, %v1436
      %v1466 = vpack.c.b16 %v1439, %v1438
      %v1467 = vpack.c.b16 %v1441, %v1440
      %v1468 = vpack.c.b16 %v1443, %v1442
      %v1469 = vpack.c.b16 %v1445, %v1444
      %v1470 = vpack.c.b16 %v1447, %v1446
      %v1471 = vpack.c.b16 %v1449, %v1448
      %v1472 = vpack.c.b16 %v1451, %v1450
      %v1473 = vpack.c.b16 %v1453, %v1452
      %v1474 = vpack.c.b16 %v1455, %v1454
      %v1475 = vpack.c.b16 %v1457, %v1456
      %v1476 = vpack.c.b16 %v1459, %v1458
      %v1477 = vpack.c.b16 %v1461, %v1460
      %v1479 = vsel %vm450, %v1462, 0
      %v1482 = vsel %vm450, %v1463, 0
      %v1485 = vsel %vm450, %v1464, 0
      %v1488 = vsel %vm450, %v1465, 0
      %v1491 = vsel %vm450, %v1466, 0
      %v1494 = vsel %vm450, %v1467, 0
      %v1497 = vsel %vm450, %v1468, 0
      %v1500 = vsel %vm450, %v1469, 0
      %v1503 = vsel %vm450, %v1470, 0
      %v1506 = vsel %vm450, %v1471, 0
      %v1509 = vsel %vm450, %v1472, 0
      %v1512 = vsel %vm450, %v1473, 0
      %v1515 = vsel %vm450, %v1474, 0
      %v1518 = vsel %vm450, %v1475, 0
      %v1521 = vsel %vm450, %v1476, 0
      %v1524 = vsel %vm450, %v1477, 0
      %1526 = vmatprep.subr.bf16.mxu0 0
      %1527 = vmatpush1.bf16.msra.mxu0 0
      %1528 = vmatprep.subr.bf16.mxu0 0
      %1529 = vmatpush1.bf16.msra.mxu0 0
      %1530 = vmatprep.subr.bf16.mxu0 0
      %1531 = vmatpush1.bf16.msra.mxu0 0
      %1532 = vmatprep.subr.bf16.mxu0 0
      %1533 = vmatpush1.bf16.msra.mxu0 0
      %1534 = vmatprep.subr.bf16.mxu0 0
      %1535 = vmatpush1.bf16.msra.mxu0 0
      %1536 = vmatprep.subr.bf16.mxu0 0
      %1537 = vmatpush1.bf16.msra.mxu0 0
      %1538 = vmatprep.subr.bf16.mxu0 0
      %1539 = vmatpush1.bf16.msra.mxu0 %v447
      %1540 = vmatprep.subr.bf16.mxu0 0
      %1541 = vmatpush1.bf16.msra.mxu0 %v446
      %1542 = vmatprep.subr.bf16.mxu0 0
      %1543 = vmatpush2.bf16.msra.mxu0 0
      %1544 = vmatprep.subr.bf16.mxu0 0
      %1545 = vmatpush2.bf16.msra.mxu0 0
      %1546 = vmatprep.subr.bf16.mxu0 0
      %1547 = vmatpush2.bf16.msra.mxu0 0
      %1548 = vmatprep.subr.bf16.mxu0 0
      %1549 = vmatpush2.bf16.msra.mxu0 0
      %1550 = vmatprep.subr.bf16.mxu0 0
      %1551 = vmatpush2.bf16.msra.mxu0 0
      %1552 = vmatprep.subr.bf16.mxu0 0
      %1553 = vmatpush2.bf16.msra.mxu0 0
      %1554 = vmatprep.subr.bf16.mxu0 0
      %1555 = vmatpush2.bf16.msra.mxu0 0
      %1556 = vmatprep.subr.bf16.mxu0 0
      %1557 = vmatpush2.bf16.msra.mxu0 0
      %1558 = vmatprep.mubr.bf16.mxu0 0
      %1559 = vmatmul.mubr.bf16.gmra.mxu0 %v1479
      %v1560 = vpop.f32.mrf.mxu0
      %v1561 = vadd.f32 0.0, %v1560
      %v1562 = vpop.f32.mrf.mxu0
      %v1563 = vpop.f32.mrf.mxu0
      %v1564 = vadd.f32 0.0, %v1563
      %v1565 = vpop.f32.mrf.mxu0
      %1566 = vmatprep.mubr.bf16.mxu0 0
      %1567 = vmatmul.mubr.bf16.gmra.mxu0 %v1482
      %v1568 = vpop.f32.mrf.mxu0
      %v1569 = vadd.f32 0.0, %v1568
      %v1570 = vpop.f32.mrf.mxu0
      %v1571 = vpop.f32.mrf.mxu0
      %v1572 = vadd.f32 0.0, %v1571
      %v1573 = vpop.f32.mrf.mxu0
      %1574 = vmatprep.mubr.bf16.mxu0 0
      %1575 = vmatmul.mubr.bf16.gmra.mxu0 %v1485
      %v1576 = vpop.f32.mrf.mxu0
      %v1577 = vadd.f32 0.0, %v1576
      %v1578 = vpop.f32.mrf.mxu0
      %v1579 = vpop.f32.mrf.mxu0
      %v1580 = vadd.f32 0.0, %v1579
      %v1581 = vpop.f32.mrf.mxu0
      %1582 = vmatprep.mubr.bf16.mxu0 0
      %1583 = vmatmul.mubr.bf16.gmra.mxu0 %v1488
      %v1584 = vpop.f32.mrf.mxu0
      %v1585 = vadd.f32 0.0, %v1584
      %v1586 = vpop.f32.mrf.mxu0
      %v1587 = vpop.f32.mrf.mxu0
      %v1588 = vadd.f32 0.0, %v1587
      %v1589 = vpop.f32.mrf.mxu0
      %1590 = vmatprep.mubr.bf16.mxu0 0
      %1591 = vmatmul.mubr.bf16.gmra.mxu0 %v1491
      %v1592 = vpop.f32.mrf.mxu0
      %v1593 = vadd.f32 0.0, %v1592
      %v1594 = vpop.f32.mrf.mxu0
      %v1595 = vpop.f32.mrf.mxu0
      %v1596 = vadd.f32 0.0, %v1595
      %v1597 = vpop.f32.mrf.mxu0
      %1598 = vmatprep.mubr.bf16.mxu0 0
      %1599 = vmatmul.mubr.bf16.gmra.mxu0 %v1494
      %v1600 = vpop.f32.mrf.mxu0
      %v1601 = vadd.f32 0.0, %v1600
      %v1602 = vpop.f32.mrf.mxu0
      %v1603 = vpop.f32.mrf.mxu0
      %v1604 = vadd.f32 0.0, %v1603
      %v1605 = vpop.f32.mrf.mxu0
      %1606 = vmatprep.mubr.bf16.mxu0 0
      %1607 = vmatmul.mubr.bf16.gmra.mxu0 %v1497
      %v1608 = vpop.f32.mrf.mxu0
      %v1609 = vadd.f32 0.0, %v1608
      %v1610 = vpop.f32.mrf.mxu0
      %v1611 = vpop.f32.mrf.mxu0
      %v1612 = vadd.f32 0.0, %v1611
      %v1613 = vpop.f32.mrf.mxu0
      %1614 = vmatprep.mubr.bf16.mxu0 0
      %1615 = vmatmul.mubr.bf16.gmra.mxu0 %v1500
      %v1616 = vpop.f32.mrf.mxu0
      %v1617 = vadd.f32 0.0, %v1616
      %v1618 = vpop.f32.mrf.mxu0
      %v1619 = vpop.f32.mrf.mxu0
      %v1620 = vadd.f32 0.0, %v1619
      %v1621 = vpop.f32.mrf.mxu0
      %1622 = vmatprep.mubr.bf16.mxu0 0
      %1623 = vmatmul.mubr.bf16.gmra.mxu0 %v1503
      %v1624 = vpop.f32.mrf.mxu0
      %v1625 = vadd.f32 0.0, %v1624
      %v1626 = vpop.f32.mrf.mxu0
      %v1627 = vpop.f32.mrf.mxu0
      %v1628 = vadd.f32 0.0, %v1627
      %v1629 = vpop.f32.mrf.mxu0
      %1630 = vmatprep.mubr.bf16.mxu0 0
      %1631 = vmatmul.mubr.bf16.gmra.mxu0 %v1506
      %v1632 = vpop.f32.mrf.mxu0
      %v1633 = vadd.f32 0.0, %v1632
      %v1634 = vpop.f32.mrf.mxu0
      %v1635 = vpop.f32.mrf.mxu0
      %v1636 = vadd.f32 0.0, %v1635
      %v1637 = vpop.f32.mrf.mxu0
      %1638 = vmatprep.mubr.bf16.mxu0 0
      %1639 = vmatmul.mubr.bf16.gmra.mxu0 %v1509
      %v1640 = vpop.f32.mrf.mxu0
      %v1641 = vadd.f32 0.0, %v1640
      %v1642 = vpop.f32.mrf.mxu0
      %v1643 = vpop.f32.mrf.mxu0
      %v1644 = vadd.f32 0.0, %v1643
      %v1645 = vpop.f32.mrf.mxu0
      %1646 = vmatprep.mubr.bf16.mxu0 0
      %1647 = vmatmul.mubr.bf16.gmra.mxu0 %v1512
      %v1648 = vpop.f32.mrf.mxu0
      %v1649 = vadd.f32 0.0, %v1648
      %v1650 = vpop.f32.mrf.mxu0
      %v1651 = vpop.f32.mrf.mxu0
      %v1652 = vadd.f32 0.0, %v1651
      %v1653 = vpop.f32.mrf.mxu0
      %1654 = vmatprep.mubr.bf16.mxu0 0
      %1655 = vmatmul.mubr.bf16.gmra.mxu0 %v1515
      %v1656 = vpop.f32.mrf.mxu0
      %v1657 = vadd.f32 0.0, %v1656
      %v1658 = vpop.f32.mrf.mxu0
      %v1659 = vpop.f32.mrf.mxu0
      %v1660 = vadd.f32 0.0, %v1659
      %v1661 = vpop.f32.mrf.mxu0
      %1662 = vmatprep.mubr.bf16.mxu0 0
      %1663 = vmatmul.mubr.bf16.gmra.mxu0 %v1518
      %v1664 = vpop.f32.mrf.mxu0
      %v1665 = vadd.f32 0.0, %v1664
      %v1666 = vpop.f32.mrf.mxu0
      %v1667 = vpop.f32.mrf.mxu0
      %v1668 = vadd.f32 0.0, %v1667
      %v1669 = vpop.f32.mrf.mxu0
      %1670 = vmatprep.mubr.bf16.mxu0 0
      %1671 = vmatmul.mubr.bf16.gmra.mxu0 %v1521
      %v1672 = vpop.f32.mrf.mxu0
      %v1673 = vadd.f32 0.0, %v1672
      %v1674 = vpop.f32.mrf.mxu0
      %v1675 = vpop.f32.mrf.mxu0
      %v1676 = vadd.f32 0.0, %v1675
      %v1677 = vpop.f32.mrf.mxu0
      %1678 = vmatprep.mubr.bf16.mxu0 0
      %1679 = vmatmul.mubr.bf16.gmra.mxu0 %v1524
      %v1680 = vpop.f32.mrf.mxu0
      %v1681 = vadd.f32 0.0, %v1680
      %v1682 = vpop.f32.mrf.mxu0
      %v1683 = vpop.f32.mrf.mxu0
      %v1684 = vadd.f32 0.0, %v1683
      %v1685 = vpop.f32.mrf.mxu0
      %1686 = vdwg.mxu0
      %v1687 = vmax.f32 %v1334, %v1561
      %v1688 = vmax.f32 %v1335, %v1564
      %v1689 = vmax.f32 %v1336, %v1569
      %v1690 = vmax.f32 %v1337, %v1572
      %v1691 = vmax.f32 %v1338, %v1577
      %v1692 = vmax.f32 %v1339, %v1580
      %v1693 = vmax.f32 %v1340, %v1585
      %v1694 = vmax.f32 %v1341, %v1588
      %v1695 = vmax.f32 %v1342, %v1593
      %v1696 = vmax.f32 %v1343, %v1596
      %v1697 = vmax.f32 %v1344, %v1601
      %v1698 = vmax.f32 %v1345, %v1604
      %v1699 = vmax.f32 %v1346, %v1609
      %v1700 = vmax.f32 %v1347, %v1612
      %v1701 = vmax.f32 %v1348, %v1617
      %v1702 = vmax.f32 %v1349, %v1620
      %v1703 = vmax.f32 %v1350, %v1625
      %v1704 = vmax.f32 %v1351, %v1628
      %v1705 = vmax.f32 %v1352, %v1633
      %v1706 = vmax.f32 %v1353, %v1636
      %v1707 = vmax.f32 %v1354, %v1641
      %v1708 = vmax.f32 %v1355, %v1644
      %v1709 = vmax.f32 %v1356, %v1649
      %v1710 = vmax.f32 %v1357, %v1652
      %v1711 = vmax.f32 %v1358, %v1657
      %v1712 = vmax.f32 %v1359, %v1660
      %v1713 = vmax.f32 %v1360, %v1665
      %v1714 = vmax.f32 %v1361, %v1668
      %v1715 = vmax.f32 %v1362, %v1673
      %v1716 = vmax.f32 %v1363, %v1676
      %v1717 = vmax.f32 %v1364, %v1681
      %v1718 = vmax.f32 %v1365, %v1684
      %v1719 = vld [vmem:[%s5] sm:$0x1]
      %v1721 = vlaneseq
      %v1722 = vshrl.u32 %v1721, 7
      %v1723 = vsub.s32 0, %v1722
      %v1724 = vrot.slane %v1719, %v1723
      %v1726 = vadd.f32 %v1687, %v1724
      %v1727 = vadd.f32 %v1688, %v1724
      %v1728 = vadd.f32 %v1689, %v1724
      %v1729 = vadd.f32 %v1690, %v1724
      %v1730 = vadd.f32 %v1691, %v1724
      %v1731 = vadd.f32 %v1692, %v1724
      %v1732 = vadd.f32 %v1693, %v1724
      %v1733 = vadd.f32 %v1694, %v1724
      %v1734 = vadd.f32 %v1695, %v1724
      %v1735 = vadd.f32 %v1696, %v1724
      %v1736 = vadd.f32 %v1697, %v1724
      %v1737 = vadd.f32 %v1698, %v1724
      %v1738 = vadd.f32 %v1699, %v1724
      %v1739 = vadd.f32 %v1700, %v1724
      %v1740 = vadd.f32 %v1701, %v1724
      %v1741 = vadd.f32 %v1702, %v1724
      %v1742 = vadd.f32 %v1703, %v1724
      %v1743 = vadd.f32 %v1704, %v1724
      %v1744 = vadd.f32 %v1705, %v1724
      %v1745 = vadd.f32 %v1706, %v1724
      %v1746 = vadd.f32 %v1707, %v1724
      %v1747 = vadd.f32 %v1708, %v1724
      %v1748 = vadd.f32 %v1709, %v1724
      %v1749 = vadd.f32 %v1710, %v1724
      %v1750 = vadd.f32 %v1711, %v1724
      %v1751 = vadd.f32 %v1712, %v1724
      %v1752 = vadd.f32 %v1713, %v1724
      %v1753 = vadd.f32 %v1714, %v1724
      %v1754 = vadd.f32 %v1715, %v1724
      %v1755 = vadd.f32 %v1716, %v1724
      %v1756 = vadd.f32 %v1717, %v1724
      %v1757 = vadd.f32 %v1718, %v1724
      %v1758 = vmax.f32 %v1726, 0.0
      %v1759 = vmax.f32 %v1727, 0.0
      %v1760 = vmax.f32 %v1728, 0.0
      %v1761 = vmax.f32 %v1729, 0.0
      %v1762 = vmax.f32 %v1730, 0.0
      %v1763 = vmax.f32 %v1731, 0.0
      %v1764 = vmax.f32 %v1732, 0.0
      %v1765 = vmax.f32 %v1733, 0.0
      %v1766 = vmax.f32 %v1734, 0.0
      %v1767 = vmax.f32 %v1735, 0.0
      %v1768 = vmax.f32 %v1736, 0.0
      %v1769 = vmax.f32 %v1737, 0.0
      %v1770 = vmax.f32 %v1738, 0.0
      %v1771 = vmax.f32 %v1739, 0.0
      %v1772 = vmax.f32 %v1740, 0.0
      %v1773 = vmax.f32 %v1741, 0.0
      %v1774 = vmax.f32 %v1742, 0.0
      %v1775 = vmax.f32 %v1743, 0.0
      %v1776 = vmax.f32 %v1744, 0.0
      %v1777 = vmax.f32 %v1745, 0.0
      %v1778 = vmax.f32 %v1746, 0.0
      %v1779 = vmax.f32 %v1747, 0.0
      %v1780 = vmax.f32 %v1748, 0.0
      %v1781 = vmax.f32 %v1749, 0.0
      %v1782 = vmax.f32 %v1750, 0.0
      %v1783 = vmax.f32 %v1751, 0.0
      %v1784 = vmax.f32 %v1752, 0.0
      %v1785 = vmax.f32 %v1753, 0.0
      %v1786 = vmax.f32 %v1754, 0.0
      %v1787 = vmax.f32 %v1755, 0.0
      %v1788 = vmax.f32 %v1756, 0.0
      %v1789 = vmax.f32 %v1757, 0.0
      %1790 = vst.msk [vmem:[%s319] sm:$0xff] %vm450, %v1758
      %1791 = vst.msk [vmem:[%s319 + $0x8] sm:$0xff] %vm450, %v1759
      %1792 = vst.msk [vmem:[%s319 + $0x10] sm:$0xff] %vm450, %v1760
      %1793 = vst.msk [vmem:[%s319 + $0x18] sm:$0xff] %vm450, %v1761
      %1794 = vst.msk [vmem:[%s319 + $0x20] sm:$0xff] %vm450, %v1762
      %1795 = vst.msk [vmem:[%s319 + $0x28] sm:$0xff] %vm450, %v1763
      %1796 = vst.msk [vmem:[%s319 + $0x30] sm:$0xff] %vm450, %v1764
      %1797 = vst.msk [vmem:[%s319 + $0x38] sm:$0xff] %vm450, %v1765
      %1798 = vst.msk [vmem:[%s319 + $0x40] sm:$0xff] %vm450, %v1766
      %1799 = vst.msk [vmem:[%s319 + $0x48] sm:$0xff] %vm450, %v1767
      %1800 = vst.msk [vmem:[%s319 + $0x50] sm:$0xff] %vm450, %v1768
      %1801 = vst.msk [vmem:[%s319 + $0x58] sm:$0xff] %vm450, %v1769
      %1802 = vst.msk [vmem:[%s319 + $0x60] sm:$0xff] %vm450, %v1770
      %1803 = vst.msk [vmem:[%s319 + $0x68] sm:$0xff] %vm450, %v1771
      %1804 = vst.msk [vmem:[%s319 + $0x70] sm:$0xff] %vm450, %v1772
      %1805 = vst.msk [vmem:[%s319 + $0x78] sm:$0xff] %vm450, %v1773
      %1806 = vst.msk [vmem:[%s319 + $0x80] sm:$0xff] %vm450, %v1774
      %1807 = vst.msk [vmem:[%s319 + $0x88] sm:$0xff] %vm450, %v1775
      %1808 = vst.msk [vmem:[%s319 + $0x90] sm:$0xff] %vm450, %v1776
      %1809 = vst.msk [vmem:[%s319 + $0x98] sm:$0xff] %vm450, %v1777
      %1810 = vst.msk [vmem:[%s319 + $0xa0] sm:$0xff] %vm450, %v1778
      %1811 = vst.msk [vmem:[%s319 + $0xa8] sm:$0xff] %vm450, %v1779
      %1812 = vst.msk [vmem:[%s319 + $0xb0] sm:$0xff] %vm450, %v1780
      %1813 = vst.msk [vmem:[%s319 + $0xb8] sm:$0xff] %vm450, %v1781
      %1814 = vst.msk [vmem:[%s319 + $0xc0] sm:$0xff] %vm450, %v1782
      %1815 = vst.msk [vmem:[%s319 + $0xc8] sm:$0xff] %vm450, %v1783
      %1816 = vst.msk [vmem:[%s319 + $0xd0] sm:$0xff] %vm450, %v1784
      %1817 = vst.msk [vmem:[%s319 + $0xd8] sm:$0xff] %vm450, %v1785
      %1818 = vst.msk [vmem:[%s319 + $0xe0] sm:$0xff] %vm450, %v1786
      %1819 = vst.msk [vmem:[%s319 + $0xe8] sm:$0xff] %vm450, %v1787
      %1820 = vst.msk [vmem:[%s319 + $0xf0] sm:$0xff] %vm450, %v1788
      %1821 = vst.msk [vmem:[%s319 + $0xf8] sm:$0xff] %vm450, %v1789
      %s1822 = smul.u32 32, %s17
      %p1823 = scmp.lt.s32.totalorder %s1822, 63
      %s1824 = scalar_select %p1823, %s1822, 63
      %s1825 = smul.addr %s1824, 8
      %s1826 = scalar_lea.vmem %s6, %s1825
      // Predicated region
      $region45: #{simple_cnn_forward.5} parent=43 // pred_check
        %p1827 = pneg %p181
      $region46: #{simple_cnn_forward.5} parent=43 // pred_check_branch
        %1829 = sbr.rel (%p1827) target = $region48
      $region47: #{simple_cnn_forward.5} parent=43 // pred_region
        %s1830 = smul.u32 32, %s17
      $region48: #{simple_cnn_forward.5} parent=43 // pred_fallthru
        _
    $region44: #{simple_cnn_forward.5} parent=5 // pred_fallthru
      _
    %p1831 = scmp.le.s32.totalorder 2, %s12
    // Predicated region
    $region49: #{simple_cnn_forward.5} parent=5 // pred_check
      %p1832 = pneg %p1831
    $region50: #{simple_cnn_forward.5} parent=5 // pred_check_branch
      %1834 = sbr.rel (%p1832) target = $region52
    $region51: #{simple_cnn_forward.5} parent=5 // pred_region
      %s1835 = ssub.s32 %s12, 2
      // Predicated region
      $region53: #{simple_cnn_forward.5} parent=51 // pred_check
        %p1836 = pneg %p187
      $region54: #{simple_cnn_forward.5} parent=51 // pred_check_branch
        %1838 = sbr.rel (%p1836) target = $region56
      $region55: #{simple_cnn_forward.5} parent=51 // pred_region
        %s1839 = smul.u32 32, %s18
        %p1840 = scmp.lt.s32.totalorder %s1839, 63
        %s1841 = scalar_select %p1840, %s1839, 63
        %s1842 = smul.addr %s1841, 8
        %s1843 = scalar_lea.vmem %s6, %s1842
      $region56: #{simple_cnn_forward.5} parent=51 // pred_fallthru
        _
    $region52: #{simple_cnn_forward.5} parent=5 // pred_fallthru
      _
  $region6: #{simple_cnn_forward.5} parent=0 // loop_footer
    %s16 = sadd.s32 1, %s12
  $region7: #{simple_cnn_forward.5} parent=0 // loop_footer_branch
    %11 = sbr.rel target = $region3
  $region8: #{simple_cnn_forward.5} parent=0 // loop_exit
    _

// kernel: simple_cnn_forward.6
$region0: #{simple_cnn_forward.6}
  #allocation0 [shape = 'u32[]', space=smem, size = 0x4, offset = 0x4, fixed_abs, tag = 'smem constant byte address 0x4 - core index']
  #allocation1 [shape = 'u32[144,128]{1,0:T(1,128)}', space=vmem, size = 0x12000, scoped, tag = 'internal scratch']
  %s0 = inlined_call_operand.vmem [shape: bf16[128,288], index: 0, kind: input, shape index: {}]
  %s1 = inlined_call_operand.vmem [shape: bf16[128,288], index: 1, kind: input, shape index: {}]
  %s2 = inlined_call_operand.vmem [shape: bf16[128,288], index: 2, kind: input, shape index: {}]
  %s3 = inlined_call_operand.vmem [shape: bf16[128,288], index: 3, kind: input, shape index: {}]
  %s4 = inlined_call_operand.vmem [shape: bf16[288,64], index: 4, kind: input, shape index: {}]
  %s5 = inlined_call_operand.vmem [shape: f32[1,64], index: 5, kind: input, shape index: {}]
  %s6 = inlined_call_operand.vmem [shape: f32[128,64], index: 6, kind: output, shape index: {}]
  %s7 = sld [smem:[#allocation0]]
  $region57: #{simple_cnn_forward.6} parent=0
    _
  %s9 = ssub.s32 1, %s7
  %s10 = scalar_select 0, %s9, %s7
  loop: start=0, step=1, limit=4
  $region2: #{simple_cnn_forward.6} parent=0 // loop_pre_header
    _
  $region3: #{simple_cnn_forward.6} parent=0 // loop_header
    %s12 = sphi 0, %s16
    %p13 = scmp.ge.s32.totalorder %s12, 4
    %s22 = sphi 0, %s24
    %s25 = sphi 0, %s22
    %s26 = sphi 0, %s25
    %s42 = sphi 0, %s26
    %s48 = sphi 0, %s50
    %s51 = sphi 0, %s48
    %s52 = sphi 0, %s51
    %s68 = sphi 0, %s52
    %s74 = sphi 0, %s76
    %s77 = sphi 0, %s74
    %s78 = sphi 0, %s77
    %s94 = sphi 0, %s78
    %s100 = sphi 0, %s102
    %s103 = sphi 0, %s100
    %s104 = sphi 0, %s103
    %s120 = sphi 0, %s104
    %s124 = sphi 0, %s124
    %s126 = sphi 0, %s124
    %s127 = sphi 0, %s126
    %s141 = sphi 0, %s127
    %s145 = sphi 0, %s145
    %s147 = sphi 0, %s145
    %s148 = sphi 0, %s147
    %s162 = sphi 0, %s148
    %s168 = sphi 0, %s170
    %s171 = sphi 0, %s168
    %s172 = sphi 0, %s171
    %s188 = sphi 0, %s172
  $region4: #{simple_cnn_forward.6} parent=0 // loop_header_branch
    %15 = sbr.rel (%p13) target = $region8
  $region5: #{simple_cnn_forward.6} parent=0 // loop_body
    %s17 = ssub.s32 %s12, 1
    %s18 = ssub.s32 %s12, 2
    %s19 = sadd.s32 %s12, 1
    %s20 = ssub.s32 %s12, %s19
    %p21 = scmp.eq.s32.totalorder %s20, 0
    %s23 = sadd.s32 %s22, 1
    %s24 = scalar_select %p21, %s22, %s23
    %p27 = pneg %p21
    %p28 = scmp.eq.s32.totalorder %s12, 1
    %p29 = por %p27, %p28
    %p30 = scmp.ne.s32.totalorder %s22, %s25
    %p31 = scmp.eq.s32.totalorder %s12, 0
    %p32 = por %p30, %p31
    %p33 = scmp.ne.s32.totalorder %s22, %s25
    %p34 = scmp.eq.s32.totalorder %s17, 1
    %p35 = por %p33, %p34
    %p36 = scmp.ne.s32.totalorder %s25, %s26
    %p37 = scmp.eq.s32.totalorder %s17, 0
    %p38 = por %p36, %p37
    %p39 = scmp.ne.s32.totalorder %s25, %s26
    %p40 = scmp.eq.s32.totalorder %s18, 1
    %p41 = por %p39, %p40
    %p43 = scmp.ne.s32.totalorder %s26, %s42
    %p44 = scmp.eq.s32.totalorder %s18, 0
    %p45 = por %p43, %p44
    %s46 = ssub.s32 %s12, %s19
    %p47 = scmp.eq.s32.totalorder %s46, 0
    %s49 = sadd.s32 %s48, 1
    %s50 = scalar_select %p47, %s48, %s49
    %p53 = pneg %p47
    %p54 = scmp.eq.s32.totalorder %s12, 1
    %p55 = por %p53, %p54
    %p56 = scmp.ne.s32.totalorder %s48, %s51
    %p57 = scmp.eq.s32.totalorder %s12, 0
    %p58 = por %p56, %p57
    %p59 = scmp.ne.s32.totalorder %s48, %s51
    %p60 = scmp.eq.s32.totalorder %s17, 1
    %p61 = por %p59, %p60
    %p62 = scmp.ne.s32.totalorder %s51, %s52
    %p63 = scmp.eq.s32.totalorder %s17, 0
    %p64 = por %p62, %p63
    %p65 = scmp.ne.s32.totalorder %s51, %s52
    %p66 = scmp.eq.s32.totalorder %s18, 1
    %p67 = por %p65, %p66
    %p69 = scmp.ne.s32.totalorder %s52, %s68
    %p70 = scmp.eq.s32.totalorder %s18, 0
    %p71 = por %p69, %p70
    %s72 = ssub.s32 %s12, %s19
    %p73 = scmp.eq.s32.totalorder %s72, 0
    %s75 = sadd.s32 %s74, 1
    %s76 = scalar_select %p73, %s74, %s75
    %p79 = pneg %p73
    %p80 = scmp.eq.s32.totalorder %s12, 1
    %p81 = por %p79, %p80
    %p82 = scmp.ne.s32.totalorder %s74, %s77
    %p83 = scmp.eq.s32.totalorder %s12, 0
    %p84 = por %p82, %p83
    %p85 = scmp.ne.s32.totalorder %s74, %s77
    %p86 = scmp.eq.s32.totalorder %s17, 1
    %p87 = por %p85, %p86
    %p88 = scmp.ne.s32.totalorder %s77, %s78
    %p89 = scmp.eq.s32.totalorder %s17, 0
    %p90 = por %p88, %p89
    %p91 = scmp.ne.s32.totalorder %s77, %s78
    %p92 = scmp.eq.s32.totalorder %s18, 1
    %p93 = por %p91, %p92
    %p95 = scmp.ne.s32.totalorder %s78, %s94
    %p96 = scmp.eq.s32.totalorder %s18, 0
    %p97 = por %p95, %p96
    %s98 = ssub.s32 %s12, %s19
    %p99 = scmp.eq.s32.totalorder %s98, 0
    %s101 = sadd.s32 %s100, 1
    %s102 = scalar_select %p99, %s100, %s101
    %p105 = pneg %p99
    %p106 = scmp.eq.s32.totalorder %s12, 1
    %p107 = por %p105, %p106
    %p108 = scmp.ne.s32.totalorder %s100, %s103
    %p109 = scmp.eq.s32.totalorder %s12, 0
    %p110 = por %p108, %p109
    %p111 = scmp.ne.s32.totalorder %s100, %s103
    %p112 = scmp.eq.s32.totalorder %s17, 1
    %p113 = por %p111, %p112
    %p114 = scmp.ne.s32.totalorder %s103, %s104
    %p115 = scmp.eq.s32.totalorder %s17, 0
    %p116 = por %p114, %p115
    %p117 = scmp.ne.s32.totalorder %s103, %s104
    %p118 = scmp.eq.s32.totalorder %s18, 1
    %p119 = por %p117, %p118
    %p121 = scmp.ne.s32.totalorder %s104, %s120
    %p122 = scmp.eq.s32.totalorder %s18, 0
    %p123 = por %p121, %p122
    %s125 = sadd.s32 %s124, 1
    %p128 = scmp.eq.s32.totalorder %s12, 1
    %p129 = scmp.ne.s32.totalorder %s124, %s126
    %p130 = scmp.eq.s32.totalorder %s12, 0
    %p131 = por %p129, %p130
    %p132 = scmp.ne.s32.totalorder %s124, %s126
    %p133 = scmp.eq.s32.totalorder %s17, 1
    %p134 = por %p132, %p133
    %p135 = scmp.ne.s32.totalorder %s126, %s127
    %p136 = scmp.eq.s32.totalorder %s17, 0
    %p137 = por %p135, %p136
    %p138 = scmp.ne.s32.totalorder %s126, %s127
    %p139 = scmp.eq.s32.totalorder %s18, 1
    %p140 = por %p138, %p139
    %p142 = scmp.ne.s32.totalorder %s127, %s141
    %p143 = scmp.eq.s32.totalorder %s18, 0
    %p144 = por %p142, %p143
    %s146 = sadd.s32 %s145, 1
    %p149 = scmp.eq.s32.totalorder %s12, 1
    %p150 = scmp.ne.s32.totalorder %s145, %s147
    %p151 = scmp.eq.s32.totalorder %s12, 0
    %p152 = por %p150, %p151
    %p153 = scmp.ne.s32.totalorder %s145, %s147
    %p154 = scmp.eq.s32.totalorder %s17, 1
    %p155 = por %p153, %p154
    %p156 = scmp.ne.s32.totalorder %s147, %s148
    %p157 = scmp.eq.s32.totalorder %s17, 0
    %p158 = por %p156, %p157
    %p159 = scmp.ne.s32.totalorder %s147, %s148
    %p160 = scmp.eq.s32.totalorder %s18, 1
    %p161 = por %p159, %p160
    %p163 = scmp.ne.s32.totalorder %s148, %s162
    %p164 = scmp.eq.s32.totalorder %s18, 0
    %p165 = por %p163, %p164
    %s166 = ssub.s32 %s12, %s19
    %p167 = scmp.eq.s32.totalorder %s166, 0
    %s169 = sadd.s32 %s168, 1
    %s170 = scalar_select %p167, %s168, %s169
    %p173 = pneg %p167
    %p174 = scmp.eq.s32.totalorder %s12, 1
    %p175 = por %p173, %p174
    %p176 = scmp.ne.s32.totalorder %s168, %s171
    %p177 = scmp.eq.s32.totalorder %s12, 0
    %p178 = por %p176, %p177
    %p179 = scmp.ne.s32.totalorder %s168, %s171
    %p180 = scmp.eq.s32.totalorder %s17, 1
    %p181 = por %p179, %p180
    %p182 = scmp.ne.s32.totalorder %s171, %s172
    %p183 = scmp.eq.s32.totalorder %s17, 0
    %p184 = por %p182, %p183
    %p185 = scmp.ne.s32.totalorder %s171, %s172
    %p186 = scmp.eq.s32.totalorder %s18, 1
    %p187 = por %p185, %p186
    %p189 = scmp.ne.s32.totalorder %s172, %s188
    %p190 = scmp.eq.s32.totalorder %s18, 0
    %p191 = por %p189, %p190
    %p192 = scmp.le.s32.totalorder 1, %s12
    %p193 = scmp.lt.s32.totalorder %s12, 3
    %p194 = pnand %p192, %p193
    %p195 = pneg %p194
    // Predicated region
    $region9: #{simple_cnn_forward.6} parent=5 // pred_check
      _
    $region10: #{simple_cnn_forward.6} parent=5 // pred_check_branch
      %197 = sbr.rel (%p194) target = $region12
    $region11: #{simple_cnn_forward.6} parent=5 // pred_region
      %s198 = ssub.s32 %s12, 1
      // Predicated region
      $region13: #{simple_cnn_forward.6} parent=11 // pred_check
        %p199 = pneg %p137
      $region14: #{simple_cnn_forward.6} parent=11 // pred_check_branch
        %201 = sbr.rel (%p199) target = $region16
      $region15: #{simple_cnn_forward.6} parent=11 // pred_region
        _
      $region16: #{simple_cnn_forward.6} parent=11 // pred_fallthru
        _
      // Predicated region
      $region17: #{simple_cnn_forward.6} parent=11 // pred_check
        %p202 = pneg %p158
      $region18: #{simple_cnn_forward.6} parent=11 // pred_check_branch
        %204 = sbr.rel (%p202) target = $region20
      $region19: #{simple_cnn_forward.6} parent=11 // pred_region
        _
      $region20: #{simple_cnn_forward.6} parent=11 // pred_fallthru
        _
    $region12: #{simple_cnn_forward.6} parent=5 // pred_fallthru
      _
    %p205 = scmp.lt.s32.totalorder %s12, 2
    // Predicated region
    $region21: #{simple_cnn_forward.6} parent=5 // pred_check
      %p206 = pneg %p205
    $region22: #{simple_cnn_forward.6} parent=5 // pred_check_branch
      %208 = sbr.rel (%p206) target = $region24
    $region23: #{simple_cnn_forward.6} parent=5 // pred_region
      // Predicated region
      $region25: #{simple_cnn_forward.6} parent=23 // pred_check
        %p209 = pneg %p32
      $region26: #{simple_cnn_forward.6} parent=23 // pred_check_branch
        %211 = sbr.rel (%p209) target = $region28
      $region27: #{simple_cnn_forward.6} parent=23 // pred_region
        %s212 = smul.u32 8, %s12
        %p213 = scmp.lt.s32.totalorder %s212, 15
        %s214 = scalar_select %p213, %s212, 15
        %s215 = smul.addr %s214, 3
        %s216 = smul.addr %s215, 4
        %s217 = scalar_lea.vmem %s0, %s216
        %s218 = smul.u32 8, %s12
      $region28: #{simple_cnn_forward.6} parent=23 // pred_fallthru
        _
      // Predicated region
      $region29: #{simple_cnn_forward.6} parent=23 // pred_check
        %p219 = pneg %p58
      $region30: #{simple_cnn_forward.6} parent=23 // pred_check_branch
        %221 = sbr.rel (%p219) target = $region32
      $region31: #{simple_cnn_forward.6} parent=23 // pred_region
        %s222 = smul.u32 8, %s12
        %p223 = scmp.lt.s32.totalorder %s222, 15
        %s224 = scalar_select %p223, %s222, 15
        %s225 = smul.addr %s224, 3
        %s226 = smul.addr %s225, 4
        %s227 = scalar_lea.vmem %s1, %s226
        %s228 = smul.u32 8, %s12
      $region32: #{simple_cnn_forward.6} parent=23 // pred_fallthru
        _
      // Predicated region
      $region33: #{simple_cnn_forward.6} parent=23 // pred_check
        %p229 = pneg %p84
      $region34: #{simple_cnn_forward.6} parent=23 // pred_check_branch
        %231 = sbr.rel (%p229) target = $region36
      $region35: #{simple_cnn_forward.6} parent=23 // pred_region
        %s232 = smul.u32 8, %s12
        %p233 = scmp.lt.s32.totalorder %s232, 15
        %s234 = scalar_select %p233, %s232, 15
        %s235 = smul.addr %s234, 3
        %s236 = smul.addr %s235, 4
        %s237 = scalar_lea.vmem %s2, %s236
        %s238 = smul.u32 8, %s12
      $region36: #{simple_cnn_forward.6} parent=23 // pred_fallthru
        _
      // Predicated region
      $region37: #{simple_cnn_forward.6} parent=23 // pred_check
        %p239 = pneg %p110
      $region38: #{simple_cnn_forward.6} parent=23 // pred_check_branch
        %241 = sbr.rel (%p239) target = $region40
      $region39: #{simple_cnn_forward.6} parent=23 // pred_region
        %s242 = smul.u32 8, %s12
        %p243 = scmp.lt.s32.totalorder %s242, 15
        %s244 = scalar_select %p243, %s242, 15
        %s245 = smul.addr %s244, 3
        %s246 = smul.addr %s245, 4
        %s247 = scalar_lea.vmem %s3, %s246
        %s248 = smul.u32 8, %s12
      $region40: #{simple_cnn_forward.6} parent=23 // pred_fallthru
        _
    $region24: #{simple_cnn_forward.6} parent=5 // pred_fallthru
      _
    %p249 = scmp.le.s32.totalorder 1, %s12
    %p250 = scmp.lt.s32.totalorder %s12, 3
    %p251 = pnand %p249, %p250
    %p252 = pneg %p251
    // Predicated region
    $region41: #{simple_cnn_forward.6} parent=5 // pred_check
      _
    $region42: #{simple_cnn_forward.6} parent=5 // pred_check_branch
      %254 = sbr.rel (%p251) target = $region44
    $region43: #{simple_cnn_forward.6} parent=5 // pred_region
      %s255 = ssub.s32 %s12, 1
      %s256 = smul.u32 8, %s17
      %p257 = scmp.lt.s32.totalorder %s256, 15
      %s258 = scalar_select %p257, %s256, 15
      %s259 = smul.addr %s258, 3
      %s260 = smul.addr %s259, 4
      %s261 = scalar_lea.vmem %s0, %s260
      %p262 = pneg %p38
      %p263 = pneg %p35
      %s264 = smul.u32 8, %s17
      %p265 = scmp.lt.s32.totalorder %s264, 15
      %s266 = scalar_select %p265, %s264, 15
      %s267 = smul.addr %s266, 3
      %s268 = smul.addr %s267, 4
      %s269 = scalar_lea.vmem %s1, %s268
      %p270 = pneg %p64
      %p271 = pneg %p61
      %s272 = smul.u32 8, %s17
      %p273 = scmp.lt.s32.totalorder %s272, 15
      %s274 = scalar_select %p273, %s272, 15
      %s275 = smul.addr %s274, 3
      %s276 = smul.addr %s275, 4
      %s277 = scalar_lea.vmem %s2, %s276
      %p278 = pneg %p90
      %p279 = pneg %p87
      %s280 = smul.u32 8, %s17
      %p281 = scmp.lt.s32.totalorder %s280, 15
      %s282 = scalar_select %p281, %s280, 15
      %s283 = smul.addr %s282, 3
      %s284 = smul.addr %s283, 4
      %s285 = scalar_lea.vmem %s3, %s284
      %p286 = pneg %p116
      %p287 = pneg %p113
      %p288 = pneg %p137
      %p289 = pneg %p134
      %p290 = pneg %p158
      %p291 = pneg %p155
      %p292 = pneg %p184
      %p293 = pneg %p181
      %s294 = smul.u32 8, %s17
      %p295 = scmp.lt.s32.totalorder %s294, 15
      %s296 = scalar_select %p295, %s294, 15
      %s297 = smul.addr %s296, 8
      %s298 = scalar_lea.vmem %s6, %s297
      %s299 = smul.u32 8, %s17
      %p300 = scmp.lt.s32.totalorder %s299, 15
      %s301 = scalar_select %p300, %s299, 15
      %s302 = smul.addr %s301, 3
      %s303 = smul.addr %s302, 4
      %s304 = scalar_lea.vmem %s0, %s303
      %s305 = smul.u32 8, %s17
      %s306 = smul.u32 8, %s17
      %p307 = scmp.lt.s32.totalorder %s306, 15
      %s308 = scalar_select %p307, %s306, 15
      %s309 = smul.addr %s308, 3
      %s310 = smul.addr %s309, 4
      %s311 = scalar_lea.vmem %s1, %s310
      %s312 = smul.u32 8, %s17
      %s313 = smul.u32 8, %s17
      %p314 = scmp.lt.s32.totalorder %s313, 15
      %s315 = scalar_select %p314, %s313, 15
      %s316 = smul.addr %s315, 3
      %s317 = smul.addr %s316, 4
      %s318 = scalar_lea.vmem %s2, %s317
      %s319 = smul.u32 8, %s17
      %s320 = smul.u32 8, %s17
      %p321 = scmp.lt.s32.totalorder %s320, 15
      %s322 = scalar_select %p321, %s320, 15
      %s323 = smul.addr %s322, 3
      %s324 = smul.addr %s323, 4
      %s325 = scalar_lea.vmem %s3, %s324
      %s326 = smul.u32 8, %s17
      %s327 = smul.u32 8, %s17
      %p328 = scmp.lt.s32.totalorder %s327, 15
      %s329 = scalar_select %p328, %s327, 15
      %s330 = smul.addr %s329, 8
      %s331 = scalar_lea.vmem %s6, %s330
      %s332 = smul.u32 8, %s17
      %v334 = vld [vmem:[%s4] sm:$0xf]
      %v335 = vld [vmem:[%s4 + $0x4] sm:$0xf]
      %v336 = vld [vmem:[%s4 + $0x8] sm:$0xf]
      %v337 = vld [vmem:[%s4 + $0xc] sm:$0xf]
      %v338 = vld [vmem:[%s4 + $0x10] sm:$0xf]
      %v339 = vld [vmem:[%s4 + $0x14] sm:$0xf]
      %v340 = vld [vmem:[%s4 + $0x18] sm:$0xf]
      %v341 = vld [vmem:[%s4 + $0x1c] sm:$0xf]
      %v342 = vld [vmem:[%s4 + $0x20] sm:$0xf]
      %v343 = vld [vmem:[%s4 + $0x24] sm:$0xf]
      %v344 = vld [vmem:[%s4 + $0x28] sm:$0xf]
      %v345 = vld [vmem:[%s4 + $0x2c] sm:$0xf]
      %v346 = vld [vmem:[%s4 + $0x30] sm:$0xf]
      %v347 = vld [vmem:[%s4 + $0x34] sm:$0xf]
      %v348 = vld [vmem:[%s4 + $0x38] sm:$0xf]
      %v349 = vld [vmem:[%s4 + $0x3c] sm:$0xf]
      %v350 = vld [vmem:[%s4 + $0x40] sm:$0xf]
      %v351 = vld [vmem:[%s4 + $0x44] sm:$0xf]
      %v352 = vld [vmem:[%s4 + $0x48] sm:$0xf]
      %v353 = vld [vmem:[%s4 + $0x4c] sm:$0xf]
      %v354 = vld [vmem:[%s4 + $0x50] sm:$0xf]
      %v355 = vld [vmem:[%s4 + $0x54] sm:$0xf]
      %v356 = vld [vmem:[%s4 + $0x58] sm:$0xf]
      %v357 = vld [vmem:[%s4 + $0x5c] sm:$0xf]
      %v358 = vld [vmem:[%s4 + $0x60] sm:$0xf]
      %v359 = vld [vmem:[%s4 + $0x64] sm:$0xf]
      %v360 = vld [vmem:[%s4 + $0x68] sm:$0xf]
      %v361 = vld [vmem:[%s4 + $0x6c] sm:$0xf]
      %v362 = vld [vmem:[%s4 + $0x70] sm:$0xf]
      %v363 = vld [vmem:[%s4 + $0x74] sm:$0xf]
      %v364 = vld [vmem:[%s4 + $0x78] sm:$0xf]
      %v365 = vld [vmem:[%s4 + $0x7c] sm:$0xf]
      %v366 = vld [vmem:[%s4 + $0x80] sm:$0xf]
      %v367 = vld [vmem:[%s4 + $0x84] sm:$0xf]
      %v368 = vld [vmem:[%s4 + $0x88] sm:$0xf]
      %v369 = vld [vmem:[%s4 + $0x8c] sm:$0xf]
      %v370 = vld [vmem:[%s304] sm:$0xff]
      %v371 = vld [vmem:[%s304 + $0x8] sm:$0xf]
      %v372 = vld [vmem:[%s304 + $0xc] sm:$0xff]
      %v373 = vld [vmem:[%s304 + $0x14] sm:$0xf]
      %v374 = vld [vmem:[%s304 + $0x18] sm:$0xff]
      %v375 = vld [vmem:[%s304 + $0x20] sm:$0xf]
      %v376 = vld [vmem:[%s304 + $0x24] sm:$0xff]
      %v377 = vld [vmem:[%s304 + $0x2c] sm:$0xf]
      %v378 = vld [vmem:[%s304 + $0x30] sm:$0xff]
      %v379 = vld [vmem:[%s304 + $0x38] sm:$0xf]
      %v380 = vld [vmem:[%s304 + $0x3c] sm:$0xff]
      %v381 = vld [vmem:[%s304 + $0x44] sm:$0xf]
      %v382 = vld [vmem:[%s304 + $0x48] sm:$0xff]
      %v383 = vld [vmem:[%s304 + $0x50] sm:$0xf]
      %v384 = vld [vmem:[%s304 + $0x54] sm:$0xff]
      %v385 = vld [vmem:[%s304 + $0x5c] sm:$0xf]
      %v402 = vunpack.c.l.b16 %v370
      %v403 = vunpack.c.h.b16 %v370
      %v404 = vunpack.c.l.b16 %v371
      %v405 = vunpack.c.l.b16 %v372
      %v406 = vunpack.c.h.b16 %v372
      %v407 = vunpack.c.l.b16 %v373
      %v408 = vunpack.c.l.b16 %v374
      %v409 = vunpack.c.h.b16 %v374
      %v410 = vunpack.c.l.b16 %v375
      %v411 = vunpack.c.l.b16 %v376
      %v412 = vunpack.c.h.b16 %v376
      %v413 = vunpack.c.l.b16 %v377
      %v414 = vunpack.c.l.b16 %v378
      %v415 = vunpack.c.h.b16 %v378
      %v416 = vunpack.c.l.b16 %v379
      %v417 = vunpack.c.l.b16 %v380
      %v418 = vunpack.c.h.b16 %v380
      %v419 = vunpack.c.l.b16 %v381
      %v420 = vunpack.c.l.b16 %v382
      %v421 = vunpack.c.h.b16 %v382
      %v422 = vunpack.c.l.b16 %v383
      %v423 = vunpack.c.l.b16 %v384
      %v424 = vunpack.c.h.b16 %v384
      %v425 = vunpack.c.l.b16 %v385
      %v426 = vpack.c.b16 %v405, %v402
      %v427 = vpack.c.b16 %v406, %v403
      %v428 = vpack.c.b16 %v407, %v404
      %v429 = vpack.c.b16 %v411, %v408
      %v430 = vpack.c.b16 %v412, %v409
      %v431 = vpack.c.b16 %v413, %v410
      %v432 = vpack.c.b16 %v417, %v414
      %v433 = vpack.c.b16 %v418, %v415
      %v434 = vpack.c.b16 %v419, %v416
      %v435 = vpack.c.b16 %v423, %v420
      %v436 = vpack.c.b16 %v424, %v421
      %v437 = vpack.c.b16 %v425, %v422
      %v482 = vunpack.c.l.b16 %v334
      %v483 = vunpack.c.l.b16 %v335
      %v484 = vunpack.c.l.b16 %v336
      %v485 = vunpack.c.l.b16 %v337
      %v486 = vunpack.c.l.b16 %v338
      %v487 = vunpack.c.l.b16 %v339
      %v488 = vunpack.c.l.b16 %v340
      %v489 = vunpack.c.l.b16 %v341
      %v490 = vunpack.c.l.b16 %v342
      %v491 = vunpack.c.l.b16 %v343
      %v492 = vunpack.c.l.b16 %v344
      %v493 = vunpack.c.l.b16 %v345
      %v494 = vunpack.c.l.b16 %v346
      %v495 = vunpack.c.l.b16 %v347
      %v496 = vunpack.c.l.b16 %v348
      %v497 = vunpack.c.l.b16 %v349
      %v498 = vunpack.c.l.b16 %v350
      %v499 = vunpack.c.l.b16 %v351
      %v500 = vunpack.c.l.b16 %v352
      %v501 = vunpack.c.l.b16 %v353
      %v502 = vunpack.c.l.b16 %v354
      %v503 = vunpack.c.l.b16 %v355
      %v504 = vunpack.c.l.b16 %v356
      %v505 = vunpack.c.l.b16 %v357
      %v506 = vunpack.c.l.b16 %v358
      %v507 = vunpack.c.l.b16 %v359
      %v508 = vunpack.c.l.b16 %v360
      %v509 = vunpack.c.l.b16 %v361
      %v510 = vunpack.c.l.b16 %v362
      %v511 = vunpack.c.l.b16 %v363
      %v512 = vunpack.c.l.b16 %v364
      %v513 = vunpack.c.l.b16 %v365
      %v514 = vunpack.c.l.b16 %v366
      %v515 = vunpack.c.l.b16 %v367
      %v516 = vunpack.c.l.b16 %v368
      %v517 = vunpack.c.l.b16 %v369
      %v518 = vpack.c.b16 %v483, %v482
      %v519 = vpack.c.b16 %v485, %v484
      %v520 = vpack.c.b16 %v487, %v486
      %v521 = vpack.c.b16 %v489, %v488
      %v522 = vpack.c.b16 %v491, %v490
      %v523 = vpack.c.b16 %v493, %v492
      %v524 = vpack.c.b16 %v495, %v494
      %v525 = vpack.c.b16 %v497, %v496
      %v526 = vpack.c.b16 %v499, %v498
      %v527 = vpack.c.b16 %v501, %v500
      %v528 = vpack.c.b16 %v503, %v502
      %v529 = vpack.c.b16 %v505, %v504
      %v530 = vpack.c.b16 %v507, %v506
      %v531 = vpack.c.b16 %v509, %v508
      %v532 = vpack.c.b16 %v511, %v510
      %v533 = vpack.c.b16 %v513, %v512
      %v534 = vpack.c.b16 %v515, %v514
      %v535 = vpack.c.b16 %v517, %v516
      %vm554 = vcmask 261120
      %v556 = vsel %vm554, %v428, 0
      %v559 = vsel %vm554, %v431, 0
      %v562 = vsel %vm554, %v434, 0
      %v565 = vsel %vm554, %v437, 0
      %567 = vmatprep.subr.bf16.mxu0 0
      %568 = vmatpush1.bf16.msra.mxu0 %v525
      %569 = vmatprep.subr.bf16.mxu0 0
      %570 = vmatpush1.bf16.msra.mxu0 %v524
      %571 = vmatprep.subr.bf16.mxu0 0
      %572 = vmatpush1.bf16.msra.mxu0 %v523
      %573 = vmatprep.subr.bf16.mxu0 0
      %574 = vmatpush1.bf16.msra.mxu0 %v522
      %575 = vmatprep.subr.bf16.mxu0 0
      %576 = vmatpush1.bf16.msra.mxu0 %v521
      %577 = vmatprep.subr.bf16.mxu0 0
      %578 = vmatpush1.bf16.msra.mxu0 %v520
      %579 = vmatprep.subr.bf16.mxu0 0
      %580 = vmatpush1.bf16.msra.mxu0 %v519
      %581 = vmatprep.subr.bf16.mxu0 0
      %582 = vmatpush1.bf16.msra.mxu0 %v518
      %583 = vmatprep.subr.bf16.mxu0 0
      %584 = vmatpush2.bf16.msra.mxu0 %v533
      %585 = vmatprep.subr.bf16.mxu0 0
      %586 = vmatpush2.bf16.msra.mxu0 %v532
      %587 = vmatprep.subr.bf16.mxu0 0
      %588 = vmatpush2.bf16.msra.mxu0 %v531
      %589 = vmatprep.subr.bf16.mxu0 0
      %590 = vmatpush2.bf16.msra.mxu0 %v530
      %591 = vmatprep.subr.bf16.mxu0 0
      %592 = vmatpush2.bf16.msra.mxu0 %v529
      %593 = vmatprep.subr.bf16.mxu0 0
      %594 = vmatpush2.bf16.msra.mxu0 %v528
      %595 = vmatprep.subr.bf16.mxu0 0
      %596 = vmatpush2.bf16.msra.mxu0 %v527
      %597 = vmatprep.subr.bf16.mxu0 0
      %598 = vmatpush2.bf16.msra.mxu0 %v526
      %599 = vmatprep.mubr.bf16.mxu0 %v427
      %600 = vmatmul.mubr.bf16.gmra.mxu0 %v426
      %v601 = vpop.f32.mrf.mxu0
      %v602 = vadd.f32 0.0, %v601
      %v603 = vpop.f32.mrf.mxu0
      %v604 = vpop.f32.mrf.mxu0
      %v605 = vadd.f32 0.0, %v604
      %v606 = vpop.f32.mrf.mxu0
      %607 = vmatprep.mubr.bf16.mxu0 %v430
      %608 = vmatmul.mubr.bf16.gmra.mxu0 %v429
      %v609 = vpop.f32.mrf.mxu0
      %v610 = vadd.f32 0.0, %v609
      %v611 = vpop.f32.mrf.mxu0
      %v612 = vpop.f32.mrf.mxu0
      %v613 = vadd.f32 0.0, %v612
      %v614 = vpop.f32.mrf.mxu0
      %615 = vmatprep.mubr.bf16.mxu0 %v433
      %616 = vmatmul.mubr.bf16.gmra.mxu0 %v432
      %v617 = vpop.f32.mrf.mxu0
      %v618 = vadd.f32 0.0, %v617
      %v619 = vpop.f32.mrf.mxu0
      %v620 = vpop.f32.mrf.mxu0
      %v621 = vadd.f32 0.0, %v620
      %v622 = vpop.f32.mrf.mxu0
      %623 = vmatprep.mubr.bf16.mxu0 %v436
      %624 = vmatmul.mubr.bf16.gmra.mxu0 %v435
      %v625 = vpop.f32.mrf.mxu0
      %v626 = vadd.f32 0.0, %v625
      %v627 = vpop.f32.mrf.mxu0
      %v628 = vpop.f32.mrf.mxu0
      %v629 = vadd.f32 0.0, %v628
      %v630 = vpop.f32.mrf.mxu0
      %631 = vdwg.mxu0
      %632 = vmatprep.subr.bf16.mxu0 0
      %633 = vmatpush1.bf16.msra.mxu0 0
      %634 = vmatprep.subr.bf16.mxu0 0
      %635 = vmatpush1.bf16.msra.mxu0 0
      %636 = vmatprep.subr.bf16.mxu0 0
      %637 = vmatpush1.bf16.msra.mxu0 0
      %638 = vmatprep.subr.bf16.mxu0 0
      %639 = vmatpush1.bf16.msra.mxu0 0
      %640 = vmatprep.subr.bf16.mxu0 0
      %641 = vmatpush1.bf16.msra.mxu0 0
      %642 = vmatprep.subr.bf16.mxu0 0
      %643 = vmatpush1.bf16.msra.mxu0 0
      %644 = vmatprep.subr.bf16.mxu0 0
      %645 = vmatpush1.bf16.msra.mxu0 %v535
      %646 = vmatprep.subr.bf16.mxu0 0
      %647 = vmatpush1.bf16.msra.mxu0 %v534
      %648 = vmatprep.subr.bf16.mxu0 0
      %649 = vmatpush2.bf16.msra.mxu0 0
      %650 = vmatprep.subr.bf16.mxu0 0
      %651 = vmatpush2.bf16.msra.mxu0 0
      %652 = vmatprep.subr.bf16.mxu0 0
      %653 = vmatpush2.bf16.msra.mxu0 0
      %654 = vmatprep.subr.bf16.mxu0 0
      %655 = vmatpush2.bf16.msra.mxu0 0
      %656 = vmatprep.subr.bf16.mxu0 0
      %657 = vmatpush2.bf16.msra.mxu0 0
      %658 = vmatprep.subr.bf16.mxu0 0
      %659 = vmatpush2.bf16.msra.mxu0 0
      %660 = vmatprep.subr.bf16.mxu0 0
      %661 = vmatpush2.bf16.msra.mxu0 0
      %662 = vmatprep.subr.bf16.mxu0 0
      %663 = vmatpush2.bf16.msra.mxu0 0
      %664 = vmatprep.mubr.bf16.mxu0 0
      %665 = vmatmul.mubr.bf16.gmra.mxu0 %v556
      %v666 = vpop.f32.mrf.mxu0
      %v667 = vadd.f32 %v602, %v666
      %v668 = vpop.f32.mrf.mxu0
      %v669 = vpop.f32.mrf.mxu0
      %v670 = vadd.f32 %v605, %v669
      %v671 = vpop.f32.mrf.mxu0
      %672 = vmatprep.mubr.bf16.mxu0 0
      %673 = vmatmul.mubr.bf16.gmra.mxu0 %v559
      %v674 = vpop.f32.mrf.mxu0
      %v675 = vadd.f32 %v610, %v674
      %v676 = vpop.f32.mrf.mxu0
      %v677 = vpop.f32.mrf.mxu0
      %v678 = vadd.f32 %v613, %v677
      %v679 = vpop.f32.mrf.mxu0
      %680 = vmatprep.mubr.bf16.mxu0 0
      %681 = vmatmul.mubr.bf16.gmra.mxu0 %v562
      %v682 = vpop.f32.mrf.mxu0
      %v683 = vadd.f32 %v618, %v682
      %v684 = vpop.f32.mrf.mxu0
      %v685 = vpop.f32.mrf.mxu0
      %v686 = vadd.f32 %v621, %v685
      %v687 = vpop.f32.mrf.mxu0
      %688 = vmatprep.mubr.bf16.mxu0 0
      %689 = vmatmul.mubr.bf16.gmra.mxu0 %v565
      %v690 = vpop.f32.mrf.mxu0
      %v691 = vadd.f32 %v626, %v690
      %v692 = vpop.f32.mrf.mxu0
      %v693 = vpop.f32.mrf.mxu0
      %v694 = vadd.f32 %v629, %v693
      %v695 = vpop.f32.mrf.mxu0
      %696 = vdwg.mxu0
      %v697 = vld [vmem:[%s311] sm:$0xff]
      %v698 = vld [vmem:[%s311 + $0x8] sm:$0xf]
      %v699 = vld [vmem:[%s311 + $0xc] sm:$0xff]
      %v700 = vld [vmem:[%s311 + $0x14] sm:$0xf]
      %v701 = vld [vmem:[%s311 + $0x18] sm:$0xff]
      %v702 = vld [vmem:[%s311 + $0x20] sm:$0xf]
      %v703 = vld [vmem:[%s311 + $0x24] sm:$0xff]
      %v704 = vld [vmem:[%s311 + $0x2c] sm:$0xf]
      %v705 = vld [vmem:[%s311 + $0x30] sm:$0xff]
      %v706 = vld [vmem:[%s311 + $0x38] sm:$0xf]
      %v707 = vld [vmem:[%s311 + $0x3c] sm:$0xff]
      %v708 = vld [vmem:[%s311 + $0x44] sm:$0xf]
      %v709 = vld [vmem:[%s311 + $0x48] sm:$0xff]
      %v710 = vld [vmem:[%s311 + $0x50] sm:$0xf]
      %v711 = vld [vmem:[%s311 + $0x54] sm:$0xff]
      %v712 = vld [vmem:[%s311 + $0x5c] sm:$0xf]
      %v729 = vunpack.c.l.b16 %v697
      %v730 = vunpack.c.h.b16 %v697
      %v731 = vunpack.c.l.b16 %v698
      %v732 = vunpack.c.l.b16 %v699
      %v733 = vunpack.c.h.b16 %v699
      %v734 = vunpack.c.l.b16 %v700
      %v735 = vunpack.c.l.b16 %v701
      %v736 = vunpack.c.h.b16 %v701
      %v737 = vunpack.c.l.b16 %v702
      %v738 = vunpack.c.l.b16 %v703
      %v739 = vunpack.c.h.b16 %v703
      %v740 = vunpack.c.l.b16 %v704
      %v741 = vunpack.c.l.b16 %v705
      %v742 = vunpack.c.h.b16 %v705
      %v743 = vunpack.c.l.b16 %v706
      %v744 = vunpack.c.l.b16 %v707
      %v745 = vunpack.c.h.b16 %v707
      %v746 = vunpack.c.l.b16 %v708
      %v747 = vunpack.c.l.b16 %v709
      %v748 = vunpack.c.h.b16 %v709
      %v749 = vunpack.c.l.b16 %v710
      %v750 = vunpack.c.l.b16 %v711
      %v751 = vunpack.c.h.b16 %v711
      %v752 = vunpack.c.l.b16 %v712
      %v753 = vpack.c.b16 %v732, %v729
      %v754 = vpack.c.b16 %v733, %v730
      %v755 = vpack.c.b16 %v734, %v731
      %v756 = vpack.c.b16 %v738, %v735
      %v757 = vpack.c.b16 %v739, %v736
      %v758 = vpack.c.b16 %v740, %v737
      %v759 = vpack.c.b16 %v744, %v741
      %v760 = vpack.c.b16 %v745, %v742
      %v761 = vpack.c.b16 %v746, %v743
      %v762 = vpack.c.b16 %v750, %v747
      %v763 = vpack.c.b16 %v751, %v748
      %v764 = vpack.c.b16 %v752, %v749
      %v774 = vsel %vm554, %v755, 0
      %v777 = vsel %vm554, %v758, 0
      %v780 = vsel %vm554, %v761, 0
      %v783 = vsel %vm554, %v764, 0
      %785 = vmatprep.subr.bf16.mxu0 0
      %786 = vmatpush1.bf16.msra.mxu0 %v525
      %787 = vmatprep.subr.bf16.mxu0 0
      %788 = vmatpush1.bf16.msra.mxu0 %v524
      %789 = vmatprep.subr.bf16.mxu0 0
      %790 = vmatpush1.bf16.msra.mxu0 %v523
      %791 = vmatprep.subr.bf16.mxu0 0
      %792 = vmatpush1.bf16.msra.mxu0 %v522
      %793 = vmatprep.subr.bf16.mxu0 0
      %794 = vmatpush1.bf16.msra.mxu0 %v521
      %795 = vmatprep.subr.bf16.mxu0 0
      %796 = vmatpush1.bf16.msra.mxu0 %v520
      %797 = vmatprep.subr.bf16.mxu0 0
      %798 = vmatpush1.bf16.msra.mxu0 %v519
      %799 = vmatprep.subr.bf16.mxu0 0
      %800 = vmatpush1.bf16.msra.mxu0 %v518
      %801 = vmatprep.subr.bf16.mxu0 0
      %802 = vmatpush2.bf16.msra.mxu0 %v533
      %803 = vmatprep.subr.bf16.mxu0 0
      %804 = vmatpush2.bf16.msra.mxu0 %v532
      %805 = vmatprep.subr.bf16.mxu0 0
      %806 = vmatpush2.bf16.msra.mxu0 %v531
      %807 = vmatprep.subr.bf16.mxu0 0
      %808 = vmatpush2.bf16.msra.mxu0 %v530
      %809 = vmatprep.subr.bf16.mxu0 0
      %810 = vmatpush2.bf16.msra.mxu0 %v529
      %811 = vmatprep.subr.bf16.mxu0 0
      %812 = vmatpush2.bf16.msra.mxu0 %v528
      %813 = vmatprep.subr.bf16.mxu0 0
      %814 = vmatpush2.bf16.msra.mxu0 %v527
      %815 = vmatprep.subr.bf16.mxu0 0
      %816 = vmatpush2.bf16.msra.mxu0 %v526
      %817 = vmatprep.mubr.bf16.mxu0 %v754
      %818 = vmatmul.mubr.bf16.gmra.mxu0 %v753
      %v819 = vpop.f32.mrf.mxu0
      %v820 = vadd.f32 0.0, %v819
      %v821 = vpop.f32.mrf.mxu0
      %v822 = vpop.f32.mrf.mxu0
      %v823 = vadd.f32 0.0, %v822
      %v824 = vpop.f32.mrf.mxu0
      %825 = vmatprep.mubr.bf16.mxu0 %v757
      %826 = vmatmul.mubr.bf16.gmra.mxu0 %v756
      %v827 = vpop.f32.mrf.mxu0
      %v828 = vadd.f32 0.0, %v827
      %v829 = vpop.f32.mrf.mxu0
      %v830 = vpop.f32.mrf.mxu0
      %v831 = vadd.f32 0.0, %v830
      %v832 = vpop.f32.mrf.mxu0
      %833 = vmatprep.mubr.bf16.mxu0 %v760
      %834 = vmatmul.mubr.bf16.gmra.mxu0 %v759
      %v835 = vpop.f32.mrf.mxu0
      %v836 = vadd.f32 0.0, %v835
      %v837 = vpop.f32.mrf.mxu0
      %v838 = vpop.f32.mrf.mxu0
      %v839 = vadd.f32 0.0, %v838
      %v840 = vpop.f32.mrf.mxu0
      %841 = vmatprep.mubr.bf16.mxu0 %v763
      %842 = vmatmul.mubr.bf16.gmra.mxu0 %v762
      %v843 = vpop.f32.mrf.mxu0
      %v844 = vadd.f32 0.0, %v843
      %v845 = vpop.f32.mrf.mxu0
      %v846 = vpop.f32.mrf.mxu0
      %v847 = vadd.f32 0.0, %v846
      %v848 = vpop.f32.mrf.mxu0
      %849 = vdwg.mxu0
      %850 = vmatprep.subr.bf16.mxu0 0
      %851 = vmatpush1.bf16.msra.mxu0 0
      %852 = vmatprep.subr.bf16.mxu0 0
      %853 = vmatpush1.bf16.msra.mxu0 0
      %854 = vmatprep.subr.bf16.mxu0 0
      %855 = vmatpush1.bf16.msra.mxu0 0
      %856 = vmatprep.subr.bf16.mxu0 0
      %857 = vmatpush1.bf16.msra.mxu0 0
      %858 = vmatprep.subr.bf16.mxu0 0
      %859 = vmatpush1.bf16.msra.mxu0 0
      %860 = vmatprep.subr.bf16.mxu0 0
      %861 = vmatpush1.bf16.msra.mxu0 0
      %862 = vmatprep.subr.bf16.mxu0 0
      %863 = vmatpush1.bf16.msra.mxu0 %v535
      %864 = vmatprep.subr.bf16.mxu0 0
      %865 = vmatpush1.bf16.msra.mxu0 %v534
      %866 = vmatprep.subr.bf16.mxu0 0
      %867 = vmatpush2.bf16.msra.mxu0 0
      %868 = vmatprep.subr.bf16.mxu0 0
      %869 = vmatpush2.bf16.msra.mxu0 0
      %870 = vmatprep.subr.bf16.mxu0 0
      %871 = vmatpush2.bf16.msra.mxu0 0
      %872 = vmatprep.subr.bf16.mxu0 0
      %873 = vmatpush2.bf16.msra.mxu0 0
      %874 = vmatprep.subr.bf16.mxu0 0
      %875 = vmatpush2.bf16.msra.mxu0 0
      %876 = vmatprep.subr.bf16.mxu0 0
      %877 = vmatpush2.bf16.msra.mxu0 0
      %878 = vmatprep.subr.bf16.mxu0 0
      %879 = vmatpush2.bf16.msra.mxu0 0
      %880 = vmatprep.subr.bf16.mxu0 0
      %881 = vmatpush2.bf16.msra.mxu0 0
      %882 = vmatprep.mubr.bf16.mxu0 0
      %883 = vmatmul.mubr.bf16.gmra.mxu0 %v774
      %v884 = vpop.f32.mrf.mxu0
      %v885 = vadd.f32 %v820, %v884
      %v886 = vpop.f32.mrf.mxu0
      %v887 = vpop.f32.mrf.mxu0
      %v888 = vadd.f32 %v823, %v887
      %v889 = vpop.f32.mrf.mxu0
      %890 = vmatprep.mubr.bf16.mxu0 0
      %891 = vmatmul.mubr.bf16.gmra.mxu0 %v777
      %v892 = vpop.f32.mrf.mxu0
      %v893 = vadd.f32 %v828, %v892
      %v894 = vpop.f32.mrf.mxu0
      %v895 = vpop.f32.mrf.mxu0
      %v896 = vadd.f32 %v831, %v895
      %v897 = vpop.f32.mrf.mxu0
      %898 = vmatprep.mubr.bf16.mxu0 0
      %899 = vmatmul.mubr.bf16.gmra.mxu0 %v780
      %v900 = vpop.f32.mrf.mxu0
      %v901 = vadd.f32 %v836, %v900
      %v902 = vpop.f32.mrf.mxu0
      %v903 = vpop.f32.mrf.mxu0
      %v904 = vadd.f32 %v839, %v903
      %v905 = vpop.f32.mrf.mxu0
      %906 = vmatprep.mubr.bf16.mxu0 0
      %907 = vmatmul.mubr.bf16.gmra.mxu0 %v783
      %v908 = vpop.f32.mrf.mxu0
      %v909 = vadd.f32 %v844, %v908
      %v910 = vpop.f32.mrf.mxu0
      %v911 = vpop.f32.mrf.mxu0
      %v912 = vadd.f32 %v847, %v911
      %v913 = vpop.f32.mrf.mxu0
      %914 = vdwg.mxu0
      %v915 = vmax.f32 %v667, %v885
      %v916 = vmax.f32 %v670, %v888
      %v917 = vmax.f32 %v675, %v893
      %v918 = vmax.f32 %v678, %v896
      %v919 = vmax.f32 %v683, %v901
      %v920 = vmax.f32 %v686, %v904
      %v921 = vmax.f32 %v691, %v909
      %v922 = vmax.f32 %v694, %v912
      %v923 = vld [vmem:[%s318] sm:$0xff]
      %v924 = vld [vmem:[%s318 + $0x8] sm:$0xf]
      %v925 = vld [vmem:[%s318 + $0xc] sm:$0xff]
      %v926 = vld [vmem:[%s318 + $0x14] sm:$0xf]
      %v927 = vld [vmem:[%s318 + $0x18] sm:$0xff]
      %v928 = vld [vmem:[%s318 + $0x20] sm:$0xf]
      %v929 = vld [vmem:[%s318 + $0x24] sm:$0xff]
      %v930 = vld [vmem:[%s318 + $0x2c] sm:$0xf]
      %v931 = vld [vmem:[%s318 + $0x30] sm:$0xff]
      %v932 = vld [vmem:[%s318 + $0x38] sm:$0xf]
      %v933 = vld [vmem:[%s318 + $0x3c] sm:$0xff]
      %v934 = vld [vmem:[%s318 + $0x44] sm:$0xf]
      %v935 = vld [vmem:[%s318 + $0x48] sm:$0xff]
      %v936 = vld [vmem:[%s318 + $0x50] sm:$0xf]
      %v937 = vld [vmem:[%s318 + $0x54] sm:$0xff]
      %v938 = vld [vmem:[%s318 + $0x5c] sm:$0xf]
      %v955 = vunpack.c.l.b16 %v923
      %v956 = vunpack.c.h.b16 %v923
      %v957 = vunpack.c.l.b16 %v924
      %v958 = vunpack.c.l.b16 %v925
      %v959 = vunpack.c.h.b16 %v925
      %v960 = vunpack.c.l.b16 %v926
      %v961 = vunpack.c.l.b16 %v927
      %v962 = vunpack.c.h.b16 %v927
      %v963 = vunpack.c.l.b16 %v928
      %v964 = vunpack.c.l.b16 %v929
      %v965 = vunpack.c.h.b16 %v929
      %v966 = vunpack.c.l.b16 %v930
      %v967 = vunpack.c.l.b16 %v931
      %v968 = vunpack.c.h.b16 %v931
      %v969 = vunpack.c.l.b16 %v932
      %v970 = vunpack.c.l.b16 %v933
      %v971 = vunpack.c.h.b16 %v933
      %v972 = vunpack.c.l.b16 %v934
      %v973 = vunpack.c.l.b16 %v935
      %v974 = vunpack.c.h.b16 %v935
      %v975 = vunpack.c.l.b16 %v936
      %v976 = vunpack.c.l.b16 %v937
      %v977 = vunpack.c.h.b16 %v937
      %v978 = vunpack.c.l.b16 %v938
      %v979 = vpack.c.b16 %v958, %v955
      %v980 = vpack.c.b16 %v959, %v956
      %v981 = vpack.c.b16 %v960, %v957
      %v982 = vpack.c.b16 %v964, %v961
      %v983 = vpack.c.b16 %v965, %v962
      %v984 = vpack.c.b16 %v966, %v963
      %v985 = vpack.c.b16 %v970, %v967
      %v986 = vpack.c.b16 %v971, %v968
      %v987 = vpack.c.b16 %v972, %v969
      %v988 = vpack.c.b16 %v976, %v973
      %v989 = vpack.c.b16 %v977, %v974
      %v990 = vpack.c.b16 %v978, %v975
      %v1000 = vsel %vm554, %v981, 0
      %v1003 = vsel %vm554, %v984, 0
      %v1006 = vsel %vm554, %v987, 0
      %v1009 = vsel %vm554, %v990, 0
      %1011 = vmatprep.subr.bf16.mxu0 0
      %1012 = vmatpush1.bf16.msra.mxu0 %v525
      %1013 = vmatprep.subr.bf16.mxu0 0
      %1014 = vmatpush1.bf16.msra.mxu0 %v524
      %1015 = vmatprep.subr.bf16.mxu0 0
      %1016 = vmatpush1.bf16.msra.mxu0 %v523
      %1017 = vmatprep.subr.bf16.mxu0 0
      %1018 = vmatpush1.bf16.msra.mxu0 %v522
      %1019 = vmatprep.subr.bf16.mxu0 0
      %1020 = vmatpush1.bf16.msra.mxu0 %v521
      %1021 = vmatprep.subr.bf16.mxu0 0
      %1022 = vmatpush1.bf16.msra.mxu0 %v520
      %1023 = vmatprep.subr.bf16.mxu0 0
      %1024 = vmatpush1.bf16.msra.mxu0 %v519
      %1025 = vmatprep.subr.bf16.mxu0 0
      %1026 = vmatpush1.bf16.msra.mxu0 %v518
      %1027 = vmatprep.subr.bf16.mxu0 0
      %1028 = vmatpush2.bf16.msra.mxu0 %v533
      %1029 = vmatprep.subr.bf16.mxu0 0
      %1030 = vmatpush2.bf16.msra.mxu0 %v532
      %1031 = vmatprep.subr.bf16.mxu0 0
      %1032 = vmatpush2.bf16.msra.mxu0 %v531
      %1033 = vmatprep.subr.bf16.mxu0 0
      %1034 = vmatpush2.bf16.msra.mxu0 %v530
      %1035 = vmatprep.subr.bf16.mxu0 0
      %1036 = vmatpush2.bf16.msra.mxu0 %v529
      %1037 = vmatprep.subr.bf16.mxu0 0
      %1038 = vmatpush2.bf16.msra.mxu0 %v528
      %1039 = vmatprep.subr.bf16.mxu0 0
      %1040 = vmatpush2.bf16.msra.mxu0 %v527
      %1041 = vmatprep.subr.bf16.mxu0 0
      %1042 = vmatpush2.bf16.msra.mxu0 %v526
      %1043 = vmatprep.mubr.bf16.mxu0 %v980
      %1044 = vmatmul.mubr.bf16.gmra.mxu0 %v979
      %v1045 = vpop.f32.mrf.mxu0
      %v1046 = vadd.f32 0.0, %v1045
      %v1047 = vpop.f32.mrf.mxu0
      %v1048 = vpop.f32.mrf.mxu0
      %v1049 = vadd.f32 0.0, %v1048
      %v1050 = vpop.f32.mrf.mxu0
      %1051 = vmatprep.mubr.bf16.mxu0 %v983
      %1052 = vmatmul.mubr.bf16.gmra.mxu0 %v982
      %v1053 = vpop.f32.mrf.mxu0
      %v1054 = vadd.f32 0.0, %v1053
      %v1055 = vpop.f32.mrf.mxu0
      %v1056 = vpop.f32.mrf.mxu0
      %v1057 = vadd.f32 0.0, %v1056
      %v1058 = vpop.f32.mrf.mxu0
      %1059 = vmatprep.mubr.bf16.mxu0 %v986
      %1060 = vmatmul.mubr.bf16.gmra.mxu0 %v985
      %v1061 = vpop.f32.mrf.mxu0
      %v1062 = vadd.f32 0.0, %v1061
      %v1063 = vpop.f32.mrf.mxu0
      %v1064 = vpop.f32.mrf.mxu0
      %v1065 = vadd.f32 0.0, %v1064
      %v1066 = vpop.f32.mrf.mxu0
      %1067 = vmatprep.mubr.bf16.mxu0 %v989
      %1068 = vmatmul.mubr.bf16.gmra.mxu0 %v988
      %v1069 = vpop.f32.mrf.mxu0
      %v1070 = vadd.f32 0.0, %v1069
      %v1071 = vpop.f32.mrf.mxu0
      %v1072 = vpop.f32.mrf.mxu0
      %v1073 = vadd.f32 0.0, %v1072
      %v1074 = vpop.f32.mrf.mxu0
      %1075 = vdwg.mxu0
      %1076 = vmatprep.subr.bf16.mxu0 0
      %1077 = vmatpush1.bf16.msra.mxu0 0
      %1078 = vmatprep.subr.bf16.mxu0 0
      %1079 = vmatpush1.bf16.msra.mxu0 0
      %1080 = vmatprep.subr.bf16.mxu0 0
      %1081 = vmatpush1.bf16.msra.mxu0 0
      %1082 = vmatprep.subr.bf16.mxu0 0
      %1083 = vmatpush1.bf16.msra.mxu0 0
      %1084 = vmatprep.subr.bf16.mxu0 0
      %1085 = vmatpush1.bf16.msra.mxu0 0
      %1086 = vmatprep.subr.bf16.mxu0 0
      %1087 = vmatpush1.bf16.msra.mxu0 0
      %1088 = vmatprep.subr.bf16.mxu0 0
      %1089 = vmatpush1.bf16.msra.mxu0 %v535
      %1090 = vmatprep.subr.bf16.mxu0 0
      %1091 = vmatpush1.bf16.msra.mxu0 %v534
      %1092 = vmatprep.subr.bf16.mxu0 0
      %1093 = vmatpush2.bf16.msra.mxu0 0
      %1094 = vmatprep.subr.bf16.mxu0 0
      %1095 = vmatpush2.bf16.msra.mxu0 0
      %1096 = vmatprep.subr.bf16.mxu0 0
      %1097 = vmatpush2.bf16.msra.mxu0 0
      %1098 = vmatprep.subr.bf16.mxu0 0
      %1099 = vmatpush2.bf16.msra.mxu0 0
      %1100 = vmatprep.subr.bf16.mxu0 0
      %1101 = vmatpush2.bf16.msra.mxu0 0
      %1102 = vmatprep.subr.bf16.mxu0 0
      %1103 = vmatpush2.bf16.msra.mxu0 0
      %1104 = vmatprep.subr.bf16.mxu0 0
      %1105 = vmatpush2.bf16.msra.mxu0 0
      %1106 = vmatprep.subr.bf16.mxu0 0
      %1107 = vmatpush2.bf16.msra.mxu0 0
      %1108 = vmatprep.mubr.bf16.mxu0 0
      %1109 = vmatmul.mubr.bf16.gmra.mxu0 %v1000
      %v1110 = vpop.f32.mrf.mxu0
      %v1111 = vadd.f32 %v1046, %v1110
      %v1112 = vpop.f32.mrf.mxu0
      %v1113 = vpop.f32.mrf.mxu0
      %v1114 = vadd.f32 %v1049, %v1113
      %v1115 = vpop.f32.mrf.mxu0
      %1116 = vmatprep.mubr.bf16.mxu0 0
      %1117 = vmatmul.mubr.bf16.gmra.mxu0 %v1003
      %v1118 = vpop.f32.mrf.mxu0
      %v1119 = vadd.f32 %v1054, %v1118
      %v1120 = vpop.f32.mrf.mxu0
      %v1121 = vpop.f32.mrf.mxu0
      %v1122 = vadd.f32 %v1057, %v1121
      %v1123 = vpop.f32.mrf.mxu0
      %1124 = vmatprep.mubr.bf16.mxu0 0
      %1125 = vmatmul.mubr.bf16.gmra.mxu0 %v1006
      %v1126 = vpop.f32.mrf.mxu0
      %v1127 = vadd.f32 %v1062, %v1126
      %v1128 = vpop.f32.mrf.mxu0
      %v1129 = vpop.f32.mrf.mxu0
      %v1130 = vadd.f32 %v1065, %v1129
      %v1131 = vpop.f32.mrf.mxu0
      %1132 = vmatprep.mubr.bf16.mxu0 0
      %1133 = vmatmul.mubr.bf16.gmra.mxu0 %v1009
      %v1134 = vpop.f32.mrf.mxu0
      %v1135 = vadd.f32 %v1070, %v1134
      %v1136 = vpop.f32.mrf.mxu0
      %v1137 = vpop.f32.mrf.mxu0
      %v1138 = vadd.f32 %v1073, %v1137
      %v1139 = vpop.f32.mrf.mxu0
      %1140 = vdwg.mxu0
      %v1141 = vmax.f32 %v915, %v1111
      %v1142 = vmax.f32 %v916, %v1114
      %v1143 = vmax.f32 %v917, %v1119
      %v1144 = vmax.f32 %v918, %v1122
      %v1145 = vmax.f32 %v919, %v1127
      %v1146 = vmax.f32 %v920, %v1130
      %v1147 = vmax.f32 %v921, %v1135
      %v1148 = vmax.f32 %v922, %v1138
      %v1149 = vld [vmem:[%s325] sm:$0xff]
      %v1150 = vld [vmem:[%s325 + $0x8] sm:$0xf]
      %v1151 = vld [vmem:[%s325 + $0xc] sm:$0xff]
      %v1152 = vld [vmem:[%s325 + $0x14] sm:$0xf]
      %v1153 = vld [vmem:[%s325 + $0x18] sm:$0xff]
      %v1154 = vld [vmem:[%s325 + $0x20] sm:$0xf]
      %v1155 = vld [vmem:[%s325 + $0x24] sm:$0xff]
      %v1156 = vld [vmem:[%s325 + $0x2c] sm:$0xf]
      %v1157 = vld [vmem:[%s325 + $0x30] sm:$0xff]
      %v1158 = vld [vmem:[%s325 + $0x38] sm:$0xf]
      %v1159 = vld [vmem:[%s325 + $0x3c] sm:$0xff]
      %v1160 = vld [vmem:[%s325 + $0x44] sm:$0xf]
      %v1161 = vld [vmem:[%s325 + $0x48] sm:$0xff]
      %v1162 = vld [vmem:[%s325 + $0x50] sm:$0xf]
      %v1163 = vld [vmem:[%s325 + $0x54] sm:$0xff]
      %v1164 = vld [vmem:[%s325 + $0x5c] sm:$0xf]
      %v1181 = vunpack.c.l.b16 %v1149
      %v1182 = vunpack.c.h.b16 %v1149
      %v1183 = vunpack.c.l.b16 %v1150
      %v1184 = vunpack.c.l.b16 %v1151
      %v1185 = vunpack.c.h.b16 %v1151
      %v1186 = vunpack.c.l.b16 %v1152
      %v1187 = vunpack.c.l.b16 %v1153
      %v1188 = vunpack.c.h.b16 %v1153
      %v1189 = vunpack.c.l.b16 %v1154
      %v1190 = vunpack.c.l.b16 %v1155
      %v1191 = vunpack.c.h.b16 %v1155
      %v1192 = vunpack.c.l.b16 %v1156
      %v1193 = vunpack.c.l.b16 %v1157
      %v1194 = vunpack.c.h.b16 %v1157
      %v1195 = vunpack.c.l.b16 %v1158
      %v1196 = vunpack.c.l.b16 %v1159
      %v1197 = vunpack.c.h.b16 %v1159
      %v1198 = vunpack.c.l.b16 %v1160
      %v1199 = vunpack.c.l.b16 %v1161
      %v1200 = vunpack.c.h.b16 %v1161
      %v1201 = vunpack.c.l.b16 %v1162
      %v1202 = vunpack.c.l.b16 %v1163
      %v1203 = vunpack.c.h.b16 %v1163
      %v1204 = vunpack.c.l.b16 %v1164
      %v1205 = vpack.c.b16 %v1184, %v1181
      %v1206 = vpack.c.b16 %v1185, %v1182
      %v1207 = vpack.c.b16 %v1186, %v1183
      %v1208 = vpack.c.b16 %v1190, %v1187
      %v1209 = vpack.c.b16 %v1191, %v1188
      %v1210 = vpack.c.b16 %v1192, %v1189
      %v1211 = vpack.c.b16 %v1196, %v1193
      %v1212 = vpack.c.b16 %v1197, %v1194
      %v1213 = vpack.c.b16 %v1198, %v1195
      %v1214 = vpack.c.b16 %v1202, %v1199
      %v1215 = vpack.c.b16 %v1203, %v1200
      %v1216 = vpack.c.b16 %v1204, %v1201
      %v1226 = vsel %vm554, %v1207, 0
      %v1229 = vsel %vm554, %v1210, 0
      %v1232 = vsel %vm554, %v1213, 0
      %v1235 = vsel %vm554, %v1216, 0
      %1237 = vmatprep.subr.bf16.mxu0 0
      %1238 = vmatpush1.bf16.msra.mxu0 %v525
      %1239 = vmatprep.subr.bf16.mxu0 0
      %1240 = vmatpush1.bf16.msra.mxu0 %v524
      %1241 = vmatprep.subr.bf16.mxu0 0
      %1242 = vmatpush1.bf16.msra.mxu0 %v523
      %1243 = vmatprep.subr.bf16.mxu0 0
      %1244 = vmatpush1.bf16.msra.mxu0 %v522
      %1245 = vmatprep.subr.bf16.mxu0 0
      %1246 = vmatpush1.bf16.msra.mxu0 %v521
      %1247 = vmatprep.subr.bf16.mxu0 0
      %1248 = vmatpush1.bf16.msra.mxu0 %v520
      %1249 = vmatprep.subr.bf16.mxu0 0
      %1250 = vmatpush1.bf16.msra.mxu0 %v519
      %1251 = vmatprep.subr.bf16.mxu0 0
      %1252 = vmatpush1.bf16.msra.mxu0 %v518
      %1253 = vmatprep.subr.bf16.mxu0 0
      %1254 = vmatpush2.bf16.msra.mxu0 %v533
      %1255 = vmatprep.subr.bf16.mxu0 0
      %1256 = vmatpush2.bf16.msra.mxu0 %v532
      %1257 = vmatprep.subr.bf16.mxu0 0
      %1258 = vmatpush2.bf16.msra.mxu0 %v531
      %1259 = vmatprep.subr.bf16.mxu0 0
      %1260 = vmatpush2.bf16.msra.mxu0 %v530
      %1261 = vmatprep.subr.bf16.mxu0 0
      %1262 = vmatpush2.bf16.msra.mxu0 %v529
      %1263 = vmatprep.subr.bf16.mxu0 0
      %1264 = vmatpush2.bf16.msra.mxu0 %v528
      %1265 = vmatprep.subr.bf16.mxu0 0
      %1266 = vmatpush2.bf16.msra.mxu0 %v527
      %1267 = vmatprep.subr.bf16.mxu0 0
      %1268 = vmatpush2.bf16.msra.mxu0 %v526
      %1269 = vmatprep.mubr.bf16.mxu0 %v1206
      %1270 = vmatmul.mubr.bf16.gmra.mxu0 %v1205
      %v1271 = vpop.f32.mrf.mxu0
      %v1272 = vadd.f32 0.0, %v1271
      %v1273 = vpop.f32.mrf.mxu0
      %v1274 = vpop.f32.mrf.mxu0
      %v1275 = vadd.f32 0.0, %v1274
      %v1276 = vpop.f32.mrf.mxu0
      %1277 = vmatprep.mubr.bf16.mxu0 %v1209
      %1278 = vmatmul.mubr.bf16.gmra.mxu0 %v1208
      %v1279 = vpop.f32.mrf.mxu0
      %v1280 = vadd.f32 0.0, %v1279
      %v1281 = vpop.f32.mrf.mxu0
      %v1282 = vpop.f32.mrf.mxu0
      %v1283 = vadd.f32 0.0, %v1282
      %v1284 = vpop.f32.mrf.mxu0
      %1285 = vmatprep.mubr.bf16.mxu0 %v1212
      %1286 = vmatmul.mubr.bf16.gmra.mxu0 %v1211
      %v1287 = vpop.f32.mrf.mxu0
      %v1288 = vadd.f32 0.0, %v1287
      %v1289 = vpop.f32.mrf.mxu0
      %v1290 = vpop.f32.mrf.mxu0
      %v1291 = vadd.f32 0.0, %v1290
      %v1292 = vpop.f32.mrf.mxu0
      %1293 = vmatprep.mubr.bf16.mxu0 %v1215
      %1294 = vmatmul.mubr.bf16.gmra.mxu0 %v1214
      %v1295 = vpop.f32.mrf.mxu0
      %v1296 = vadd.f32 0.0, %v1295
      %v1297 = vpop.f32.mrf.mxu0
      %v1298 = vpop.f32.mrf.mxu0
      %v1299 = vadd.f32 0.0, %v1298
      %v1300 = vpop.f32.mrf.mxu0
      %1301 = vdwg.mxu0
      %1302 = vmatprep.subr.bf16.mxu0 0
      %1303 = vmatpush1.bf16.msra.mxu0 0
      %1304 = vmatprep.subr.bf16.mxu0 0
      %1305 = vmatpush1.bf16.msra.mxu0 0
      %1306 = vmatprep.subr.bf16.mxu0 0
      %1307 = vmatpush1.bf16.msra.mxu0 0
      %1308 = vmatprep.subr.bf16.mxu0 0
      %1309 = vmatpush1.bf16.msra.mxu0 0
      %1310 = vmatprep.subr.bf16.mxu0 0
      %1311 = vmatpush1.bf16.msra.mxu0 0
      %1312 = vmatprep.subr.bf16.mxu0 0
      %1313 = vmatpush1.bf16.msra.mxu0 0
      %1314 = vmatprep.subr.bf16.mxu0 0
      %1315 = vmatpush1.bf16.msra.mxu0 %v535
      %1316 = vmatprep.subr.bf16.mxu0 0
      %1317 = vmatpush1.bf16.msra.mxu0 %v534
      %1318 = vmatprep.subr.bf16.mxu0 0
      %1319 = vmatpush2.bf16.msra.mxu0 0
      %1320 = vmatprep.subr.bf16.mxu0 0
      %1321 = vmatpush2.bf16.msra.mxu0 0
      %1322 = vmatprep.subr.bf16.mxu0 0
      %1323 = vmatpush2.bf16.msra.mxu0 0
      %1324 = vmatprep.subr.bf16.mxu0 0
      %1325 = vmatpush2.bf16.msra.mxu0 0
      %1326 = vmatprep.subr.bf16.mxu0 0
      %1327 = vmatpush2.bf16.msra.mxu0 0
      %1328 = vmatprep.subr.bf16.mxu0 0
      %1329 = vmatpush2.bf16.msra.mxu0 0
      %1330 = vmatprep.subr.bf16.mxu0 0
      %1331 = vmatpush2.bf16.msra.mxu0 0
      %1332 = vmatprep.subr.bf16.mxu0 0
      %1333 = vmatpush2.bf16.msra.mxu0 0
      %1334 = vmatprep.mubr.bf16.mxu0 0
      %1335 = vmatmul.mubr.bf16.gmra.mxu0 %v1226
      %v1336 = vpop.f32.mrf.mxu0
      %v1337 = vadd.f32 %v1272, %v1336
      %v1338 = vpop.f32.mrf.mxu0
      %v1339 = vpop.f32.mrf.mxu0
      %v1340 = vadd.f32 %v1275, %v1339
      %v1341 = vpop.f32.mrf.mxu0
      %1342 = vmatprep.mubr.bf16.mxu0 0
      %1343 = vmatmul.mubr.bf16.gmra.mxu0 %v1229
      %v1344 = vpop.f32.mrf.mxu0
      %v1345 = vadd.f32 %v1280, %v1344
      %v1346 = vpop.f32.mrf.mxu0
      %v1347 = vpop.f32.mrf.mxu0
      %v1348 = vadd.f32 %v1283, %v1347
      %v1349 = vpop.f32.mrf.mxu0
      %1350 = vmatprep.mubr.bf16.mxu0 0
      %1351 = vmatmul.mubr.bf16.gmra.mxu0 %v1232
      %v1352 = vpop.f32.mrf.mxu0
      %v1353 = vadd.f32 %v1288, %v1352
      %v1354 = vpop.f32.mrf.mxu0
      %v1355 = vpop.f32.mrf.mxu0
      %v1356 = vadd.f32 %v1291, %v1355
      %v1357 = vpop.f32.mrf.mxu0
      %1358 = vmatprep.mubr.bf16.mxu0 0
      %1359 = vmatmul.mubr.bf16.gmra.mxu0 %v1235
      %v1360 = vpop.f32.mrf.mxu0
      %v1361 = vadd.f32 %v1296, %v1360
      %v1362 = vpop.f32.mrf.mxu0
      %v1363 = vpop.f32.mrf.mxu0
      %v1364 = vadd.f32 %v1299, %v1363
      %v1365 = vpop.f32.mrf.mxu0
      %1366 = vdwg.mxu0
      %v1367 = vmax.f32 %v1141, %v1337
      %v1368 = vmax.f32 %v1142, %v1340
      %v1369 = vmax.f32 %v1143, %v1345
      %v1370 = vmax.f32 %v1144, %v1348
      %v1371 = vmax.f32 %v1145, %v1353
      %v1372 = vmax.f32 %v1146, %v1356
      %v1373 = vmax.f32 %v1147, %v1361
      %v1374 = vmax.f32 %v1148, %v1364
      %v1375 = vld [vmem:[%s5] sm:$0x1]
      %v1377 = vlaneseq
      %v1378 = vshrl.u32 %v1377, 7
      %v1379 = vsub.s32 0, %v1378
      %v1380 = vrot.slane %v1375, %v1379
      %v1382 = vadd.f32 %v1367, %v1380
      %v1383 = vadd.f32 %v1368, %v1380
      %v1384 = vadd.f32 %v1369, %v1380
      %v1385 = vadd.f32 %v1370, %v1380
      %v1386 = vadd.f32 %v1371, %v1380
      %v1387 = vadd.f32 %v1372, %v1380
      %v1388 = vadd.f32 %v1373, %v1380
      %v1389 = vadd.f32 %v1374, %v1380
      %v1390 = vmax.f32 %v1382, 0.0
      %v1391 = vmax.f32 %v1383, 0.0
      %v1392 = vmax.f32 %v1384, 0.0
      %v1393 = vmax.f32 %v1385, 0.0
      %v1394 = vmax.f32 %v1386, 0.0
      %v1395 = vmax.f32 %v1387, 0.0
      %v1396 = vmax.f32 %v1388, 0.0
      %v1397 = vmax.f32 %v1389, 0.0
      %vm1398 = vcmask 523264
      %1399 = vst.msk [vmem:[%s331] sm:$0xff] %vm1398, %v1390
      %1400 = vst.msk [vmem:[%s331 + $0x8] sm:$0xff] %vm1398, %v1391
      %1401 = vst.msk [vmem:[%s331 + $0x10] sm:$0xff] %vm1398, %v1392
      %1402 = vst.msk [vmem:[%s331 + $0x18] sm:$0xff] %vm1398, %v1393
      %1403 = vst.msk [vmem:[%s331 + $0x20] sm:$0xff] %vm1398, %v1394
      %1404 = vst.msk [vmem:[%s331 + $0x28] sm:$0xff] %vm1398, %v1395
      %1405 = vst.msk [vmem:[%s331 + $0x30] sm:$0xff] %vm1398, %v1396
      %1406 = vst.msk [vmem:[%s331 + $0x38] sm:$0xff] %vm1398, %v1397
      %s1407 = smul.u32 8, %s17
      %p1408 = scmp.lt.s32.totalorder %s1407, 15
      %s1409 = scalar_select %p1408, %s1407, 15
      %s1410 = smul.addr %s1409, 8
      %s1411 = scalar_lea.vmem %s6, %s1410
      // Predicated region
      $region45: #{simple_cnn_forward.6} parent=43 // pred_check
        %p1412 = pneg %p181
      $region46: #{simple_cnn_forward.6} parent=43 // pred_check_branch
        %1414 = sbr.rel (%p1412) target = $region48
      $region47: #{simple_cnn_forward.6} parent=43 // pred_region
        %s1415 = smul.u32 8, %s17
      $region48: #{simple_cnn_forward.6} parent=43 // pred_fallthru
        _
    $region44: #{simple_cnn_forward.6} parent=5 // pred_fallthru
      _
    %p1416 = scmp.le.s32.totalorder 2, %s12
    // Predicated region
    $region49: #{simple_cnn_forward.6} parent=5 // pred_check
      %p1417 = pneg %p1416
    $region50: #{simple_cnn_forward.6} parent=5 // pred_check_branch
      %1419 = sbr.rel (%p1417) target = $region52
    $region51: #{simple_cnn_forward.6} parent=5 // pred_region
      %s1420 = ssub.s32 %s12, 2
      // Predicated region
      $region53: #{simple_cnn_forward.6} parent=51 // pred_check
        %p1421 = pneg %p187
      $region54: #{simple_cnn_forward.6} parent=51 // pred_check_branch
        %1423 = sbr.rel (%p1421) target = $region56
      $region55: #{simple_cnn_forward.6} parent=51 // pred_region
        %s1424 = smul.u32 8, %s18
        %p1425 = scmp.lt.s32.totalorder %s1424, 15
        %s1426 = scalar_select %p1425, %s1424, 15
        %s1427 = smul.addr %s1426, 8
        %s1428 = scalar_lea.vmem %s6, %s1427
      $region56: #{simple_cnn_forward.6} parent=51 // pred_fallthru
        _
    $region52: #{simple_cnn_forward.6} parent=5 // pred_fallthru
      _
  $region6: #{simple_cnn_forward.6} parent=0 // loop_footer
    %s16 = sadd.s32 1, %s12
  $region7: #{simple_cnn_forward.6} parent=0 // loop_footer_branch
    %11 = sbr.rel target = $region3
  $region8: #{simple_cnn_forward.6} parent=0 // loop_exit
    _

// kernel: simple_cnn_forward.7
$region0: #{simple_cnn_forward.7}
  #allocation0 [shape = 'u32[]', space=smem, size = 0x4, offset = 0x4, fixed_abs, tag = 'smem constant byte address 0x4 - core index']
  #allocation1 [shape = 'u32[144,128]{1,0:T(1,128)}', space=vmem, size = 0x12000, scoped, tag = 'internal scratch']
  %s0 = inlined_call_operand.vmem [shape: bf16[32,576], index: 0, kind: input, shape index: {}]
  %s1 = inlined_call_operand.vmem [shape: bf16[32,576], index: 1, kind: input, shape index: {}]
  %s2 = inlined_call_operand.vmem [shape: bf16[32,576], index: 2, kind: input, shape index: {}]
  %s3 = inlined_call_operand.vmem [shape: bf16[32,576], index: 3, kind: input, shape index: {}]
  %s4 = inlined_call_operand.vmem [shape: bf16[576,128], index: 4, kind: input, shape index: {}]
  %s5 = inlined_call_operand.vmem [shape: f32[1,128], index: 5, kind: input, shape index: {}]
  %s6 = inlined_call_operand.vmem [shape: f32[32,128], index: 6, kind: output, shape index: {}]
  %s7 = sld [smem:[#allocation0]]
  $region57: #{simple_cnn_forward.7} parent=0
    _
  %s9 = ssub.s32 1, %s7
  %s10 = scalar_select 0, %s9, %s7
  loop: start=0, step=1, limit=4
  $region2: #{simple_cnn_forward.7} parent=0 // loop_pre_header
    _
  $region3: #{simple_cnn_forward.7} parent=0 // loop_header
    %s12 = sphi 0, %s16
    %p13 = scmp.ge.s32.totalorder %s12, 4
    %s22 = sphi 0, %s24
    %s25 = sphi 0, %s22
    %s26 = sphi 0, %s25
    %s42 = sphi 0, %s26
    %s48 = sphi 0, %s50
    %s51 = sphi 0, %s48
    %s52 = sphi 0, %s51
    %s68 = sphi 0, %s52
    %s74 = sphi 0, %s76
    %s77 = sphi 0, %s74
    %s78 = sphi 0, %s77
    %s94 = sphi 0, %s78
    %s100 = sphi 0, %s102
    %s103 = sphi 0, %s100
    %s104 = sphi 0, %s103
    %s120 = sphi 0, %s104
    %s124 = sphi 0, %s124
    %s126 = sphi 0, %s124
    %s127 = sphi 0, %s126
    %s141 = sphi 0, %s127
    %s145 = sphi 0, %s145
    %s147 = sphi 0, %s145
    %s148 = sphi 0, %s147
    %s162 = sphi 0, %s148
    %s168 = sphi 0, %s170
    %s171 = sphi 0, %s168
    %s172 = sphi 0, %s171
    %s188 = sphi 0, %s172
  $region4: #{simple_cnn_forward.7} parent=0 // loop_header_branch
    %15 = sbr.rel (%p13) target = $region8
  $region5: #{simple_cnn_forward.7} parent=0 // loop_body
    %s17 = ssub.s32 %s12, 1
    %s18 = ssub.s32 %s12, 2
    %s19 = sadd.s32 %s12, 1
    %s20 = ssub.s32 %s12, %s19
    %p21 = scmp.eq.s32.totalorder %s20, 0
    %s23 = sadd.s32 %s22, 1
    %s24 = scalar_select %p21, %s22, %s23
    %p27 = pneg %p21
    %p28 = scmp.eq.s32.totalorder %s12, 1
    %p29 = por %p27, %p28
    %p30 = scmp.ne.s32.totalorder %s22, %s25
    %p31 = scmp.eq.s32.totalorder %s12, 0
    %p32 = por %p30, %p31
    %p33 = scmp.ne.s32.totalorder %s22, %s25
    %p34 = scmp.eq.s32.totalorder %s17, 1
    %p35 = por %p33, %p34
    %p36 = scmp.ne.s32.totalorder %s25, %s26
    %p37 = scmp.eq.s32.totalorder %s17, 0
    %p38 = por %p36, %p37
    %p39 = scmp.ne.s32.totalorder %s25, %s26
    %p40 = scmp.eq.s32.totalorder %s18, 1
    %p41 = por %p39, %p40
    %p43 = scmp.ne.s32.totalorder %s26, %s42
    %p44 = scmp.eq.s32.totalorder %s18, 0
    %p45 = por %p43, %p44
    %s46 = ssub.s32 %s12, %s19
    %p47 = scmp.eq.s32.totalorder %s46, 0
    %s49 = sadd.s32 %s48, 1
    %s50 = scalar_select %p47, %s48, %s49
    %p53 = pneg %p47
    %p54 = scmp.eq.s32.totalorder %s12, 1
    %p55 = por %p53, %p54
    %p56 = scmp.ne.s32.totalorder %s48, %s51
    %p57 = scmp.eq.s32.totalorder %s12, 0
    %p58 = por %p56, %p57
    %p59 = scmp.ne.s32.totalorder %s48, %s51
    %p60 = scmp.eq.s32.totalorder %s17, 1
    %p61 = por %p59, %p60
    %p62 = scmp.ne.s32.totalorder %s51, %s52
    %p63 = scmp.eq.s32.totalorder %s17, 0
    %p64 = por %p62, %p63
    %p65 = scmp.ne.s32.totalorder %s51, %s52
    %p66 = scmp.eq.s32.totalorder %s18, 1
    %p67 = por %p65, %p66
    %p69 = scmp.ne.s32.totalorder %s52, %s68
    %p70 = scmp.eq.s32.totalorder %s18, 0
    %p71 = por %p69, %p70
    %s72 = ssub.s32 %s12, %s19
    %p73 = scmp.eq.s32.totalorder %s72, 0
    %s75 = sadd.s32 %s74, 1
    %s76 = scalar_select %p73, %s74, %s75
    %p79 = pneg %p73
    %p80 = scmp.eq.s32.totalorder %s12, 1
    %p81 = por %p79, %p80
    %p82 = scmp.ne.s32.totalorder %s74, %s77
    %p83 = scmp.eq.s32.totalorder %s12, 0
    %p84 = por %p82, %p83
    %p85 = scmp.ne.s32.totalorder %s74, %s77
    %p86 = scmp.eq.s32.totalorder %s17, 1
    %p87 = por %p85, %p86
    %p88 = scmp.ne.s32.totalorder %s77, %s78
    %p89 = scmp.eq.s32.totalorder %s17, 0
    %p90 = por %p88, %p89
    %p91 = scmp.ne.s32.totalorder %s77, %s78
    %p92 = scmp.eq.s32.totalorder %s18, 1
    %p93 = por %p91, %p92
    %p95 = scmp.ne.s32.totalorder %s78, %s94
    %p96 = scmp.eq.s32.totalorder %s18, 0
    %p97 = por %p95, %p96
    %s98 = ssub.s32 %s12, %s19
    %p99 = scmp.eq.s32.totalorder %s98, 0
    %s101 = sadd.s32 %s100, 1
    %s102 = scalar_select %p99, %s100, %s101
    %p105 = pneg %p99
    %p106 = scmp.eq.s32.totalorder %s12, 1
    %p107 = por %p105, %p106
    %p108 = scmp.ne.s32.totalorder %s100, %s103
    %p109 = scmp.eq.s32.totalorder %s12, 0
    %p110 = por %p108, %p109
    %p111 = scmp.ne.s32.totalorder %s100, %s103
    %p112 = scmp.eq.s32.totalorder %s17, 1
    %p113 = por %p111, %p112
    %p114 = scmp.ne.s32.totalorder %s103, %s104
    %p115 = scmp.eq.s32.totalorder %s17, 0
    %p116 = por %p114, %p115
    %p117 = scmp.ne.s32.totalorder %s103, %s104
    %p118 = scmp.eq.s32.totalorder %s18, 1
    %p119 = por %p117, %p118
    %p121 = scmp.ne.s32.totalorder %s104, %s120
    %p122 = scmp.eq.s32.totalorder %s18, 0
    %p123 = por %p121, %p122
    %s125 = sadd.s32 %s124, 1
    %p128 = scmp.eq.s32.totalorder %s12, 1
    %p129 = scmp.ne.s32.totalorder %s124, %s126
    %p130 = scmp.eq.s32.totalorder %s12, 0
    %p131 = por %p129, %p130
    %p132 = scmp.ne.s32.totalorder %s124, %s126
    %p133 = scmp.eq.s32.totalorder %s17, 1
    %p134 = por %p132, %p133
    %p135 = scmp.ne.s32.totalorder %s126, %s127
    %p136 = scmp.eq.s32.totalorder %s17, 0
    %p137 = por %p135, %p136
    %p138 = scmp.ne.s32.totalorder %s126, %s127
    %p139 = scmp.eq.s32.totalorder %s18, 1
    %p140 = por %p138, %p139
    %p142 = scmp.ne.s32.totalorder %s127, %s141
    %p143 = scmp.eq.s32.totalorder %s18, 0
    %p144 = por %p142, %p143
    %s146 = sadd.s32 %s145, 1
    %p149 = scmp.eq.s32.totalorder %s12, 1
    %p150 = scmp.ne.s32.totalorder %s145, %s147
    %p151 = scmp.eq.s32.totalorder %s12, 0
    %p152 = por %p150, %p151
    %p153 = scmp.ne.s32.totalorder %s145, %s147
    %p154 = scmp.eq.s32.totalorder %s17, 1
    %p155 = por %p153, %p154
    %p156 = scmp.ne.s32.totalorder %s147, %s148
    %p157 = scmp.eq.s32.totalorder %s17, 0
    %p158 = por %p156, %p157
    %p159 = scmp.ne.s32.totalorder %s147, %s148
    %p160 = scmp.eq.s32.totalorder %s18, 1
    %p161 = por %p159, %p160
    %p163 = scmp.ne.s32.totalorder %s148, %s162
    %p164 = scmp.eq.s32.totalorder %s18, 0
    %p165 = por %p163, %p164
    %s166 = ssub.s32 %s12, %s19
    %p167 = scmp.eq.s32.totalorder %s166, 0
    %s169 = sadd.s32 %s168, 1
    %s170 = scalar_select %p167, %s168, %s169
    %p173 = pneg %p167
    %p174 = scmp.eq.s32.totalorder %s12, 1
    %p175 = por %p173, %p174
    %p176 = scmp.ne.s32.totalorder %s168, %s171
    %p177 = scmp.eq.s32.totalorder %s12, 0
    %p178 = por %p176, %p177
    %p179 = scmp.ne.s32.totalorder %s168, %s171
    %p180 = scmp.eq.s32.totalorder %s17, 1
    %p181 = por %p179, %p180
    %p182 = scmp.ne.s32.totalorder %s171, %s172
    %p183 = scmp.eq.s32.totalorder %s17, 0
    %p184 = por %p182, %p183
    %p185 = scmp.ne.s32.totalorder %s171, %s172
    %p186 = scmp.eq.s32.totalorder %s18, 1
    %p187 = por %p185, %p186
    %p189 = scmp.ne.s32.totalorder %s172, %s188
    %p190 = scmp.eq.s32.totalorder %s18, 0
    %p191 = por %p189, %p190
    %p192 = scmp.le.s32.totalorder 1, %s12
    %p193 = scmp.lt.s32.totalorder %s12, 3
    %p194 = pnand %p192, %p193
    %p195 = pneg %p194
    // Predicated region
    $region9: #{simple_cnn_forward.7} parent=5 // pred_check
      _
    $region10: #{simple_cnn_forward.7} parent=5 // pred_check_branch
      %197 = sbr.rel (%p194) target = $region12
    $region11: #{simple_cnn_forward.7} parent=5 // pred_region
      %s198 = ssub.s32 %s12, 1
      // Predicated region
      $region13: #{simple_cnn_forward.7} parent=11 // pred_check
        %p199 = pneg %p137
      $region14: #{simple_cnn_forward.7} parent=11 // pred_check_branch
        %201 = sbr.rel (%p199) target = $region16
      $region15: #{simple_cnn_forward.7} parent=11 // pred_region
        _
      $region16: #{simple_cnn_forward.7} parent=11 // pred_fallthru
        _
      // Predicated region
      $region17: #{simple_cnn_forward.7} parent=11 // pred_check
        %p202 = pneg %p158
      $region18: #{simple_cnn_forward.7} parent=11 // pred_check_branch
        %204 = sbr.rel (%p202) target = $region20
      $region19: #{simple_cnn_forward.7} parent=11 // pred_region
        _
      $region20: #{simple_cnn_forward.7} parent=11 // pred_fallthru
        _
    $region12: #{simple_cnn_forward.7} parent=5 // pred_fallthru
      _
    %p205 = scmp.lt.s32.totalorder %s12, 2
    // Predicated region
    $region21: #{simple_cnn_forward.7} parent=5 // pred_check
      %p206 = pneg %p205
    $region22: #{simple_cnn_forward.7} parent=5 // pred_check_branch
      %208 = sbr.rel (%p206) target = $region24
    $region23: #{simple_cnn_forward.7} parent=5 // pred_region
      // Predicated region
      $region25: #{simple_cnn_forward.7} parent=23 // pred_check
        %p209 = pneg %p32
      $region26: #{simple_cnn_forward.7} parent=23 // pred_check_branch
        %211 = sbr.rel (%p209) target = $region28
      $region27: #{simple_cnn_forward.7} parent=23 // pred_region
        %s212 = smul.u32 2, %s12
        %p213 = scmp.lt.s32.totalorder %s212, 3
        %s214 = scalar_select %p213, %s212, 3
        %s215 = smul.addr %s214, 5
        %s216 = smul.addr %s215, 4
        %s217 = scalar_lea.vmem %s0, %s216
        %s218 = smul.u32 2, %s12
      $region28: #{simple_cnn_forward.7} parent=23 // pred_fallthru
        _
      // Predicated region
      $region29: #{simple_cnn_forward.7} parent=23 // pred_check
        %p219 = pneg %p58
      $region30: #{simple_cnn_forward.7} parent=23 // pred_check_branch
        %221 = sbr.rel (%p219) target = $region32
      $region31: #{simple_cnn_forward.7} parent=23 // pred_region
        %s222 = smul.u32 2, %s12
        %p223 = scmp.lt.s32.totalorder %s222, 3
        %s224 = scalar_select %p223, %s222, 3
        %s225 = smul.addr %s224, 5
        %s226 = smul.addr %s225, 4
        %s227 = scalar_lea.vmem %s1, %s226
        %s228 = smul.u32 2, %s12
      $region32: #{simple_cnn_forward.7} parent=23 // pred_fallthru
        _
      // Predicated region
      $region33: #{simple_cnn_forward.7} parent=23 // pred_check
        %p229 = pneg %p84
      $region34: #{simple_cnn_forward.7} parent=23 // pred_check_branch
        %231 = sbr.rel (%p229) target = $region36
      $region35: #{simple_cnn_forward.7} parent=23 // pred_region
        %s232 = smul.u32 2, %s12
        %p233 = scmp.lt.s32.totalorder %s232, 3
        %s234 = scalar_select %p233, %s232, 3
        %s235 = smul.addr %s234, 5
        %s236 = smul.addr %s235, 4
        %s237 = scalar_lea.vmem %s2, %s236
        %s238 = smul.u32 2, %s12
      $region36: #{simple_cnn_forward.7} parent=23 // pred_fallthru
        _
      // Predicated region
      $region37: #{simple_cnn_forward.7} parent=23 // pred_check
        %p239 = pneg %p110
      $region38: #{simple_cnn_forward.7} parent=23 // pred_check_branch
        %241 = sbr.rel (%p239) target = $region40
      $region39: #{simple_cnn_forward.7} parent=23 // pred_region
        %s242 = smul.u32 2, %s12
        %p243 = scmp.lt.s32.totalorder %s242, 3
        %s244 = scalar_select %p243, %s242, 3
        %s245 = smul.addr %s244, 5
        %s246 = smul.addr %s245, 4
        %s247 = scalar_lea.vmem %s3, %s246
        %s248 = smul.u32 2, %s12
      $region40: #{simple_cnn_forward.7} parent=23 // pred_fallthru
        _
    $region24: #{simple_cnn_forward.7} parent=5 // pred_fallthru
      _
    %p249 = scmp.le.s32.totalorder 1, %s12
    %p250 = scmp.lt.s32.totalorder %s12, 3
    %p251 = pnand %p249, %p250
    %p252 = pneg %p251
    // Predicated region
    $region41: #{simple_cnn_forward.7} parent=5 // pred_check
      _
    $region42: #{simple_cnn_forward.7} parent=5 // pred_check_branch
      %254 = sbr.rel (%p251) target = $region44
    $region43: #{simple_cnn_forward.7} parent=5 // pred_region
      %s255 = ssub.s32 %s12, 1
      %s256 = smul.u32 2, %s17
      %p257 = scmp.lt.s32.totalorder %s256, 3
      %s258 = scalar_select %p257, %s256, 3
      %s259 = smul.addr %s258, 5
      %s260 = smul.addr %s259, 4
      %s261 = scalar_lea.vmem %s0, %s260
      %p262 = pneg %p38
      %p263 = pneg %p35
      %s264 = smul.u32 2, %s17
      %p265 = scmp.lt.s32.totalorder %s264, 3
      %s266 = scalar_select %p265, %s264, 3
      %s267 = smul.addr %s266, 5
      %s268 = smul.addr %s267, 4
      %s269 = scalar_lea.vmem %s1, %s268
      %p270 = pneg %p64
      %p271 = pneg %p61
      %s272 = smul.u32 2, %s17
      %p273 = scmp.lt.s32.totalorder %s272, 3
      %s274 = scalar_select %p273, %s272, 3
      %s275 = smul.addr %s274, 5
      %s276 = smul.addr %s275, 4
      %s277 = scalar_lea.vmem %s2, %s276
      %p278 = pneg %p90
      %p279 = pneg %p87
      %s280 = smul.u32 2, %s17
      %p281 = scmp.lt.s32.totalorder %s280, 3
      %s282 = scalar_select %p281, %s280, 3
      %s283 = smul.addr %s282, 5
      %s284 = smul.addr %s283, 4
      %s285 = scalar_lea.vmem %s3, %s284
      %p286 = pneg %p116
      %p287 = pneg %p113
      %p288 = pneg %p137
      %p289 = pneg %p134
      %p290 = pneg %p158
      %p291 = pneg %p155
      %p292 = pneg %p184
      %p293 = pneg %p181
      %s294 = smul.u32 2, %s17
      %p295 = scmp.lt.s32.totalorder %s294, 3
      %s296 = scalar_select %p295, %s294, 3
      %s297 = smul.addr %s296, 8
      %s298 = scalar_lea.vmem %s6, %s297
      %s299 = smul.u32 2, %s17
      %p300 = scmp.lt.s32.totalorder %s299, 3
      %s301 = scalar_select %p300, %s299, 3
      %s302 = smul.addr %s301, 5
      %s303 = smul.addr %s302, 4
      %s304 = scalar_lea.vmem %s0, %s303
      %s305 = smul.u32 2, %s17
      %s306 = smul.u32 2, %s17
      %p307 = scmp.lt.s32.totalorder %s306, 3
      %s308 = scalar_select %p307, %s306, 3
      %s309 = smul.addr %s308, 5
      %s310 = smul.addr %s309, 4
      %s311 = scalar_lea.vmem %s1, %s310
      %s312 = smul.u32 2, %s17
      %s313 = smul.u32 2, %s17
      %p314 = scmp.lt.s32.totalorder %s313, 3
      %s315 = scalar_select %p314, %s313, 3
      %s316 = smul.addr %s315, 5
      %s317 = smul.addr %s316, 4
      %s318 = scalar_lea.vmem %s2, %s317
      %s319 = smul.u32 2, %s17
      %s320 = smul.u32 2, %s17
      %p321 = scmp.lt.s32.totalorder %s320, 3
      %s322 = scalar_select %p321, %s320, 3
      %s323 = smul.addr %s322, 5
      %s324 = smul.addr %s323, 4
      %s325 = scalar_lea.vmem %s3, %s324
      %s326 = smul.u32 2, %s17
      %s327 = smul.u32 2, %s17
      %p328 = scmp.lt.s32.totalorder %s327, 3
      %s329 = scalar_select %p328, %s327, 3
      %s330 = smul.addr %s329, 8
      %s331 = scalar_lea.vmem %s6, %s330
      %s332 = smul.u32 2, %s17
      %v334 = vld [vmem:[%s4] sm:$0xf]
      %v335 = vld [vmem:[%s4 + $0x4] sm:$0xf]
      %v336 = vld [vmem:[%s4 + $0x8] sm:$0xf]
      %v337 = vld [vmem:[%s4 + $0xc] sm:$0xf]
      %v338 = vld [vmem:[%s4 + $0x10] sm:$0xf]
      %v339 = vld [vmem:[%s4 + $0x14] sm:$0xf]
      %v340 = vld [vmem:[%s4 + $0x18] sm:$0xf]
      %v341 = vld [vmem:[%s4 + $0x1c] sm:$0xf]
      %v342 = vld [vmem:[%s4 + $0x20] sm:$0xf]
      %v343 = vld [vmem:[%s4 + $0x24] sm:$0xf]
      %v344 = vld [vmem:[%s4 + $0x28] sm:$0xf]
      %v345 = vld [vmem:[%s4 + $0x2c] sm:$0xf]
      %v346 = vld [vmem:[%s4 + $0x30] sm:$0xf]
      %v347 = vld [vmem:[%s4 + $0x34] sm:$0xf]
      %v348 = vld [vmem:[%s4 + $0x38] sm:$0xf]
      %v349 = vld [vmem:[%s4 + $0x3c] sm:$0xf]
      %v350 = vld [vmem:[%s4 + $0x40] sm:$0xf]
      %v351 = vld [vmem:[%s4 + $0x44] sm:$0xf]
      %v352 = vld [vmem:[%s4 + $0x48] sm:$0xf]
      %v353 = vld [vmem:[%s4 + $0x4c] sm:$0xf]
      %v354 = vld [vmem:[%s4 + $0x50] sm:$0xf]
      %v355 = vld [vmem:[%s4 + $0x54] sm:$0xf]
      %v356 = vld [vmem:[%s4 + $0x58] sm:$0xf]
      %v357 = vld [vmem:[%s4 + $0x5c] sm:$0xf]
      %v358 = vld [vmem:[%s4 + $0x60] sm:$0xf]
      %v359 = vld [vmem:[%s4 + $0x64] sm:$0xf]
      %v360 = vld [vmem:[%s4 + $0x68] sm:$0xf]
      %v361 = vld [vmem:[%s4 + $0x6c] sm:$0xf]
      %v362 = vld [vmem:[%s4 + $0x70] sm:$0xf]
      %v363 = vld [vmem:[%s4 + $0x74] sm:$0xf]
      %v364 = vld [vmem:[%s4 + $0x78] sm:$0xf]
      %v365 = vld [vmem:[%s4 + $0x7c] sm:$0xf]
      %v366 = vld [vmem:[%s4 + $0x80] sm:$0xf]
      %v367 = vld [vmem:[%s4 + $0x84] sm:$0xf]
      %v368 = vld [vmem:[%s4 + $0x88] sm:$0xf]
      %v369 = vld [vmem:[%s4 + $0x8c] sm:$0xf]
      %v370 = vld [vmem:[%s4 + $0x90] sm:$0xf]
      %v371 = vld [vmem:[%s4 + $0x94] sm:$0xf]
      %v372 = vld [vmem:[%s4 + $0x98] sm:$0xf]
      %v373 = vld [vmem:[%s4 + $0x9c] sm:$0xf]
      %v374 = vld [vmem:[%s4 + $0xa0] sm:$0xf]
      %v375 = vld [vmem:[%s4 + $0xa4] sm:$0xf]
      %v376 = vld [vmem:[%s4 + $0xa8] sm:$0xf]
      %v377 = vld [vmem:[%s4 + $0xac] sm:$0xf]
      %v378 = vld [vmem:[%s4 + $0xb0] sm:$0xf]
      %v379 = vld [vmem:[%s4 + $0xb4] sm:$0xf]
      %v380 = vld [vmem:[%s4 + $0xb8] sm:$0xf]
      %v381 = vld [vmem:[%s4 + $0xbc] sm:$0xf]
      %v382 = vld [vmem:[%s4 + $0xc0] sm:$0xf]
      %v383 = vld [vmem:[%s4 + $0xc4] sm:$0xf]
      %v384 = vld [vmem:[%s4 + $0xc8] sm:$0xf]
      %v385 = vld [vmem:[%s4 + $0xcc] sm:$0xf]
      %v386 = vld [vmem:[%s4 + $0xd0] sm:$0xf]
      %v387 = vld [vmem:[%s4 + $0xd4] sm:$0xf]
      %v388 = vld [vmem:[%s4 + $0xd8] sm:$0xf]
      %v389 = vld [vmem:[%s4 + $0xdc] sm:$0xf]
      %v390 = vld [vmem:[%s4 + $0xe0] sm:$0xf]
      %v391 = vld [vmem:[%s4 + $0xe4] sm:$0xf]
      %v392 = vld [vmem:[%s4 + $0xe8] sm:$0xf]
      %v393 = vld [vmem:[%s4 + $0xec] sm:$0xf]
      %v394 = vld [vmem:[%s4 + $0xf0] sm:$0xf]
      %v395 = vld [vmem:[%s4 + $0xf4] sm:$0xf]
      %v396 = vld [vmem:[%s4 + $0xf8] sm:$0xf]
      %v397 = vld [vmem:[%s4 + $0xfc] sm:$0xf]
      %v398 = vld [vmem:[%s4 + $0x100] sm:$0xf]
      %v399 = vld [vmem:[%s4 + $0x104] sm:$0xf]
      %v400 = vld [vmem:[%s4 + $0x108] sm:$0xf]
      %v401 = vld [vmem:[%s4 + $0x10c] sm:$0xf]
      %v402 = vld [vmem:[%s4 + $0x110] sm:$0xf]
      %v403 = vld [vmem:[%s4 + $0x114] sm:$0xf]
      %v404 = vld [vmem:[%s4 + $0x118] sm:$0xf]
      %v405 = vld [vmem:[%s4 + $0x11c] sm:$0xf]
      %v406 = vld [vmem:[%s304] sm:$0xff]
      %v407 = vld [vmem:[%s304 + $0x8] sm:$0xff]
      %v408 = vld [vmem:[%s304 + $0x10] sm:$0xf]
      %v409 = vld [vmem:[%s304 + $0x14] sm:$0xff]
      %v410 = vld [vmem:[%s304 + $0x1c] sm:$0xff]
      %v411 = vld [vmem:[%s304 + $0x24] sm:$0xf]
      %v418 = vunpack.c.l.b16 %v406
      %v419 = vunpack.c.h.b16 %v406
      %v420 = vunpack.c.l.b16 %v407
      %v421 = vunpack.c.h.b16 %v407
      %v422 = vunpack.c.l.b16 %v408
      %v423 = vunpack.c.l.b16 %v409
      %v424 = vunpack.c.h.b16 %v409
      %v425 = vunpack.c.l.b16 %v410
      %v426 = vunpack.c.h.b16 %v410
      %v427 = vunpack.c.l.b16 %v411
      %v428 = vpack.c.b16 %v423, %v418
      %v429 = vpack.c.b16 %v424, %v419
      %v430 = vpack.c.b16 %v425, %v420
      %v431 = vpack.c.b16 %v426, %v421
      %v432 = vpack.c.b16 %v427, %v422
      %v509 = vunpack.c.l.b16 %v334
      %v510 = vunpack.c.l.b16 %v335
      %v511 = vunpack.c.l.b16 %v336
      %v512 = vunpack.c.l.b16 %v337
      %v513 = vunpack.c.l.b16 %v338
      %v514 = vunpack.c.l.b16 %v339
      %v515 = vunpack.c.l.b16 %v340
      %v516 = vunpack.c.l.b16 %v341
      %v517 = vunpack.c.l.b16 %v342
      %v518 = vunpack.c.l.b16 %v343
      %v519 = vunpack.c.l.b16 %v344
      %v520 = vunpack.c.l.b16 %v345
      %v521 = vunpack.c.l.b16 %v346
      %v522 = vunpack.c.l.b16 %v347
      %v523 = vunpack.c.l.b16 %v348
      %v524 = vunpack.c.l.b16 %v349
      %v525 = vunpack.c.l.b16 %v350
      %v526 = vunpack.c.l.b16 %v351
      %v527 = vunpack.c.l.b16 %v352
      %v528 = vunpack.c.l.b16 %v353
      %v529 = vunpack.c.l.b16 %v354
      %v530 = vunpack.c.l.b16 %v355
      %v531 = vunpack.c.l.b16 %v356
      %v532 = vunpack.c.l.b16 %v357
      %v533 = vunpack.c.l.b16 %v358
      %v534 = vunpack.c.l.b16 %v359
      %v535 = vunpack.c.l.b16 %v360
      %v536 = vunpack.c.l.b16 %v361
      %v537 = vunpack.c.l.b16 %v362
      %v538 = vunpack.c.l.b16 %v363
      %v539 = vunpack.c.l.b16 %v364
      %v540 = vunpack.c.l.b16 %v365
      %v541 = vunpack.c.l.b16 %v366
      %v542 = vunpack.c.l.b16 %v367
      %v543 = vunpack.c.l.b16 %v368
      %v544 = vunpack.c.l.b16 %v369
      %v545 = vunpack.c.l.b16 %v370
      %v546 = vunpack.c.l.b16 %v371
      %v547 = vunpack.c.l.b16 %v372
      %v548 = vunpack.c.l.b16 %v373
      %v549 = vunpack.c.l.b16 %v374
      %v550 = vunpack.c.l.b16 %v375
      %v551 = vunpack.c.l.b16 %v376
      %v552 = vunpack.c.l.b16 %v377
      %v553 = vunpack.c.l.b16 %v378
      %v554 = vunpack.c.l.b16 %v379
      %v555 = vunpack.c.l.b16 %v380
      %v556 = vunpack.c.l.b16 %v381
      %v557 = vunpack.c.l.b16 %v382
      %v558 = vunpack.c.l.b16 %v383
      %v559 = vunpack.c.l.b16 %v384
      %v560 = vunpack.c.l.b16 %v385
      %v561 = vunpack.c.l.b16 %v386
      %v562 = vunpack.c.l.b16 %v387
      %v563 = vunpack.c.l.b16 %v388
      %v564 = vunpack.c.l.b16 %v389
      %v565 = vunpack.c.l.b16 %v390
      %v566 = vunpack.c.l.b16 %v391
      %v567 = vunpack.c.l.b16 %v392
      %v568 = vunpack.c.l.b16 %v393
      %v569 = vunpack.c.l.b16 %v394
      %v570 = vunpack.c.l.b16 %v395
      %v571 = vunpack.c.l.b16 %v396
      %v572 = vunpack.c.l.b16 %v397
      %v573 = vunpack.c.l.b16 %v398
      %v574 = vunpack.c.l.b16 %v399
      %v575 = vunpack.c.l.b16 %v400
      %v576 = vunpack.c.l.b16 %v401
      %v577 = vunpack.c.l.b16 %v402
      %v578 = vunpack.c.l.b16 %v403
      %v579 = vunpack.c.l.b16 %v404
      %v580 = vunpack.c.l.b16 %v405
      %v581 = vpack.c.b16 %v510, %v509
      %v582 = vpack.c.b16 %v512, %v511
      %v583 = vpack.c.b16 %v514, %v513
      %v584 = vpack.c.b16 %v516, %v515
      %v585 = vpack.c.b16 %v518, %v517
      %v586 = vpack.c.b16 %v520, %v519
      %v587 = vpack.c.b16 %v522, %v521
      %v588 = vpack.c.b16 %v524, %v523
      %v589 = vpack.c.b16 %v526, %v525
      %v590 = vpack.c.b16 %v528, %v527
      %v591 = vpack.c.b16 %v530, %v529
      %v592 = vpack.c.b16 %v532, %v531
      %v593 = vpack.c.b16 %v534, %v533
      %v594 = vpack.c.b16 %v536, %v535
      %v595 = vpack.c.b16 %v538, %v537
      %v596 = vpack.c.b16 %v540, %v539
      %v597 = vpack.c.b16 %v542, %v541
      %v598 = vpack.c.b16 %v544, %v543
      %v599 = vpack.c.b16 %v546, %v545
      %v600 = vpack.c.b16 %v548, %v547
      %v601 = vpack.c.b16 %v550, %v549
      %v602 = vpack.c.b16 %v552, %v551
      %v603 = vpack.c.b16 %v554, %v553
      %v604 = vpack.c.b16 %v556, %v555
      %v605 = vpack.c.b16 %v558, %v557
      %v606 = vpack.c.b16 %v560, %v559
      %v607 = vpack.c.b16 %v562, %v561
      %v608 = vpack.c.b16 %v564, %v563
      %v609 = vpack.c.b16 %v566, %v565
      %v610 = vpack.c.b16 %v568, %v567
      %v611 = vpack.c.b16 %v570, %v569
      %v612 = vpack.c.b16 %v572, %v571
      %v613 = vpack.c.b16 %v574, %v573
      %v614 = vpack.c.b16 %v576, %v575
      %v615 = vpack.c.b16 %v578, %v577
      %v616 = vpack.c.b16 %v580, %v579
      %vm653 = vcmask 523264
      %v655 = vsel %vm653, %v432, 0
      %657 = vmatprep.subr.bf16.mxu0 0
      %658 = vmatpush1.bf16.msra.mxu0 %v588
      %659 = vmatprep.subr.bf16.mxu0 0
      %660 = vmatpush1.bf16.msra.mxu0 %v587
      %661 = vmatprep.subr.bf16.mxu0 0
      %662 = vmatpush1.bf16.msra.mxu0 %v586
      %663 = vmatprep.subr.bf16.mxu0 0
      %664 = vmatpush1.bf16.msra.mxu0 %v585
      %665 = vmatprep.subr.bf16.mxu0 0
      %666 = vmatpush1.bf16.msra.mxu0 %v584
      %667 = vmatprep.subr.bf16.mxu0 0
      %668 = vmatpush1.bf16.msra.mxu0 %v583
      %669 = vmatprep.subr.bf16.mxu0 0
      %670 = vmatpush1.bf16.msra.mxu0 %v582
      %671 = vmatprep.subr.bf16.mxu0 0
      %672 = vmatpush1.bf16.msra.mxu0 %v581
      %673 = vmatprep.subr.bf16.mxu0 0
      %674 = vmatpush2.bf16.msra.mxu0 %v596
      %675 = vmatprep.subr.bf16.mxu0 0
      %676 = vmatpush2.bf16.msra.mxu0 %v595
      %677 = vmatprep.subr.bf16.mxu0 0
      %678 = vmatpush2.bf16.msra.mxu0 %v594
      %679 = vmatprep.subr.bf16.mxu0 0
      %680 = vmatpush2.bf16.msra.mxu0 %v593
      %681 = vmatprep.subr.bf16.mxu0 0
      %682 = vmatpush2.bf16.msra.mxu0 %v592
      %683 = vmatprep.subr.bf16.mxu0 0
      %684 = vmatpush2.bf16.msra.mxu0 %v591
      %685 = vmatprep.subr.bf16.mxu0 0
      %686 = vmatpush2.bf16.msra.mxu0 %v590
      %687 = vmatprep.subr.bf16.mxu0 0
      %688 = vmatpush2.bf16.msra.mxu0 %v589
      %689 = vmatprep.mubr.bf16.mxu0 %v429
      %690 = vmatmul.mubr.bf16.gmra.mxu0 %v428
      %v691 = vpop.f32.mrf.mxu0
      %v692 = vadd.f32 0.0, %v691
      %v693 = vpop.f32.mrf.mxu0
      %v694 = vpop.f32.mrf.mxu0
      %v695 = vadd.f32 0.0, %v694
      %v696 = vpop.f32.mrf.mxu0
      %697 = vdwg.mxu0
      %698 = vmatprep.subr.bf16.mxu0 0
      %699 = vmatpush1.bf16.msra.mxu0 %v604
      %700 = vmatprep.subr.bf16.mxu0 0
      %701 = vmatpush1.bf16.msra.mxu0 %v603
      %702 = vmatprep.subr.bf16.mxu0 0
      %703 = vmatpush1.bf16.msra.mxu0 %v602
      %704 = vmatprep.subr.bf16.mxu0 0
      %705 = vmatpush1.bf16.msra.mxu0 %v601
      %706 = vmatprep.subr.bf16.mxu0 0
      %707 = vmatpush1.bf16.msra.mxu0 %v600
      %708 = vmatprep.subr.bf16.mxu0 0
      %709 = vmatpush1.bf16.msra.mxu0 %v599
      %710 = vmatprep.subr.bf16.mxu0 0
      %711 = vmatpush1.bf16.msra.mxu0 %v598
      %712 = vmatprep.subr.bf16.mxu0 0
      %713 = vmatpush1.bf16.msra.mxu0 %v597
      %714 = vmatprep.subr.bf16.mxu0 0
      %715 = vmatpush2.bf16.msra.mxu0 %v612
      %716 = vmatprep.subr.bf16.mxu0 0
      %717 = vmatpush2.bf16.msra.mxu0 %v611
      %718 = vmatprep.subr.bf16.mxu0 0
      %719 = vmatpush2.bf16.msra.mxu0 %v610
      %720 = vmatprep.subr.bf16.mxu0 0
      %721 = vmatpush2.bf16.msra.mxu0 %v609
      %722 = vmatprep.subr.bf16.mxu0 0
      %723 = vmatpush2.bf16.msra.mxu0 %v608
      %724 = vmatprep.subr.bf16.mxu0 0
      %725 = vmatpush2.bf16.msra.mxu0 %v607
      %726 = vmatprep.subr.bf16.mxu0 0
      %727 = vmatpush2.bf16.msra.mxu0 %v606
      %728 = vmatprep.subr.bf16.mxu0 0
      %729 = vmatpush2.bf16.msra.mxu0 %v605
      %730 = vmatprep.mubr.bf16.mxu0 %v431
      %731 = vmatmul.mubr.bf16.gmra.mxu0 %v430
      %v732 = vpop.f32.mrf.mxu0
      %v733 = vadd.f32 %v692, %v732
      %v734 = vpop.f32.mrf.mxu0
      %v735 = vpop.f32.mrf.mxu0
      %v736 = vadd.f32 %v695, %v735
      %v737 = vpop.f32.mrf.mxu0
      %738 = vdwg.mxu0
      %739 = vmatprep.subr.bf16.mxu0 0
      %740 = vmatpush1.bf16.msra.mxu0 0
      %741 = vmatprep.subr.bf16.mxu0 0
      %742 = vmatpush1.bf16.msra.mxu0 0
      %743 = vmatprep.subr.bf16.mxu0 0
      %744 = vmatpush1.bf16.msra.mxu0 0
      %745 = vmatprep.subr.bf16.mxu0 0
      %746 = vmatpush1.bf16.msra.mxu0 0
      %747 = vmatprep.subr.bf16.mxu0 0
      %748 = vmatpush1.bf16.msra.mxu0 %v616
      %749 = vmatprep.subr.bf16.mxu0 0
      %750 = vmatpush1.bf16.msra.mxu0 %v615
      %751 = vmatprep.subr.bf16.mxu0 0
      %752 = vmatpush1.bf16.msra.mxu0 %v614
      %753 = vmatprep.subr.bf16.mxu0 0
      %754 = vmatpush1.bf16.msra.mxu0 %v613
      %755 = vmatprep.subr.bf16.mxu0 0
      %756 = vmatpush2.bf16.msra.mxu0 0
      %757 = vmatprep.subr.bf16.mxu0 0
      %758 = vmatpush2.bf16.msra.mxu0 0
      %759 = vmatprep.subr.bf16.mxu0 0
      %760 = vmatpush2.bf16.msra.mxu0 0
      %761 = vmatprep.subr.bf16.mxu0 0
      %762 = vmatpush2.bf16.msra.mxu0 0
      %763 = vmatprep.subr.bf16.mxu0 0
      %764 = vmatpush2.bf16.msra.mxu0 0
      %765 = vmatprep.subr.bf16.mxu0 0
      %766 = vmatpush2.bf16.msra.mxu0 0
      %767 = vmatprep.subr.bf16.mxu0 0
      %768 = vmatpush2.bf16.msra.mxu0 0
      %769 = vmatprep.subr.bf16.mxu0 0
      %770 = vmatpush2.bf16.msra.mxu0 0
      %771 = vmatprep.mubr.bf16.mxu0 0
      %772 = vmatmul.mubr.bf16.gmra.mxu0 %v655
      %v773 = vpop.f32.mrf.mxu0
      %v774 = vadd.f32 %v733, %v773
      %v775 = vpop.f32.mrf.mxu0
      %v776 = vpop.f32.mrf.mxu0
      %v777 = vadd.f32 %v736, %v776
      %v778 = vpop.f32.mrf.mxu0
      %779 = vdwg.mxu0
      %v780 = vld [vmem:[%s311] sm:$0xff]
      %v781 = vld [vmem:[%s311 + $0x8] sm:$0xff]
      %v782 = vld [vmem:[%s311 + $0x10] sm:$0xf]
      %v783 = vld [vmem:[%s311 + $0x14] sm:$0xff]
      %v784 = vld [vmem:[%s311 + $0x1c] sm:$0xff]
      %v785 = vld [vmem:[%s311 + $0x24] sm:$0xf]
      %v792 = vunpack.c.l.b16 %v780
      %v793 = vunpack.c.h.b16 %v780
      %v794 = vunpack.c.l.b16 %v781
      %v795 = vunpack.c.h.b16 %v781
      %v796 = vunpack.c.l.b16 %v782
      %v797 = vunpack.c.l.b16 %v783
      %v798 = vunpack.c.h.b16 %v783
      %v799 = vunpack.c.l.b16 %v784
      %v800 = vunpack.c.h.b16 %v784
      %v801 = vunpack.c.l.b16 %v785
      %v802 = vpack.c.b16 %v797, %v792
      %v803 = vpack.c.b16 %v798, %v793
      %v804 = vpack.c.b16 %v799, %v794
      %v805 = vpack.c.b16 %v800, %v795
      %v806 = vpack.c.b16 %v801, %v796
      %v812 = vsel %vm653, %v806, 0
      %814 = vmatprep.subr.bf16.mxu0 0
      %815 = vmatpush1.bf16.msra.mxu0 %v588
      %816 = vmatprep.subr.bf16.mxu0 0
      %817 = vmatpush1.bf16.msra.mxu0 %v587
      %818 = vmatprep.subr.bf16.mxu0 0
      %819 = vmatpush1.bf16.msra.mxu0 %v586
      %820 = vmatprep.subr.bf16.mxu0 0
      %821 = vmatpush1.bf16.msra.mxu0 %v585
      %822 = vmatprep.subr.bf16.mxu0 0
      %823 = vmatpush1.bf16.msra.mxu0 %v584
      %824 = vmatprep.subr.bf16.mxu0 0
      %825 = vmatpush1.bf16.msra.mxu0 %v583
      %826 = vmatprep.subr.bf16.mxu0 0
      %827 = vmatpush1.bf16.msra.mxu0 %v582
      %828 = vmatprep.subr.bf16.mxu0 0
      %829 = vmatpush1.bf16.msra.mxu0 %v581
      %830 = vmatprep.subr.bf16.mxu0 0
      %831 = vmatpush2.bf16.msra.mxu0 %v596
      %832 = vmatprep.subr.bf16.mxu0 0
      %833 = vmatpush2.bf16.msra.mxu0 %v595
      %834 = vmatprep.subr.bf16.mxu0 0
      %835 = vmatpush2.bf16.msra.mxu0 %v594
      %836 = vmatprep.subr.bf16.mxu0 0
      %837 = vmatpush2.bf16.msra.mxu0 %v593
      %838 = vmatprep.subr.bf16.mxu0 0
      %839 = vmatpush2.bf16.msra.mxu0 %v592
      %840 = vmatprep.subr.bf16.mxu0 0
      %841 = vmatpush2.bf16.msra.mxu0 %v591
      %842 = vmatprep.subr.bf16.mxu0 0
      %843 = vmatpush2.bf16.msra.mxu0 %v590
      %844 = vmatprep.subr.bf16.mxu0 0
      %845 = vmatpush2.bf16.msra.mxu0 %v589
      %846 = vmatprep.mubr.bf16.mxu0 %v803
      %847 = vmatmul.mubr.bf16.gmra.mxu0 %v802
      %v848 = vpop.f32.mrf.mxu0
      %v849 = vadd.f32 0.0, %v848
      %v850 = vpop.f32.mrf.mxu0
      %v851 = vpop.f32.mrf.mxu0
      %v852 = vadd.f32 0.0, %v851
      %v853 = vpop.f32.mrf.mxu0
      %854 = vdwg.mxu0
      %855 = vmatprep.subr.bf16.mxu0 0
      %856 = vmatpush1.bf16.msra.mxu0 %v604
      %857 = vmatprep.subr.bf16.mxu0 0
      %858 = vmatpush1.bf16.msra.mxu0 %v603
      %859 = vmatprep.subr.bf16.mxu0 0
      %860 = vmatpush1.bf16.msra.mxu0 %v602
      %861 = vmatprep.subr.bf16.mxu0 0
      %862 = vmatpush1.bf16.msra.mxu0 %v601
      %863 = vmatprep.subr.bf16.mxu0 0
      %864 = vmatpush1.bf16.msra.mxu0 %v600
      %865 = vmatprep.subr.bf16.mxu0 0
      %866 = vmatpush1.bf16.msra.mxu0 %v599
      %867 = vmatprep.subr.bf16.mxu0 0
      %868 = vmatpush1.bf16.msra.mxu0 %v598
      %869 = vmatprep.subr.bf16.mxu0 0
      %870 = vmatpush1.bf16.msra.mxu0 %v597
      %871 = vmatprep.subr.bf16.mxu0 0
      %872 = vmatpush2.bf16.msra.mxu0 %v612
      %873 = vmatprep.subr.bf16.mxu0 0
      %874 = vmatpush2.bf16.msra.mxu0 %v611
      %875 = vmatprep.subr.bf16.mxu0 0
      %876 = vmatpush2.bf16.msra.mxu0 %v610
      %877 = vmatprep.subr.bf16.mxu0 0
      %878 = vmatpush2.bf16.msra.mxu0 %v609
      %879 = vmatprep.subr.bf16.mxu0 0
      %880 = vmatpush2.bf16.msra.mxu0 %v608
      %881 = vmatprep.subr.bf16.mxu0 0
      %882 = vmatpush2.bf16.msra.mxu0 %v607
      %883 = vmatprep.subr.bf16.mxu0 0
      %884 = vmatpush2.bf16.msra.mxu0 %v606
      %885 = vmatprep.subr.bf16.mxu0 0
      %886 = vmatpush2.bf16.msra.mxu0 %v605
      %887 = vmatprep.mubr.bf16.mxu0 %v805
      %888 = vmatmul.mubr.bf16.gmra.mxu0 %v804
      %v889 = vpop.f32.mrf.mxu0
      %v890 = vadd.f32 %v849, %v889
      %v891 = vpop.f32.mrf.mxu0
      %v892 = vpop.f32.mrf.mxu0
      %v893 = vadd.f32 %v852, %v892
      %v894 = vpop.f32.mrf.mxu0
      %895 = vdwg.mxu0
      %896 = vmatprep.subr.bf16.mxu0 0
      %897 = vmatpush1.bf16.msra.mxu0 0
      %898 = vmatprep.subr.bf16.mxu0 0
      %899 = vmatpush1.bf16.msra.mxu0 0
      %900 = vmatprep.subr.bf16.mxu0 0
      %901 = vmatpush1.bf16.msra.mxu0 0
      %902 = vmatprep.subr.bf16.mxu0 0
      %903 = vmatpush1.bf16.msra.mxu0 0
      %904 = vmatprep.subr.bf16.mxu0 0
      %905 = vmatpush1.bf16.msra.mxu0 %v616
      %906 = vmatprep.subr.bf16.mxu0 0
      %907 = vmatpush1.bf16.msra.mxu0 %v615
      %908 = vmatprep.subr.bf16.mxu0 0
      %909 = vmatpush1.bf16.msra.mxu0 %v614
      %910 = vmatprep.subr.bf16.mxu0 0
      %911 = vmatpush1.bf16.msra.mxu0 %v613
      %912 = vmatprep.subr.bf16.mxu0 0
      %913 = vmatpush2.bf16.msra.mxu0 0
      %914 = vmatprep.subr.bf16.mxu0 0
      %915 = vmatpush2.bf16.msra.mxu0 0
      %916 = vmatprep.subr.bf16.mxu0 0
      %917 = vmatpush2.bf16.msra.mxu0 0
      %918 = vmatprep.subr.bf16.mxu0 0
      %919 = vmatpush2.bf16.msra.mxu0 0
      %920 = vmatprep.subr.bf16.mxu0 0
      %921 = vmatpush2.bf16.msra.mxu0 0
      %922 = vmatprep.subr.bf16.mxu0 0
      %923 = vmatpush2.bf16.msra.mxu0 0
      %924 = vmatprep.subr.bf16.mxu0 0
      %925 = vmatpush2.bf16.msra.mxu0 0
      %926 = vmatprep.subr.bf16.mxu0 0
      %927 = vmatpush2.bf16.msra.mxu0 0
      %928 = vmatprep.mubr.bf16.mxu0 0
      %929 = vmatmul.mubr.bf16.gmra.mxu0 %v812
      %v930 = vpop.f32.mrf.mxu0
      %v931 = vadd.f32 %v890, %v930
      %v932 = vpop.f32.mrf.mxu0
      %v933 = vpop.f32.mrf.mxu0
      %v934 = vadd.f32 %v893, %v933
      %v935 = vpop.f32.mrf.mxu0
      %936 = vdwg.mxu0
      %v937 = vmax.f32 %v774, %v931
      %v938 = vmax.f32 %v777, %v934
      %v939 = vld [vmem:[%s318] sm:$0xff]
      %v940 = vld [vmem:[%s318 + $0x8] sm:$0xff]
      %v941 = vld [vmem:[%s318 + $0x10] sm:$0xf]
      %v942 = vld [vmem:[%s318 + $0x14] sm:$0xff]
      %v943 = vld [vmem:[%s318 + $0x1c] sm:$0xff]
      %v944 = vld [vmem:[%s318 + $0x24] sm:$0xf]
      %v951 = vunpack.c.l.b16 %v939
      %v952 = vunpack.c.h.b16 %v939
      %v953 = vunpack.c.l.b16 %v940
      %v954 = vunpack.c.h.b16 %v940
      %v955 = vunpack.c.l.b16 %v941
      %v956 = vunpack.c.l.b16 %v942
      %v957 = vunpack.c.h.b16 %v942
      %v958 = vunpack.c.l.b16 %v943
      %v959 = vunpack.c.h.b16 %v943
      %v960 = vunpack.c.l.b16 %v944
      %v961 = vpack.c.b16 %v956, %v951
      %v962 = vpack.c.b16 %v957, %v952
      %v963 = vpack.c.b16 %v958, %v953
      %v964 = vpack.c.b16 %v959, %v954
      %v965 = vpack.c.b16 %v960, %v955
      %v971 = vsel %vm653, %v965, 0
      %973 = vmatprep.subr.bf16.mxu0 0
      %974 = vmatpush1.bf16.msra.mxu0 %v588
      %975 = vmatprep.subr.bf16.mxu0 0
      %976 = vmatpush1.bf16.msra.mxu0 %v587
      %977 = vmatprep.subr.bf16.mxu0 0
      %978 = vmatpush1.bf16.msra.mxu0 %v586
      %979 = vmatprep.subr.bf16.mxu0 0
      %980 = vmatpush1.bf16.msra.mxu0 %v585
      %981 = vmatprep.subr.bf16.mxu0 0
      %982 = vmatpush1.bf16.msra.mxu0 %v584
      %983 = vmatprep.subr.bf16.mxu0 0
      %984 = vmatpush1.bf16.msra.mxu0 %v583
      %985 = vmatprep.subr.bf16.mxu0 0
      %986 = vmatpush1.bf16.msra.mxu0 %v582
      %987 = vmatprep.subr.bf16.mxu0 0
      %988 = vmatpush1.bf16.msra.mxu0 %v581
      %989 = vmatprep.subr.bf16.mxu0 0
      %990 = vmatpush2.bf16.msra.mxu0 %v596
      %991 = vmatprep.subr.bf16.mxu0 0
      %992 = vmatpush2.bf16.msra.mxu0 %v595
      %993 = vmatprep.subr.bf16.mxu0 0
      %994 = vmatpush2.bf16.msra.mxu0 %v594
      %995 = vmatprep.subr.bf16.mxu0 0
      %996 = vmatpush2.bf16.msra.mxu0 %v593
      %997 = vmatprep.subr.bf16.mxu0 0
      %998 = vmatpush2.bf16.msra.mxu0 %v592
      %999 = vmatprep.subr.bf16.mxu0 0
      %1000 = vmatpush2.bf16.msra.mxu0 %v591
      %1001 = vmatprep.subr.bf16.mxu0 0
      %1002 = vmatpush2.bf16.msra.mxu0 %v590
      %1003 = vmatprep.subr.bf16.mxu0 0
      %1004 = vmatpush2.bf16.msra.mxu0 %v589
      %1005 = vmatprep.mubr.bf16.mxu0 %v962
      %1006 = vmatmul.mubr.bf16.gmra.mxu0 %v961
      %v1007 = vpop.f32.mrf.mxu0
      %v1008 = vadd.f32 0.0, %v1007
      %v1009 = vpop.f32.mrf.mxu0
      %v1010 = vpop.f32.mrf.mxu0
      %v1011 = vadd.f32 0.0, %v1010
      %v1012 = vpop.f32.mrf.mxu0
      %1013 = vdwg.mxu0
      %1014 = vmatprep.subr.bf16.mxu0 0
      %1015 = vmatpush1.bf16.msra.mxu0 %v604
      %1016 = vmatprep.subr.bf16.mxu0 0
      %1017 = vmatpush1.bf16.msra.mxu0 %v603
      %1018 = vmatprep.subr.bf16.mxu0 0
      %1019 = vmatpush1.bf16.msra.mxu0 %v602
      %1020 = vmatprep.subr.bf16.mxu0 0
      %1021 = vmatpush1.bf16.msra.mxu0 %v601
      %1022 = vmatprep.subr.bf16.mxu0 0
      %1023 = vmatpush1.bf16.msra.mxu0 %v600
      %1024 = vmatprep.subr.bf16.mxu0 0
      %1025 = vmatpush1.bf16.msra.mxu0 %v599
      %1026 = vmatprep.subr.bf16.mxu0 0
      %1027 = vmatpush1.bf16.msra.mxu0 %v598
      %1028 = vmatprep.subr.bf16.mxu0 0
      %1029 = vmatpush1.bf16.msra.mxu0 %v597
      %1030 = vmatprep.subr.bf16.mxu0 0
      %1031 = vmatpush2.bf16.msra.mxu0 %v612
      %1032 = vmatprep.subr.bf16.mxu0 0
      %1033 = vmatpush2.bf16.msra.mxu0 %v611
      %1034 = vmatprep.subr.bf16.mxu0 0
      %1035 = vmatpush2.bf16.msra.mxu0 %v610
      %1036 = vmatprep.subr.bf16.mxu0 0
      %1037 = vmatpush2.bf16.msra.mxu0 %v609
      %1038 = vmatprep.subr.bf16.mxu0 0
      %1039 = vmatpush2.bf16.msra.mxu0 %v608
      %1040 = vmatprep.subr.bf16.mxu0 0
      %1041 = vmatpush2.bf16.msra.mxu0 %v607
      %1042 = vmatprep.subr.bf16.mxu0 0
      %1043 = vmatpush2.bf16.msra.mxu0 %v606
      %1044 = vmatprep.subr.bf16.mxu0 0
      %1045 = vmatpush2.bf16.msra.mxu0 %v605
      %1046 = vmatprep.mubr.bf16.mxu0 %v964
      %1047 = vmatmul.mubr.bf16.gmra.mxu0 %v963
      %v1048 = vpop.f32.mrf.mxu0
      %v1049 = vadd.f32 %v1008, %v1048
      %v1050 = vpop.f32.mrf.mxu0
      %v1051 = vpop.f32.mrf.mxu0
      %v1052 = vadd.f32 %v1011, %v1051
      %v1053 = vpop.f32.mrf.mxu0
      %1054 = vdwg.mxu0
      %1055 = vmatprep.subr.bf16.mxu0 0
      %1056 = vmatpush1.bf16.msra.mxu0 0
      %1057 = vmatprep.subr.bf16.mxu0 0
      %1058 = vmatpush1.bf16.msra.mxu0 0
      %1059 = vmatprep.subr.bf16.mxu0 0
      %1060 = vmatpush1.bf16.msra.mxu0 0
      %1061 = vmatprep.subr.bf16.mxu0 0
      %1062 = vmatpush1.bf16.msra.mxu0 0
      %1063 = vmatprep.subr.bf16.mxu0 0
      %1064 = vmatpush1.bf16.msra.mxu0 %v616
      %1065 = vmatprep.subr.bf16.mxu0 0
      %1066 = vmatpush1.bf16.msra.mxu0 %v615
      %1067 = vmatprep.subr.bf16.mxu0 0
      %1068 = vmatpush1.bf16.msra.mxu0 %v614
      %1069 = vmatprep.subr.bf16.mxu0 0
      %1070 = vmatpush1.bf16.msra.mxu0 %v613
      %1071 = vmatprep.subr.bf16.mxu0 0
      %1072 = vmatpush2.bf16.msra.mxu0 0
      %1073 = vmatprep.subr.bf16.mxu0 0
      %1074 = vmatpush2.bf16.msra.mxu0 0
      %1075 = vmatprep.subr.bf16.mxu0 0
      %1076 = vmatpush2.bf16.msra.mxu0 0
      %1077 = vmatprep.subr.bf16.mxu0 0
      %1078 = vmatpush2.bf16.msra.mxu0 0
      %1079 = vmatprep.subr.bf16.mxu0 0
      %1080 = vmatpush2.bf16.msra.mxu0 0
      %1081 = vmatprep.subr.bf16.mxu0 0
      %1082 = vmatpush2.bf16.msra.mxu0 0
      %1083 = vmatprep.subr.bf16.mxu0 0
      %1084 = vmatpush2.bf16.msra.mxu0 0
      %1085 = vmatprep.subr.bf16.mxu0 0
      %1086 = vmatpush2.bf16.msra.mxu0 0
      %1087 = vmatprep.mubr.bf16.mxu0 0
      %1088 = vmatmul.mubr.bf16.gmra.mxu0 %v971
      %v1089 = vpop.f32.mrf.mxu0
      %v1090 = vadd.f32 %v1049, %v1089
      %v1091 = vpop.f32.mrf.mxu0
      %v1092 = vpop.f32.mrf.mxu0
      %v1093 = vadd.f32 %v1052, %v1092
      %v1094 = vpop.f32.mrf.mxu0
      %1095 = vdwg.mxu0
      %v1096 = vmax.f32 %v937, %v1090
      %v1097 = vmax.f32 %v938, %v1093
      %v1098 = vld [vmem:[%s325] sm:$0xff]
      %v1099 = vld [vmem:[%s325 + $0x8] sm:$0xff]
      %v1100 = vld [vmem:[%s325 + $0x10] sm:$0xf]
      %v1101 = vld [vmem:[%s325 + $0x14] sm:$0xff]
      %v1102 = vld [vmem:[%s325 + $0x1c] sm:$0xff]
      %v1103 = vld [vmem:[%s325 + $0x24] sm:$0xf]
      %v1110 = vunpack.c.l.b16 %v1098
      %v1111 = vunpack.c.h.b16 %v1098
      %v1112 = vunpack.c.l.b16 %v1099
      %v1113 = vunpack.c.h.b16 %v1099
      %v1114 = vunpack.c.l.b16 %v1100
      %v1115 = vunpack.c.l.b16 %v1101
      %v1116 = vunpack.c.h.b16 %v1101
      %v1117 = vunpack.c.l.b16 %v1102
      %v1118 = vunpack.c.h.b16 %v1102
      %v1119 = vunpack.c.l.b16 %v1103
      %v1120 = vpack.c.b16 %v1115, %v1110
      %v1121 = vpack.c.b16 %v1116, %v1111
      %v1122 = vpack.c.b16 %v1117, %v1112
      %v1123 = vpack.c.b16 %v1118, %v1113
      %v1124 = vpack.c.b16 %v1119, %v1114
      %v1130 = vsel %vm653, %v1124, 0
      %1132 = vmatprep.subr.bf16.mxu0 0
      %1133 = vmatpush1.bf16.msra.mxu0 %v588
      %1134 = vmatprep.subr.bf16.mxu0 0
      %1135 = vmatpush1.bf16.msra.mxu0 %v587
      %1136 = vmatprep.subr.bf16.mxu0 0
      %1137 = vmatpush1.bf16.msra.mxu0 %v586
      %1138 = vmatprep.subr.bf16.mxu0 0
      %1139 = vmatpush1.bf16.msra.mxu0 %v585
      %1140 = vmatprep.subr.bf16.mxu0 0
      %1141 = vmatpush1.bf16.msra.mxu0 %v584
      %1142 = vmatprep.subr.bf16.mxu0 0
      %1143 = vmatpush1.bf16.msra.mxu0 %v583
      %1144 = vmatprep.subr.bf16.mxu0 0
      %1145 = vmatpush1.bf16.msra.mxu0 %v582
      %1146 = vmatprep.subr.bf16.mxu0 0
      %1147 = vmatpush1.bf16.msra.mxu0 %v581
      %1148 = vmatprep.subr.bf16.mxu0 0
      %1149 = vmatpush2.bf16.msra.mxu0 %v596
      %1150 = vmatprep.subr.bf16.mxu0 0
      %1151 = vmatpush2.bf16.msra.mxu0 %v595
      %1152 = vmatprep.subr.bf16.mxu0 0
      %1153 = vmatpush2.bf16.msra.mxu0 %v594
      %1154 = vmatprep.subr.bf16.mxu0 0
      %1155 = vmatpush2.bf16.msra.mxu0 %v593
      %1156 = vmatprep.subr.bf16.mxu0 0
      %1157 = vmatpush2.bf16.msra.mxu0 %v592
      %1158 = vmatprep.subr.bf16.mxu0 0
      %1159 = vmatpush2.bf16.msra.mxu0 %v591
      %1160 = vmatprep.subr.bf16.mxu0 0
      %1161 = vmatpush2.bf16.msra.mxu0 %v590
      %1162 = vmatprep.subr.bf16.mxu0 0
      %1163 = vmatpush2.bf16.msra.mxu0 %v589
      %1164 = vmatprep.mubr.bf16.mxu0 %v1121
      %1165 = vmatmul.mubr.bf16.gmra.mxu0 %v1120
      %v1166 = vpop.f32.mrf.mxu0
      %v1167 = vadd.f32 0.0, %v1166
      %v1168 = vpop.f32.mrf.mxu0
      %v1169 = vpop.f32.mrf.mxu0
      %v1170 = vadd.f32 0.0, %v1169
      %v1171 = vpop.f32.mrf.mxu0
      %1172 = vdwg.mxu0
      %1173 = vmatprep.subr.bf16.mxu0 0
      %1174 = vmatpush1.bf16.msra.mxu0 %v604
      %1175 = vmatprep.subr.bf16.mxu0 0
      %1176 = vmatpush1.bf16.msra.mxu0 %v603
      %1177 = vmatprep.subr.bf16.mxu0 0
      %1178 = vmatpush1.bf16.msra.mxu0 %v602
      %1179 = vmatprep.subr.bf16.mxu0 0
      %1180 = vmatpush1.bf16.msra.mxu0 %v601
      %1181 = vmatprep.subr.bf16.mxu0 0
      %1182 = vmatpush1.bf16.msra.mxu0 %v600
      %1183 = vmatprep.subr.bf16.mxu0 0
      %1184 = vmatpush1.bf16.msra.mxu0 %v599
      %1185 = vmatprep.subr.bf16.mxu0 0
      %1186 = vmatpush1.bf16.msra.mxu0 %v598
      %1187 = vmatprep.subr.bf16.mxu0 0
      %1188 = vmatpush1.bf16.msra.mxu0 %v597
      %1189 = vmatprep.subr.bf16.mxu0 0
      %1190 = vmatpush2.bf16.msra.mxu0 %v612
      %1191 = vmatprep.subr.bf16.mxu0 0
      %1192 = vmatpush2.bf16.msra.mxu0 %v611
      %1193 = vmatprep.subr.bf16.mxu0 0
      %1194 = vmatpush2.bf16.msra.mxu0 %v610
      %1195 = vmatprep.subr.bf16.mxu0 0
      %1196 = vmatpush2.bf16.msra.mxu0 %v609
      %1197 = vmatprep.subr.bf16.mxu0 0
      %1198 = vmatpush2.bf16.msra.mxu0 %v608
      %1199 = vmatprep.subr.bf16.mxu0 0
      %1200 = vmatpush2.bf16.msra.mxu0 %v607
      %1201 = vmatprep.subr.bf16.mxu0 0
      %1202 = vmatpush2.bf16.msra.mxu0 %v606
      %1203 = vmatprep.subr.bf16.mxu0 0
      %1204 = vmatpush2.bf16.msra.mxu0 %v605
      %1205 = vmatprep.mubr.bf16.mxu0 %v1123
      %1206 = vmatmul.mubr.bf16.gmra.mxu0 %v1122
      %v1207 = vpop.f32.mrf.mxu0
      %v1208 = vadd.f32 %v1167, %v1207
      %v1209 = vpop.f32.mrf.mxu0
      %v1210 = vpop.f32.mrf.mxu0
      %v1211 = vadd.f32 %v1170, %v1210
      %v1212 = vpop.f32.mrf.mxu0
      %1213 = vdwg.mxu0
      %1214 = vmatprep.subr.bf16.mxu0 0
      %1215 = vmatpush1.bf16.msra.mxu0 0
      %1216 = vmatprep.subr.bf16.mxu0 0
      %1217 = vmatpush1.bf16.msra.mxu0 0
      %1218 = vmatprep.subr.bf16.mxu0 0
      %1219 = vmatpush1.bf16.msra.mxu0 0
      %1220 = vmatprep.subr.bf16.mxu0 0
      %1221 = vmatpush1.bf16.msra.mxu0 0
      %1222 = vmatprep.subr.bf16.mxu0 0
      %1223 = vmatpush1.bf16.msra.mxu0 %v616
      %1224 = vmatprep.subr.bf16.mxu0 0
      %1225 = vmatpush1.bf16.msra.mxu0 %v615
      %1226 = vmatprep.subr.bf16.mxu0 0
      %1227 = vmatpush1.bf16.msra.mxu0 %v614
      %1228 = vmatprep.subr.bf16.mxu0 0
      %1229 = vmatpush1.bf16.msra.mxu0 %v613
      %1230 = vmatprep.subr.bf16.mxu0 0
      %1231 = vmatpush2.bf16.msra.mxu0 0
      %1232 = vmatprep.subr.bf16.mxu0 0
      %1233 = vmatpush2.bf16.msra.mxu0 0
      %1234 = vmatprep.subr.bf16.mxu0 0
      %1235 = vmatpush2.bf16.msra.mxu0 0
      %1236 = vmatprep.subr.bf16.mxu0 0
      %1237 = vmatpush2.bf16.msra.mxu0 0
      %1238 = vmatprep.subr.bf16.mxu0 0
      %1239 = vmatpush2.bf16.msra.mxu0 0
      %1240 = vmatprep.subr.bf16.mxu0 0
      %1241 = vmatpush2.bf16.msra.mxu0 0
      %1242 = vmatprep.subr.bf16.mxu0 0
      %1243 = vmatpush2.bf16.msra.mxu0 0
      %1244 = vmatprep.subr.bf16.mxu0 0
      %1245 = vmatpush2.bf16.msra.mxu0 0
      %1246 = vmatprep.mubr.bf16.mxu0 0
      %1247 = vmatmul.mubr.bf16.gmra.mxu0 %v1130
      %v1248 = vpop.f32.mrf.mxu0
      %v1249 = vadd.f32 %v1208, %v1248
      %v1250 = vpop.f32.mrf.mxu0
      %v1251 = vpop.f32.mrf.mxu0
      %v1252 = vadd.f32 %v1211, %v1251
      %v1253 = vpop.f32.mrf.mxu0
      %1254 = vdwg.mxu0
      %v1255 = vmax.f32 %v1096, %v1249
      %v1256 = vmax.f32 %v1097, %v1252
      %v1257 = vld [vmem:[%s5] sm:$0x1]
      %v1259 = vlaneseq
      %v1260 = vshrl.u32 %v1259, 7
      %v1261 = vsub.s32 0, %v1260
      %v1262 = vrot.slane %v1257, %v1261
      %v1264 = vadd.f32 %v1255, %v1262
      %v1265 = vadd.f32 %v1256, %v1262
      %v1266 = vmax.f32 %v1264, 0.0
      %v1267 = vmax.f32 %v1265, 0.0
      %1268 = vst [vmem:[%s331] sm:$0xff] %v1266
      %1269 = vst [vmem:[%s331 + $0x8] sm:$0xff] %v1267
      %s1270 = smul.u32 2, %s17
      %p1271 = scmp.lt.s32.totalorder %s1270, 3
      %s1272 = scalar_select %p1271, %s1270, 3
      %s1273 = smul.addr %s1272, 8
      %s1274 = scalar_lea.vmem %s6, %s1273
      // Predicated region
      $region45: #{simple_cnn_forward.7} parent=43 // pred_check
        %p1275 = pneg %p181
      $region46: #{simple_cnn_forward.7} parent=43 // pred_check_branch
        %1277 = sbr.rel (%p1275) target = $region48
      $region47: #{simple_cnn_forward.7} parent=43 // pred_region
        %s1278 = smul.u32 2, %s17
      $region48: #{simple_cnn_forward.7} parent=43 // pred_fallthru
        _
    $region44: #{simple_cnn_forward.7} parent=5 // pred_fallthru
      _
    %p1279 = scmp.le.s32.totalorder 2, %s12
    // Predicated region
    $region49: #{simple_cnn_forward.7} parent=5 // pred_check
      %p1280 = pneg %p1279
    $region50: #{simple_cnn_forward.7} parent=5 // pred_check_branch
      %1282 = sbr.rel (%p1280) target = $region52
    $region51: #{simple_cnn_forward.7} parent=5 // pred_region
      %s1283 = ssub.s32 %s12, 2
      // Predicated region
      $region53: #{simple_cnn_forward.7} parent=51 // pred_check
        %p1284 = pneg %p187
      $region54: #{simple_cnn_forward.7} parent=51 // pred_check_branch
        %1286 = sbr.rel (%p1284) target = $region56
      $region55: #{simple_cnn_forward.7} parent=51 // pred_region
        %s1287 = smul.u32 2, %s18
        %p1288 = scmp.lt.s32.totalorder %s1287, 3
        %s1289 = scalar_select %p1288, %s1287, 3
        %s1290 = smul.addr %s1289, 8
        %s1291 = scalar_lea.vmem %s6, %s1290
      $region56: #{simple_cnn_forward.7} parent=51 // pred_fallthru
        _
    $region52: #{simple_cnn_forward.7} parent=5 // pred_fallthru
      _
  $region6: #{simple_cnn_forward.7} parent=0 // loop_footer
    %s16 = sadd.s32 1, %s12
  $region7: #{simple_cnn_forward.7} parent=0 // loop_footer_branch
    %11 = sbr.rel target = $region3
  $region8: #{simple_cnn_forward.7} parent=0 // loop_exit
    _

// kernel: simple_cnn_forward.9
$region0: #{simple_cnn_forward.9}
  #allocation0 [shape = 'u32[]', space=smem, size = 0x4, offset = 0x4, fixed_abs, tag = 'smem constant byte address 0x4 - core index']
  #allocation1 [shape = 'u32[144,128]{1,0:T(1,128)}', space=vmem, size = 0x12000, scoped, tag = 'internal scratch']
  %s0 = inlined_call_operand.vmem [shape: bf16[2,256], index: 0, kind: input, shape index: {}]
  %s1 = inlined_call_operand.vmem [shape: bf16[256,128], index: 1, kind: input, shape index: {}]
  %s2 = inlined_call_operand.vmem [shape: f32[1,128], index: 2, kind: input, shape index: {}]
  %s3 = inlined_call_operand.hbm [shape: f32[2,128], index: 3, kind: output, shape index: {}]
  %s4 = sld [smem:[#allocation0]]
  $region22: #{simple_cnn_forward.9} parent=0
    _
  %s6 = ssub.s32 1, %s4
  %s7 = scalar_select 0, %s6, %s4
  $region1: #{simple_cnn_forward.9} parent=0
    #allocation2 [shape = 'u8[1024]{0}', space=vmem, size = 0x400, scoped, tag = 'output window, operand 0, single buffered']
    #allocation3 [shape = 's32[1]{0}', space=sflag, size = 0x4, scoped, tag = 'scoped memory for simple_cnn_forward.9']
    %8 = vsyncpa [#allocation3], 0
    // Predicated region
    $region2: #{simple_cnn_forward.9} parent=1 // pred_check
      _
    $region3: #{simple_cnn_forward.9} parent=1 // pred_check_branch
      %10 = sbr.rel (0) target = $region5
    $region4: #{simple_cnn_forward.9} parent=1 // pred_region
      _
    $region5: #{simple_cnn_forward.9} parent=1 // pred_fallthru
      _
    // Predicated region
    $region6: #{simple_cnn_forward.9} parent=1 // pred_check
      _
    $region7: #{simple_cnn_forward.9} parent=1 // pred_check_branch
      %12 = sbr.rel (0) target = $region9
    $region8: #{simple_cnn_forward.9} parent=1 // pred_region
      _
    $region9: #{simple_cnn_forward.9} parent=1 // pred_fallthru
      _
    // Predicated region
    $region10: #{simple_cnn_forward.9} parent=1 // pred_check
      _
    $region11: #{simple_cnn_forward.9} parent=1 // pred_check_branch
      %14 = sbr.rel (0) target = $region13
    $region12: #{simple_cnn_forward.9} parent=1 // pred_region
      _
    $region13: #{simple_cnn_forward.9} parent=1 // pred_fallthru
      _
    %v16 = vld [vmem:[%s0] sm:$0x3]
    %v17 = vld [vmem:[%s1] sm:$0xf]
    %v18 = vld [vmem:[%s1 + $0x4] sm:$0xf]
    %v19 = vld [vmem:[%s1 + $0x8] sm:$0xf]
    %v20 = vld [vmem:[%s1 + $0xc] sm:$0xf]
    %v21 = vld [vmem:[%s1 + $0x10] sm:$0xf]
    %v22 = vld [vmem:[%s1 + $0x14] sm:$0xf]
    %v23 = vld [vmem:[%s1 + $0x18] sm:$0xf]
    %v24 = vld [vmem:[%s1 + $0x1c] sm:$0xf]
    %v25 = vld [vmem:[%s1 + $0x20] sm:$0xf]
    %v26 = vld [vmem:[%s1 + $0x24] sm:$0xf]
    %v27 = vld [vmem:[%s1 + $0x28] sm:$0xf]
    %v28 = vld [vmem:[%s1 + $0x2c] sm:$0xf]
    %v29 = vld [vmem:[%s1 + $0x30] sm:$0xf]
    %v30 = vld [vmem:[%s1 + $0x34] sm:$0xf]
    %v31 = vld [vmem:[%s1 + $0x38] sm:$0xf]
    %v32 = vld [vmem:[%s1 + $0x3c] sm:$0xf]
    %v33 = vld [vmem:[%s1 + $0x40] sm:$0xf]
    %v34 = vld [vmem:[%s1 + $0x44] sm:$0xf]
    %v35 = vld [vmem:[%s1 + $0x48] sm:$0xf]
    %v36 = vld [vmem:[%s1 + $0x4c] sm:$0xf]
    %v37 = vld [vmem:[%s1 + $0x50] sm:$0xf]
    %v38 = vld [vmem:[%s1 + $0x54] sm:$0xf]
    %v39 = vld [vmem:[%s1 + $0x58] sm:$0xf]
    %v40 = vld [vmem:[%s1 + $0x5c] sm:$0xf]
    %v41 = vld [vmem:[%s1 + $0x60] sm:$0xf]
    %v42 = vld [vmem:[%s1 + $0x64] sm:$0xf]
    %v43 = vld [vmem:[%s1 + $0x68] sm:$0xf]
    %v44 = vld [vmem:[%s1 + $0x6c] sm:$0xf]
    %v45 = vld [vmem:[%s1 + $0x70] sm:$0xf]
    %v46 = vld [vmem:[%s1 + $0x74] sm:$0xf]
    %v47 = vld [vmem:[%s1 + $0x78] sm:$0xf]
    %v48 = vld [vmem:[%s1 + $0x7c] sm:$0xf]
    %v49 = vld [vmem:[%s2] sm:$0x1]
    %v51 = vlaneseq
    %v52 = vshrl.u32 %v51, 7
    %v53 = vsub.s32 0, %v52
    %v54 = vrot.slane %v49, %v53
    %v58 = vunpack.c.l.s4 1966171168
    %v59 = vunpack.c.0.s8 %v58
    %v60 = vlaneseq
    %v61 = vshrl.u32 %v60, 7
    %v62 = vsub.s32 %v59, %v61
    %v63 = vrot.slane %v16, %v62
    %v64 = vcombine.high %v63, %v63
    %v66 = vunpack.c.l.s4 1966171168
    %v67 = vunpack.c.0.s8 %v66
    %v68 = vlaneseq
    %v69 = vshrl.u32 %v68, 7
    %v70 = vsub.s32 %v67, %v69
    %v71 = vrot.slane %v63, %v70
    %v73 = vunpack.c.l.s4 1966171168
    %v74 = vunpack.c.0.s8 %v73
    %v75 = vlaneseq
    %v76 = vshrl.u32 %v75, 7
    %v77 = vsub.s32 %v74, %v76
    %v78 = vrot.slane %v64, %v77
    %v113 = vunpack.c.l.b16 %v17
    %v114 = vunpack.c.l.b16 %v18
    %v115 = vunpack.c.l.b16 %v19
    %v116 = vunpack.c.l.b16 %v20
    %v117 = vunpack.c.l.b16 %v21
    %v118 = vunpack.c.l.b16 %v22
    %v119 = vunpack.c.l.b16 %v23
    %v120 = vunpack.c.l.b16 %v24
    %v121 = vunpack.c.l.b16 %v25
    %v122 = vunpack.c.l.b16 %v26
    %v123 = vunpack.c.l.b16 %v27
    %v124 = vunpack.c.l.b16 %v28
    %v125 = vunpack.c.l.b16 %v29
    %v126 = vunpack.c.l.b16 %v30
    %v127 = vunpack.c.l.b16 %v31
    %v128 = vunpack.c.l.b16 %v32
    %v129 = vunpack.c.l.b16 %v33
    %v130 = vunpack.c.l.b16 %v34
    %v131 = vunpack.c.l.b16 %v35
    %v132 = vunpack.c.l.b16 %v36
    %v133 = vunpack.c.l.b16 %v37
    %v134 = vunpack.c.l.b16 %v38
    %v135 = vunpack.c.l.b16 %v39
    %v136 = vunpack.c.l.b16 %v40
    %v137 = vunpack.c.l.b16 %v41
    %v138 = vunpack.c.l.b16 %v42
    %v139 = vunpack.c.l.b16 %v43
    %v140 = vunpack.c.l.b16 %v44
    %v141 = vunpack.c.l.b16 %v45
    %v142 = vunpack.c.l.b16 %v46
    %v143 = vunpack.c.l.b16 %v47
    %v144 = vunpack.c.l.b16 %v48
    %v145 = vpack.c.b16 %v114, %v113
    %v146 = vpack.c.b16 %v116, %v115
    %v147 = vpack.c.b16 %v118, %v117
    %v148 = vpack.c.b16 %v120, %v119
    %v149 = vpack.c.b16 %v122, %v121
    %v150 = vpack.c.b16 %v124, %v123
    %v151 = vpack.c.b16 %v126, %v125
    %v152 = vpack.c.b16 %v128, %v127
    %v153 = vpack.c.b16 %v130, %v129
    %v154 = vpack.c.b16 %v132, %v131
    %v155 = vpack.c.b16 %v134, %v133
    %v156 = vpack.c.b16 %v136, %v135
    %v157 = vpack.c.b16 %v138, %v137
    %v158 = vpack.c.b16 %v140, %v139
    %v159 = vpack.c.b16 %v142, %v141
    %v160 = vpack.c.b16 %v144, %v143
    %177 = vmatprep.subr.bf16.mxu0 0
    %178 = vmatpush1.bf16.msra.mxu0 %v152
    %179 = vmatprep.subr.bf16.mxu0 0
    %180 = vmatpush1.bf16.msra.mxu0 %v151
    %181 = vmatprep.subr.bf16.mxu0 0
    %182 = vmatpush1.bf16.msra.mxu0 %v150
    %183 = vmatprep.subr.bf16.mxu0 0
    %184 = vmatpush1.bf16.msra.mxu0 %v149
    %185 = vmatprep.subr.bf16.mxu0 0
    %186 = vmatpush1.bf16.msra.mxu0 %v148
    %187 = vmatprep.subr.bf16.mxu0 0
    %188 = vmatpush1.bf16.msra.mxu0 %v147
    %189 = vmatprep.subr.bf16.mxu0 0
    %190 = vmatpush1.bf16.msra.mxu0 %v146
    %191 = vmatprep.subr.bf16.mxu0 0
    %192 = vmatpush1.bf16.msra.mxu0 %v145
    %193 = vmatprep.subr.bf16.mxu0 0
    %194 = vmatpush2.bf16.msra.mxu0 %v160
    %195 = vmatprep.subr.bf16.mxu0 0
    %196 = vmatpush2.bf16.msra.mxu0 %v159
    %197 = vmatprep.subr.bf16.mxu0 0
    %198 = vmatpush2.bf16.msra.mxu0 %v158
    %199 = vmatprep.subr.bf16.mxu0 0
    %200 = vmatpush2.bf16.msra.mxu0 %v157
    %201 = vmatprep.subr.bf16.mxu0 0
    %202 = vmatpush2.bf16.msra.mxu0 %v156
    %203 = vmatprep.subr.bf16.mxu0 0
    %204 = vmatpush2.bf16.msra.mxu0 %v155
    %205 = vmatprep.subr.bf16.mxu0 0
    %206 = vmatpush2.bf16.msra.mxu0 %v154
    %207 = vmatprep.subr.bf16.mxu0 0
    %208 = vmatpush2.bf16.msra.mxu0 %v153
    %209 = vmatprep.mubr.bf16.mxu0 %v78
    %210 = vmatmul.mubr.bf16.gmra.mxu0 %v71
    %v211 = vpop.f32.mrf.mxu0
    %v212 = vadd.f32 %v54, %v211
    %v213 = vpop.f32.mrf.mxu0
    %v214 = vpop.f32.mrf.mxu0
    %v215 = vpop.f32.mrf.mxu0
    %216 = vdwg.mxu0
    %217 = vst [vmem:[#allocation2] sm:$0x3] %v212
    // Predicated region
    $region14: #{simple_cnn_forward.9} parent=1 // pred_check
      _
    $region15: #{simple_cnn_forward.9} parent=1 // pred_check_branch
      %219 = sbr.rel (0) target = $region17
    $region16: #{simple_cnn_forward.9} parent=1 // pred_region
      %s221 = ssub.s32 32, 32
      %222 = vsyncadd [#allocation3], %s221
      %s224 = sshll.u32 [#allocation2], 4
      %s225 = int_to_ptr.vmem [resolvable:$true] %s224
      %227 = dma.vmem_to_hbm [thread:$0]  %s225, 32, %s3, [#allocation3]
    $region17: #{simple_cnn_forward.9} parent=1 // pred_fallthru
      _
    // Predicated region
    $region18: #{simple_cnn_forward.9} parent=1 // pred_check
      _
    $region19: #{simple_cnn_forward.9} parent=1 // pred_check_branch
      %229 = sbr.rel (0) target = $region21
    $region20: #{simple_cnn_forward.9} parent=1 // pred_region
      %230 = dma.done [#allocation3], 32
    $region21: #{simple_cnn_forward.9} parent=1 // pred_fallthru
      _
    %231 = vsyncpa [#allocation3], 1

// kernel: simple_cnn_forward.8
$region0: #{simple_cnn_forward.8}
  #allocation0 [shape = 'u32[]', space=smem, size = 0x4, offset = 0x4, fixed_abs, tag = 'smem constant byte address 0x4 - core index']
  #allocation1 [shape = 'u32[144,128]{1,0:T(1,128)}', space=vmem, size = 0x12000, scoped, tag = 'internal scratch']
  %s0 = inlined_call_operand.vmem [shape: bf16[2,2048], index: 0, kind: input, shape index: {}]
  %s1 = inlined_call_operand.vmem [shape: bf16[2048,256], index: 1, kind: input, shape index: {}]
  %s2 = inlined_call_operand.vmem [shape: f32[1,256], index: 2, kind: input, shape index: {}]
  %s3 = inlined_call_operand.vmem [shape: f32[2,256], index: 3, kind: output, shape index: {}]
  %s4 = sld [smem:[#allocation0]]
  $region22: #{simple_cnn_forward.8} parent=0
    _
  %s6 = ssub.s32 1, %s4
  %s7 = scalar_select 0, %s6, %s4
  // Predicated region
  $region2: #{simple_cnn_forward.8} parent=0 // pred_check
    _
  $region3: #{simple_cnn_forward.8} parent=0 // pred_check_branch
    %9 = sbr.rel (0) target = $region5
  $region4: #{simple_cnn_forward.8} parent=0 // pred_region
    _
  $region5: #{simple_cnn_forward.8} parent=0 // pred_fallthru
    _
  // Predicated region
  $region6: #{simple_cnn_forward.8} parent=0 // pred_check
    _
  $region7: #{simple_cnn_forward.8} parent=0 // pred_check_branch
    %11 = sbr.rel (0) target = $region9
  $region8: #{simple_cnn_forward.8} parent=0 // pred_region
    _
  $region9: #{simple_cnn_forward.8} parent=0 // pred_fallthru
    _
  // Predicated region
  $region10: #{simple_cnn_forward.8} parent=0 // pred_check
    _
  $region11: #{simple_cnn_forward.8} parent=0 // pred_check_branch
    %13 = sbr.rel (0) target = $region13
  $region12: #{simple_cnn_forward.8} parent=0 // pred_region
    _
  $region13: #{simple_cnn_forward.8} parent=0 // pred_fallthru
    _
  %v14 = vld [vmem:[%s0] sm:$0xff]
  %v15 = vld [vmem:[%s0 + $0x8] sm:$0xff]
  %v16 = vld [vmem:[%s1] sm:$0xff]
  %v17 = vld [vmem:[%s1 + $0x8] sm:$0xff]
  %v18 = vld [vmem:[%s1 + $0x10] sm:$0xff]
  %v19 = vld [vmem:[%s1 + $0x18] sm:$0xff]
  %v20 = vld [vmem:[%s1 + $0x20] sm:$0xff]
  %v21 = vld [vmem:[%s1 + $0x28] sm:$0xff]
  %v22 = vld [vmem:[%s1 + $0x30] sm:$0xff]
  %v23 = vld [vmem:[%s1 + $0x38] sm:$0xff]
  %v24 = vld [vmem:[%s1 + $0x40] sm:$0xff]
  %v25 = vld [vmem:[%s1 + $0x48] sm:$0xff]
  %v26 = vld [vmem:[%s1 + $0x50] sm:$0xff]
  %v27 = vld [vmem:[%s1 + $0x58] sm:$0xff]
  %v28 = vld [vmem:[%s1 + $0x60] sm:$0xff]
  %v29 = vld [vmem:[%s1 + $0x68] sm:$0xff]
  %v30 = vld [vmem:[%s1 + $0x70] sm:$0xff]
  %v31 = vld [vmem:[%s1 + $0x78] sm:$0xff]
  %v32 = vld [vmem:[%s1 + $0x80] sm:$0xff]
  %v33 = vld [vmem:[%s1 + $0x88] sm:$0xff]
  %v34 = vld [vmem:[%s1 + $0x90] sm:$0xff]
  %v35 = vld [vmem:[%s1 + $0x98] sm:$0xff]
  %v36 = vld [vmem:[%s1 + $0xa0] sm:$0xff]
  %v37 = vld [vmem:[%s1 + $0xa8] sm:$0xff]
  %v38 = vld [vmem:[%s1 + $0xb0] sm:$0xff]
  %v39 = vld [vmem:[%s1 + $0xb8] sm:$0xff]
  %v40 = vld [vmem:[%s1 + $0xc0] sm:$0xff]
  %v41 = vld [vmem:[%s1 + $0xc8] sm:$0xff]
  %v42 = vld [vmem:[%s1 + $0xd0] sm:$0xff]
  %v43 = vld [vmem:[%s1 + $0xd8] sm:$0xff]
  %v44 = vld [vmem:[%s1 + $0xe0] sm:$0xff]
  %v45 = vld [vmem:[%s1 + $0xe8] sm:$0xff]
  %v46 = vld [vmem:[%s1 + $0xf0] sm:$0xff]
  %v47 = vld [vmem:[%s1 + $0xf8] sm:$0xff]
  %v48 = vld [vmem:[%s1 + $0x100] sm:$0xff]
  %v49 = vld [vmem:[%s1 + $0x108] sm:$0xff]
  %v50 = vld [vmem:[%s1 + $0x110] sm:$0xff]
  %v51 = vld [vmem:[%s1 + $0x118] sm:$0xff]
  %v52 = vld [vmem:[%s1 + $0x120] sm:$0xff]
  %v53 = vld [vmem:[%s1 + $0x128] sm:$0xff]
  %v54 = vld [vmem:[%s1 + $0x130] sm:$0xff]
  %v55 = vld [vmem:[%s1 + $0x138] sm:$0xff]
  %v56 = vld [vmem:[%s1 + $0x140] sm:$0xff]
  %v57 = vld [vmem:[%s1 + $0x148] sm:$0xff]
  %v58 = vld [vmem:[%s1 + $0x150] sm:$0xff]
  %v59 = vld [vmem:[%s1 + $0x158] sm:$0xff]
  %v60 = vld [vmem:[%s1 + $0x160] sm:$0xff]
  %v61 = vld [vmem:[%s1 + $0x168] sm:$0xff]
  %v62 = vld [vmem:[%s1 + $0x170] sm:$0xff]
  %v63 = vld [vmem:[%s1 + $0x178] sm:$0xff]
  %v64 = vld [vmem:[%s1 + $0x180] sm:$0xff]
  %v65 = vld [vmem:[%s1 + $0x188] sm:$0xff]
  %v66 = vld [vmem:[%s1 + $0x190] sm:$0xff]
  %v67 = vld [vmem:[%s1 + $0x198] sm:$0xff]
  %v68 = vld [vmem:[%s1 + $0x1a0] sm:$0xff]
  %v69 = vld [vmem:[%s1 + $0x1a8] sm:$0xff]
  %v70 = vld [vmem:[%s1 + $0x1b0] sm:$0xff]
  %v71 = vld [vmem:[%s1 + $0x1b8] sm:$0xff]
  %v72 = vld [vmem:[%s1 + $0x1c0] sm:$0xff]
  %v73 = vld [vmem:[%s1 + $0x1c8] sm:$0xff]
  %v74 = vld [vmem:[%s1 + $0x1d0] sm:$0xff]
  %v75 = vld [vmem:[%s1 + $0x1d8] sm:$0xff]
  %v76 = vld [vmem:[%s1 + $0x1e0] sm:$0xff]
  %v77 = vld [vmem:[%s1 + $0x1e8] sm:$0xff]
  %v78 = vld [vmem:[%s1 + $0x1f0] sm:$0xff]
  %v79 = vld [vmem:[%s1 + $0x1f8] sm:$0xff]
  %v80 = vld [vmem:[%s1 + $0x200] sm:$0xff]
  %v81 = vld [vmem:[%s1 + $0x208] sm:$0xff]
  %v82 = vld [vmem:[%s1 + $0x210] sm:$0xff]
  %v83 = vld [vmem:[%s1 + $0x218] sm:$0xff]
  %v84 = vld [vmem:[%s1 + $0x220] sm:$0xff]
  %v85 = vld [vmem:[%s1 + $0x228] sm:$0xff]
  %v86 = vld [vmem:[%s1 + $0x230] sm:$0xff]
  %v87 = vld [vmem:[%s1 + $0x238] sm:$0xff]
  %v88 = vld [vmem:[%s1 + $0x240] sm:$0xff]
  %v89 = vld [vmem:[%s1 + $0x248] sm:$0xff]
  %v90 = vld [vmem:[%s1 + $0x250] sm:$0xff]
  %v91 = vld [vmem:[%s1 + $0x258] sm:$0xff]
  %v92 = vld [vmem:[%s1 + $0x260] sm:$0xff]
  %v93 = vld [vmem:[%s1 + $0x268] sm:$0xff]
  %v94 = vld [vmem:[%s1 + $0x270] sm:$0xff]
  %v95 = vld [vmem:[%s1 + $0x278] sm:$0xff]
  %v96 = vld [vmem:[%s1 + $0x280] sm:$0xff]
  %v97 = vld [vmem:[%s1 + $0x288] sm:$0xff]
  %v98 = vld [vmem:[%s1 + $0x290] sm:$0xff]
  %v99 = vld [vmem:[%s1 + $0x298] sm:$0xff]
  %v100 = vld [vmem:[%s1 + $0x2a0] sm:$0xff]
  %v101 = vld [vmem:[%s1 + $0x2a8] sm:$0xff]
  %v102 = vld [vmem:[%s1 + $0x2b0] sm:$0xff]
  %v103 = vld [vmem:[%s1 + $0x2b8] sm:$0xff]
  %v104 = vld [vmem:[%s1 + $0x2c0] sm:$0xff]
  %v105 = vld [vmem:[%s1 + $0x2c8] sm:$0xff]
  %v106 = vld [vmem:[%s1 + $0x2d0] sm:$0xff]
  %v107 = vld [vmem:[%s1 + $0x2d8] sm:$0xff]
  %v108 = vld [vmem:[%s1 + $0x2e0] sm:$0xff]
  %v109 = vld [vmem:[%s1 + $0x2e8] sm:$0xff]
  %v110 = vld [vmem:[%s1 + $0x2f0] sm:$0xff]
  %v111 = vld [vmem:[%s1 + $0x2f8] sm:$0xff]
  %v112 = vld [vmem:[%s1 + $0x300] sm:$0xff]
  %v113 = vld [vmem:[%s1 + $0x308] sm:$0xff]
  %v114 = vld [vmem:[%s1 + $0x310] sm:$0xff]
  %v115 = vld [vmem:[%s1 + $0x318] sm:$0xff]
  %v116 = vld [vmem:[%s1 + $0x320] sm:$0xff]
  %v117 = vld [vmem:[%s1 + $0x328] sm:$0xff]
  %v118 = vld [vmem:[%s1 + $0x330] sm:$0xff]
  %v119 = vld [vmem:[%s1 + $0x338] sm:$0xff]
  %v120 = vld [vmem:[%s1 + $0x340] sm:$0xff]
  %v121 = vld [vmem:[%s1 + $0x348] sm:$0xff]
  %v122 = vld [vmem:[%s1 + $0x350] sm:$0xff]
  %v123 = vld [vmem:[%s1 + $0x358] sm:$0xff]
  %v124 = vld [vmem:[%s1 + $0x360] sm:$0xff]
  %v125 = vld [vmem:[%s1 + $0x368] sm:$0xff]
  %v126 = vld [vmem:[%s1 + $0x370] sm:$0xff]
  %v127 = vld [vmem:[%s1 + $0x378] sm:$0xff]
  %v128 = vld [vmem:[%s1 + $0x380] sm:$0xff]
  %v129 = vld [vmem:[%s1 + $0x388] sm:$0xff]
  %v130 = vld [vmem:[%s1 + $0x390] sm:$0xff]
  %v131 = vld [vmem:[%s1 + $0x398] sm:$0xff]
  %v132 = vld [vmem:[%s1 + $0x3a0] sm:$0xff]
  %v133 = vld [vmem:[%s1 + $0x3a8] sm:$0xff]
  %v134 = vld [vmem:[%s1 + $0x3b0] sm:$0xff]
  %v135 = vld [vmem:[%s1 + $0x3b8] sm:$0xff]
  %v136 = vld [vmem:[%s1 + $0x3c0] sm:$0xff]
  %v137 = vld [vmem:[%s1 + $0x3c8] sm:$0xff]
  %v138 = vld [vmem:[%s1 + $0x3d0] sm:$0xff]
  %v139 = vld [vmem:[%s1 + $0x3d8] sm:$0xff]
  %v140 = vld [vmem:[%s1 + $0x3e0] sm:$0xff]
  %v141 = vld [vmem:[%s1 + $0x3e8] sm:$0xff]
  %v142 = vld [vmem:[%s1 + $0x3f0] sm:$0xff]
  %v143 = vld [vmem:[%s1 + $0x3f8] sm:$0xff]
  %v144 = vld [vmem:[%s1 + $0x400] sm:$0xff]
  %v145 = vld [vmem:[%s1 + $0x408] sm:$0xff]
  %v146 = vld [vmem:[%s1 + $0x410] sm:$0xff]
  %v147 = vld [vmem:[%s1 + $0x418] sm:$0xff]
  %v148 = vld [vmem:[%s1 + $0x420] sm:$0xff]
  %v149 = vld [vmem:[%s1 + $0x428] sm:$0xff]
  %v150 = vld [vmem:[%s1 + $0x430] sm:$0xff]
  %v151 = vld [vmem:[%s1 + $0x438] sm:$0xff]
  %v152 = vld [vmem:[%s1 + $0x440] sm:$0xff]
  %v153 = vld [vmem:[%s1 + $0x448] sm:$0xff]
  %v154 = vld [vmem:[%s1 + $0x450] sm:$0xff]
  %v155 = vld [vmem:[%s1 + $0x458] sm:$0xff]
  %v156 = vld [vmem:[%s1 + $0x460] sm:$0xff]
  %v157 = vld [vmem:[%s1 + $0x468] sm:$0xff]
  %v158 = vld [vmem:[%s1 + $0x470] sm:$0xff]
  %v159 = vld [vmem:[%s1 + $0x478] sm:$0xff]
  %v160 = vld [vmem:[%s1 + $0x480] sm:$0xff]
  %v161 = vld [vmem:[%s1 + $0x488] sm:$0xff]
  %v162 = vld [vmem:[%s1 + $0x490] sm:$0xff]
  %v163 = vld [vmem:[%s1 + $0x498] sm:$0xff]
  %v164 = vld [vmem:[%s1 + $0x4a0] sm:$0xff]
  %v165 = vld [vmem:[%s1 + $0x4a8] sm:$0xff]
  %v166 = vld [vmem:[%s1 + $0x4b0] sm:$0xff]
  %v167 = vld [vmem:[%s1 + $0x4b8] sm:$0xff]
  %v168 = vld [vmem:[%s1 + $0x4c0] sm:$0xff]
  %v169 = vld [vmem:[%s1 + $0x4c8] sm:$0xff]
  %v170 = vld [vmem:[%s1 + $0x4d0] sm:$0xff]
  %v171 = vld [vmem:[%s1 + $0x4d8] sm:$0xff]
  %v172 = vld [vmem:[%s1 + $0x4e0] sm:$0xff]
  %v173 = vld [vmem:[%s1 + $0x4e8] sm:$0xff]
  %v174 = vld [vmem:[%s1 + $0x4f0] sm:$0xff]
  %v175 = vld [vmem:[%s1 + $0x4f8] sm:$0xff]
  %v176 = vld [vmem:[%s1 + $0x500] sm:$0xff]
  %v177 = vld [vmem:[%s1 + $0x508] sm:$0xff]
  %v178 = vld [vmem:[%s1 + $0x510] sm:$0xff]
  %v179 = vld [vmem:[%s1 + $0x518] sm:$0xff]
  %v180 = vld [vmem:[%s1 + $0x520] sm:$0xff]
  %v181 = vld [vmem:[%s1 + $0x528] sm:$0xff]
  %v182 = vld [vmem:[%s1 + $0x530] sm:$0xff]
  %v183 = vld [vmem:[%s1 + $0x538] sm:$0xff]
  %v184 = vld [vmem:[%s1 + $0x540] sm:$0xff]
  %v185 = vld [vmem:[%s1 + $0x548] sm:$0xff]
  %v186 = vld [vmem:[%s1 + $0x550] sm:$0xff]
  %v187 = vld [vmem:[%s1 + $0x558] sm:$0xff]
  %v188 = vld [vmem:[%s1 + $0x560] sm:$0xff]
  %v189 = vld [vmem:[%s1 + $0x568] sm:$0xff]
  %v190 = vld [vmem:[%s1 + $0x570] sm:$0xff]
  %v191 = vld [vmem:[%s1 + $0x578] sm:$0xff]
  %v192 = vld [vmem:[%s1 + $0x580] sm:$0xff]
  %v193 = vld [vmem:[%s1 + $0x588] sm:$0xff]
  %v194 = vld [vmem:[%s1 + $0x590] sm:$0xff]
  %v195 = vld [vmem:[%s1 + $0x598] sm:$0xff]
  %v196 = vld [vmem:[%s1 + $0x5a0] sm:$0xff]
  %v197 = vld [vmem:[%s1 + $0x5a8] sm:$0xff]
  %v198 = vld [vmem:[%s1 + $0x5b0] sm:$0xff]
  %v199 = vld [vmem:[%s1 + $0x5b8] sm:$0xff]
  %v200 = vld [vmem:[%s1 + $0x5c0] sm:$0xff]
  %v201 = vld [vmem:[%s1 + $0x5c8] sm:$0xff]
  %v202 = vld [vmem:[%s1 + $0x5d0] sm:$0xff]
  %v203 = vld [vmem:[%s1 + $0x5d8] sm:$0xff]
  %v204 = vld [vmem:[%s1 + $0x5e0] sm:$0xff]
  %v205 = vld [vmem:[%s1 + $0x5e8] sm:$0xff]
  %v206 = vld [vmem:[%s1 + $0x5f0] sm:$0xff]
  %v207 = vld [vmem:[%s1 + $0x5f8] sm:$0xff]
  %v208 = vld [vmem:[%s1 + $0x600] sm:$0xff]
  %v209 = vld [vmem:[%s1 + $0x608] sm:$0xff]
  %v210 = vld [vmem:[%s1 + $0x610] sm:$0xff]
  %v211 = vld [vmem:[%s1 + $0x618] sm:$0xff]
  %v212 = vld [vmem:[%s1 + $0x620] sm:$0xff]
  %v213 = vld [vmem:[%s1 + $0x628] sm:$0xff]
  %v214 = vld [vmem:[%s1 + $0x630] sm:$0xff]
  %v215 = vld [vmem:[%s1 + $0x638] sm:$0xff]
  %v216 = vld [vmem:[%s1 + $0x640] sm:$0xff]
  %v217 = vld [vmem:[%s1 + $0x648] sm:$0xff]
  %v218 = vld [vmem:[%s1 + $0x650] sm:$0xff]
  %v219 = vld [vmem:[%s1 + $0x658] sm:$0xff]
  %v220 = vld [vmem:[%s1 + $0x660] sm:$0xff]
  %v221 = vld [vmem:[%s1 + $0x668] sm:$0xff]
  %v222 = vld [vmem:[%s1 + $0x670] sm:$0xff]
  %v223 = vld [vmem:[%s1 + $0x678] sm:$0xff]
  %v224 = vld [vmem:[%s1 + $0x680] sm:$0xff]
  %v225 = vld [vmem:[%s1 + $0x688] sm:$0xff]
  %v226 = vld [vmem:[%s1 + $0x690] sm:$0xff]
  %v227 = vld [vmem:[%s1 + $0x698] sm:$0xff]
  %v228 = vld [vmem:[%s1 + $0x6a0] sm:$0xff]
  %v229 = vld [vmem:[%s1 + $0x6a8] sm:$0xff]
  %v230 = vld [vmem:[%s1 + $0x6b0] sm:$0xff]
  %v231 = vld [vmem:[%s1 + $0x6b8] sm:$0xff]
  %v232 = vld [vmem:[%s1 + $0x6c0] sm:$0xff]
  %v233 = vld [vmem:[%s1 + $0x6c8] sm:$0xff]
  %v234 = vld [vmem:[%s1 + $0x6d0] sm:$0xff]
  %v235 = vld [vmem:[%s1 + $0x6d8] sm:$0xff]
  %v236 = vld [vmem:[%s1 + $0x6e0] sm:$0xff]
  %v237 = vld [vmem:[%s1 + $0x6e8] sm:$0xff]
  %v238 = vld [vmem:[%s1 + $0x6f0] sm:$0xff]
  %v239 = vld [vmem:[%s1 + $0x6f8] sm:$0xff]
  %v240 = vld [vmem:[%s1 + $0x700] sm:$0xff]
  %v241 = vld [vmem:[%s1 + $0x708] sm:$0xff]
  %v242 = vld [vmem:[%s1 + $0x710] sm:$0xff]
  %v243 = vld [vmem:[%s1 + $0x718] sm:$0xff]
  %v244 = vld [vmem:[%s1 + $0x720] sm:$0xff]
  %v245 = vld [vmem:[%s1 + $0x728] sm:$0xff]
  %v246 = vld [vmem:[%s1 + $0x730] sm:$0xff]
  %v247 = vld [vmem:[%s1 + $0x738] sm:$0xff]
  %v248 = vld [vmem:[%s1 + $0x740] sm:$0xff]
  %v249 = vld [vmem:[%s1 + $0x748] sm:$0xff]
  %v250 = vld [vmem:[%s1 + $0x750] sm:$0xff]
  %v251 = vld [vmem:[%s1 + $0x758] sm:$0xff]
  %v252 = vld [vmem:[%s1 + $0x760] sm:$0xff]
  %v253 = vld [vmem:[%s1 + $0x768] sm:$0xff]
  %v254 = vld [vmem:[%s1 + $0x770] sm:$0xff]
  %v255 = vld [vmem:[%s1 + $0x778] sm:$0xff]
  %v256 = vld [vmem:[%s1 + $0x780] sm:$0xff]
  %v257 = vld [vmem:[%s1 + $0x788] sm:$0xff]
  %v258 = vld [vmem:[%s1 + $0x790] sm:$0xff]
  %v259 = vld [vmem:[%s1 + $0x798] sm:$0xff]
  %v260 = vld [vmem:[%s1 + $0x7a0] sm:$0xff]
  %v261 = vld [vmem:[%s1 + $0x7a8] sm:$0xff]
  %v262 = vld [vmem:[%s1 + $0x7b0] sm:$0xff]
  %v263 = vld [vmem:[%s1 + $0x7b8] sm:$0xff]
  %v264 = vld [vmem:[%s1 + $0x7c0] sm:$0xff]
  %v265 = vld [vmem:[%s1 + $0x7c8] sm:$0xff]
  %v266 = vld [vmem:[%s1 + $0x7d0] sm:$0xff]
  %v267 = vld [vmem:[%s1 + $0x7d8] sm:$0xff]
  %v268 = vld [vmem:[%s1 + $0x7e0] sm:$0xff]
  %v269 = vld [vmem:[%s1 + $0x7e8] sm:$0xff]
  %v270 = vld [vmem:[%s1 + $0x7f0] sm:$0xff]
  %v271 = vld [vmem:[%s1 + $0x7f8] sm:$0xff]
  %v272 = vld [vmem:[%s2] sm:$0x3]
  %v274 = vlaneseq
  %v275 = vshrl.u32 %v274, 7
  %v276 = vsub.s32 0, %v275
  %v277 = vrot.slane %v272, %v276
  %v278 = vlaneseq
  %v279 = vshrl.u32 %v278, 7
  %v280 = vsub.s32 1, %v279
  %v281 = vrot.slane %v272, %v280
  %v286 = vcombine.high %v14, %v14
  %v288 = vunpack.c.l.s4 1966171168
  %v289 = vunpack.c.0.s8 %v288
  %v290 = vlaneseq
  %v291 = vshrl.u32 %v290, 7
  %v292 = vsub.s32 %v289, %v291
  %v293 = vrot.slane %v14, %v292
  %v295 = vunpack.c.l.s4 1966171168
  %v296 = vunpack.c.0.s8 %v295
  %v297 = vlaneseq
  %v298 = vshrl.u32 %v297, 7
  %v299 = vsub.s32 %v296, %v298
  %v300 = vrot.slane %v286, %v299
  %v301 = vcombine.high %v293, %v293
  %v302 = vcombine.high %v300, %v300
  %v304 = vunpack.c.l.s4 1966171168
  %v305 = vunpack.c.0.s8 %v304
  %v306 = vlaneseq
  %v307 = vshrl.u32 %v306, 7
  %v308 = vsub.s32 %v305, %v307
  %v309 = vrot.slane %v293, %v308
  %v311 = vunpack.c.l.s4 1966171168
  %v312 = vunpack.c.0.s8 %v311
  %v313 = vlaneseq
  %v314 = vshrl.u32 %v313, 7
  %v315 = vsub.s32 %v312, %v314
  %v316 = vrot.slane %v300, %v315
  %v318 = vunpack.c.l.s4 1966171168
  %v319 = vunpack.c.0.s8 %v318
  %v320 = vlaneseq
  %v321 = vshrl.u32 %v320, 7
  %v322 = vsub.s32 %v319, %v321
  %v323 = vrot.slane %v301, %v322
  %v325 = vunpack.c.l.s4 1966171168
  %v326 = vunpack.c.0.s8 %v325
  %v327 = vlaneseq
  %v328 = vshrl.u32 %v327, 7
  %v329 = vsub.s32 %v326, %v328
  %v330 = vrot.slane %v302, %v329
  %v331 = vcombine.high %v309, %v309
  %v332 = vcombine.high %v316, %v316
  %v333 = vcombine.high %v323, %v323
  %v334 = vcombine.high %v330, %v330
  %v335 = vcombine.high %v15, %v15
  %v337 = vunpack.c.l.s4 1966171168
  %v338 = vunpack.c.0.s8 %v337
  %v339 = vlaneseq
  %v340 = vshrl.u32 %v339, 7
  %v341 = vsub.s32 %v338, %v340
  %v342 = vrot.slane %v15, %v341
  %v344 = vunpack.c.l.s4 1966171168
  %v345 = vunpack.c.0.s8 %v344
  %v346 = vlaneseq
  %v347 = vshrl.u32 %v346, 7
  %v348 = vsub.s32 %v345, %v347
  %v349 = vrot.slane %v335, %v348
  %v350 = vcombine.high %v342, %v342
  %v351 = vcombine.high %v349, %v349
  %v353 = vunpack.c.l.s4 1966171168
  %v354 = vunpack.c.0.s8 %v353
  %v355 = vlaneseq
  %v356 = vshrl.u32 %v355, 7
  %v357 = vsub.s32 %v354, %v356
  %v358 = vrot.slane %v342, %v357
  %v360 = vunpack.c.l.s4 1966171168
  %v361 = vunpack.c.0.s8 %v360
  %v362 = vlaneseq
  %v363 = vshrl.u32 %v362, 7
  %v364 = vsub.s32 %v361, %v363
  %v365 = vrot.slane %v349, %v364
  %v367 = vunpack.c.l.s4 1966171168
  %v368 = vunpack.c.0.s8 %v367
  %v369 = vlaneseq
  %v370 = vshrl.u32 %v369, 7
  %v371 = vsub.s32 %v368, %v370
  %v372 = vrot.slane %v350, %v371
  %v374 = vunpack.c.l.s4 1966171168
  %v375 = vunpack.c.0.s8 %v374
  %v376 = vlaneseq
  %v377 = vshrl.u32 %v376, 7
  %v378 = vsub.s32 %v375, %v377
  %v379 = vrot.slane %v351, %v378
  %v380 = vcombine.high %v358, %v358
  %v381 = vcombine.high %v365, %v365
  %v382 = vcombine.high %v372, %v372
  %v383 = vcombine.high %v379, %v379
  %v656 = vunpack.c.l.b16 %v16
  %v657 = vunpack.c.h.b16 %v16
  %v658 = vunpack.c.l.b16 %v17
  %v659 = vunpack.c.h.b16 %v17
  %v660 = vunpack.c.l.b16 %v18
  %v661 = vunpack.c.h.b16 %v18
  %v662 = vunpack.c.l.b16 %v19
  %v663 = vunpack.c.h.b16 %v19
  %v664 = vunpack.c.l.b16 %v20
  %v665 = vunpack.c.h.b16 %v20
  %v666 = vunpack.c.l.b16 %v21
  %v667 = vunpack.c.h.b16 %v21
  %v668 = vunpack.c.l.b16 %v22
  %v669 = vunpack.c.h.b16 %v22
  %v670 = vunpack.c.l.b16 %v23
  %v671 = vunpack.c.h.b16 %v23
  %v672 = vunpack.c.l.b16 %v24
  %v673 = vunpack.c.h.b16 %v24
  %v674 = vunpack.c.l.b16 %v25
  %v675 = vunpack.c.h.b16 %v25
  %v676 = vunpack.c.l.b16 %v26
  %v677 = vunpack.c.h.b16 %v26
  %v678 = vunpack.c.l.b16 %v27
  %v679 = vunpack.c.h.b16 %v27
  %v680 = vunpack.c.l.b16 %v28
  %v681 = vunpack.c.h.b16 %v28
  %v682 = vunpack.c.l.b16 %v29
  %v683 = vunpack.c.h.b16 %v29
  %v684 = vunpack.c.l.b16 %v30
  %v685 = vunpack.c.h.b16 %v30
  %v686 = vunpack.c.l.b16 %v31
  %v687 = vunpack.c.h.b16 %v31
  %v688 = vunpack.c.l.b16 %v32
  %v689 = vunpack.c.h.b16 %v32
  %v690 = vunpack.c.l.b16 %v33
  %v691 = vunpack.c.h.b16 %v33
  %v692 = vunpack.c.l.b16 %v34
  %v693 = vunpack.c.h.b16 %v34
  %v694 = vunpack.c.l.b16 %v35
  %v695 = vunpack.c.h.b16 %v35
  %v696 = vunpack.c.l.b16 %v36
  %v697 = vunpack.c.h.b16 %v36
  %v698 = vunpack.c.l.b16 %v37
  %v699 = vunpack.c.h.b16 %v37
  %v700 = vunpack.c.l.b16 %v38
  %v701 = vunpack.c.h.b16 %v38
  %v702 = vunpack.c.l.b16 %v39
  %v703 = vunpack.c.h.b16 %v39
  %v704 = vunpack.c.l.b16 %v40
  %v705 = vunpack.c.h.b16 %v40
  %v706 = vunpack.c.l.b16 %v41
  %v707 = vunpack.c.h.b16 %v41
  %v708 = vunpack.c.l.b16 %v42
  %v709 = vunpack.c.h.b16 %v42
  %v710 = vunpack.c.l.b16 %v43
  %v711 = vunpack.c.h.b16 %v43
  %v712 = vunpack.c.l.b16 %v44
  %v713 = vunpack.c.h.b16 %v44
  %v714 = vunpack.c.l.b16 %v45
  %v715 = vunpack.c.h.b16 %v45
  %v716 = vunpack.c.l.b16 %v46
  %v717 = vunpack.c.h.b16 %v46
  %v718 = vunpack.c.l.b16 %v47
  %v719 = vunpack.c.h.b16 %v47
  %v720 = vunpack.c.l.b16 %v48
  %v721 = vunpack.c.h.b16 %v48
  %v722 = vunpack.c.l.b16 %v49
  %v723 = vunpack.c.h.b16 %v49
  %v724 = vunpack.c.l.b16 %v50
  %v725 = vunpack.c.h.b16 %v50
  %v726 = vunpack.c.l.b16 %v51
  %v727 = vunpack.c.h.b16 %v51
  %v728 = vunpack.c.l.b16 %v52
  %v729 = vunpack.c.h.b16 %v52
  %v730 = vunpack.c.l.b16 %v53
  %v731 = vunpack.c.h.b16 %v53
  %v732 = vunpack.c.l.b16 %v54
  %v733 = vunpack.c.h.b16 %v54
  %v734 = vunpack.c.l.b16 %v55
  %v735 = vunpack.c.h.b16 %v55
  %v736 = vunpack.c.l.b16 %v56
  %v737 = vunpack.c.h.b16 %v56
  %v738 = vunpack.c.l.b16 %v57
  %v739 = vunpack.c.h.b16 %v57
  %v740 = vunpack.c.l.b16 %v58
  %v741 = vunpack.c.h.b16 %v58
  %v742 = vunpack.c.l.b16 %v59
  %v743 = vunpack.c.h.b16 %v59
  %v744 = vunpack.c.l.b16 %v60
  %v745 = vunpack.c.h.b16 %v60
  %v746 = vunpack.c.l.b16 %v61
  %v747 = vunpack.c.h.b16 %v61
  %v748 = vunpack.c.l.b16 %v62
  %v749 = vunpack.c.h.b16 %v62
  %v750 = vunpack.c.l.b16 %v63
  %v751 = vunpack.c.h.b16 %v63
  %v752 = vunpack.c.l.b16 %v64
  %v753 = vunpack.c.h.b16 %v64
  %v754 = vunpack.c.l.b16 %v65
  %v755 = vunpack.c.h.b16 %v65
  %v756 = vunpack.c.l.b16 %v66
  %v757 = vunpack.c.h.b16 %v66
  %v758 = vunpack.c.l.b16 %v67
  %v759 = vunpack.c.h.b16 %v67
  %v760 = vunpack.c.l.b16 %v68
  %v761 = vunpack.c.h.b16 %v68
  %v762 = vunpack.c.l.b16 %v69
  %v763 = vunpack.c.h.b16 %v69
  %v764 = vunpack.c.l.b16 %v70
  %v765 = vunpack.c.h.b16 %v70
  %v766 = vunpack.c.l.b16 %v71
  %v767 = vunpack.c.h.b16 %v71
  %v768 = vunpack.c.l.b16 %v72
  %v769 = vunpack.c.h.b16 %v72
  %v770 = vunpack.c.l.b16 %v73
  %v771 = vunpack.c.h.b16 %v73
  %v772 = vunpack.c.l.b16 %v74
  %v773 = vunpack.c.h.b16 %v74
  %v774 = vunpack.c.l.b16 %v75
  %v775 = vunpack.c.h.b16 %v75
  %v776 = vunpack.c.l.b16 %v76
  %v777 = vunpack.c.h.b16 %v76
  %v778 = vunpack.c.l.b16 %v77
  %v779 = vunpack.c.h.b16 %v77
  %v780 = vunpack.c.l.b16 %v78
  %v781 = vunpack.c.h.b16 %v78
  %v782 = vunpack.c.l.b16 %v79
  %v783 = vunpack.c.h.b16 %v79
  %v784 = vunpack.c.l.b16 %v80
  %v785 = vunpack.c.h.b16 %v80
  %v786 = vunpack.c.l.b16 %v81
  %v787 = vunpack.c.h.b16 %v81
  %v788 = vunpack.c.l.b16 %v82
  %v789 = vunpack.c.h.b16 %v82
  %v790 = vunpack.c.l.b16 %v83
  %v791 = vunpack.c.h.b16 %v83
  %v792 = vunpack.c.l.b16 %v84
  %v793 = vunpack.c.h.b16 %v84
  %v794 = vunpack.c.l.b16 %v85
  %v795 = vunpack.c.h.b16 %v85
  %v796 = vunpack.c.l.b16 %v86
  %v797 = vunpack.c.h.b16 %v86
  %v798 = vunpack.c.l.b16 %v87
  %v799 = vunpack.c.h.b16 %v87
  %v800 = vunpack.c.l.b16 %v88
  %v801 = vunpack.c.h.b16 %v88
  %v802 = vunpack.c.l.b16 %v89
  %v803 = vunpack.c.h.b16 %v89
  %v804 = vunpack.c.l.b16 %v90
  %v805 = vunpack.c.h.b16 %v90
  %v806 = vunpack.c.l.b16 %v91
  %v807 = vunpack.c.h.b16 %v91
  %v808 = vunpack.c.l.b16 %v92
  %v809 = vunpack.c.h.b16 %v92
  %v810 = vunpack.c.l.b16 %v93
  %v811 = vunpack.c.h.b16 %v93
  %v812 = vunpack.c.l.b16 %v94
  %v813 = vunpack.c.h.b16 %v94
  %v814 = vunpack.c.l.b16 %v95
  %v815 = vunpack.c.h.b16 %v95
  %v816 = vunpack.c.l.b16 %v96
  %v817 = vunpack.c.h.b16 %v96
  %v818 = vunpack.c.l.b16 %v97
  %v819 = vunpack.c.h.b16 %v97
  %v820 = vunpack.c.l.b16 %v98
  %v821 = vunpack.c.h.b16 %v98
  %v822 = vunpack.c.l.b16 %v99
  %v823 = vunpack.c.h.b16 %v99
  %v824 = vunpack.c.l.b16 %v100
  %v825 = vunpack.c.h.b16 %v100
  %v826 = vunpack.c.l.b16 %v101
  %v827 = vunpack.c.h.b16 %v101
  %v828 = vunpack.c.l.b16 %v102
  %v829 = vunpack.c.h.b16 %v102
  %v830 = vunpack.c.l.b16 %v103
  %v831 = vunpack.c.h.b16 %v103
  %v832 = vunpack.c.l.b16 %v104
  %v833 = vunpack.c.h.b16 %v104
  %v834 = vunpack.c.l.b16 %v105
  %v835 = vunpack.c.h.b16 %v105
  %v836 = vunpack.c.l.b16 %v106
  %v837 = vunpack.c.h.b16 %v106
  %v838 = vunpack.c.l.b16 %v107
  %v839 = vunpack.c.h.b16 %v107
  %v840 = vunpack.c.l.b16 %v108
  %v841 = vunpack.c.h.b16 %v108
  %v842 = vunpack.c.l.b16 %v109
  %v843 = vunpack.c.h.b16 %v109
  %v844 = vunpack.c.l.b16 %v110
  %v845 = vunpack.c.h.b16 %v110
  %v846 = vunpack.c.l.b16 %v111
  %v847 = vunpack.c.h.b16 %v111
  %v848 = vunpack.c.l.b16 %v112
  %v849 = vunpack.c.h.b16 %v112
  %v850 = vunpack.c.l.b16 %v113
  %v851 = vunpack.c.h.b16 %v113
  %v852 = vunpack.c.l.b16 %v114
  %v853 = vunpack.c.h.b16 %v114
  %v854 = vunpack.c.l.b16 %v115
  %v855 = vunpack.c.h.b16 %v115
  %v856 = vunpack.c.l.b16 %v116
  %v857 = vunpack.c.h.b16 %v116
  %v858 = vunpack.c.l.b16 %v117
  %v859 = vunpack.c.h.b16 %v117
  %v860 = vunpack.c.l.b16 %v118
  %v861 = vunpack.c.h.b16 %v118
  %v862 = vunpack.c.l.b16 %v119
  %v863 = vunpack.c.h.b16 %v119
  %v864 = vunpack.c.l.b16 %v120
  %v865 = vunpack.c.h.b16 %v120
  %v866 = vunpack.c.l.b16 %v121
  %v867 = vunpack.c.h.b16 %v121
  %v868 = vunpack.c.l.b16 %v122
  %v869 = vunpack.c.h.b16 %v122
  %v870 = vunpack.c.l.b16 %v123
  %v871 = vunpack.c.h.b16 %v123
  %v872 = vunpack.c.l.b16 %v124
  %v873 = vunpack.c.h.b16 %v124
  %v874 = vunpack.c.l.b16 %v125
  %v875 = vunpack.c.h.b16 %v125
  %v876 = vunpack.c.l.b16 %v126
  %v877 = vunpack.c.h.b16 %v126
  %v878 = vunpack.c.l.b16 %v127
  %v879 = vunpack.c.h.b16 %v127
  %v880 = vunpack.c.l.b16 %v128
  %v881 = vunpack.c.h.b16 %v128
  %v882 = vunpack.c.l.b16 %v129
  %v883 = vunpack.c.h.b16 %v129
  %v884 = vunpack.c.l.b16 %v130
  %v885 = vunpack.c.h.b16 %v130
  %v886 = vunpack.c.l.b16 %v131
  %v887 = vunpack.c.h.b16 %v131
  %v888 = vunpack.c.l.b16 %v132
  %v889 = vunpack.c.h.b16 %v132
  %v890 = vunpack.c.l.b16 %v133
  %v891 = vunpack.c.h.b16 %v133
  %v892 = vunpack.c.l.b16 %v134
  %v893 = vunpack.c.h.b16 %v134
  %v894 = vunpack.c.l.b16 %v135
  %v895 = vunpack.c.h.b16 %v135
  %v896 = vunpack.c.l.b16 %v136
  %v897 = vunpack.c.h.b16 %v136
  %v898 = vunpack.c.l.b16 %v137
  %v899 = vunpack.c.h.b16 %v137
  %v900 = vunpack.c.l.b16 %v138
  %v901 = vunpack.c.h.b16 %v138
  %v902 = vunpack.c.l.b16 %v139
  %v903 = vunpack.c.h.b16 %v139
  %v904 = vunpack.c.l.b16 %v140
  %v905 = vunpack.c.h.b16 %v140
  %v906 = vunpack.c.l.b16 %v141
  %v907 = vunpack.c.h.b16 %v141
  %v908 = vunpack.c.l.b16 %v142
  %v909 = vunpack.c.h.b16 %v142
  %v910 = vunpack.c.l.b16 %v143
  %v911 = vunpack.c.h.b16 %v143
  %v912 = vunpack.c.l.b16 %v144
  %v913 = vunpack.c.h.b16 %v144
  %v914 = vunpack.c.l.b16 %v145
  %v915 = vunpack.c.h.b16 %v145
  %v916 = vunpack.c.l.b16 %v146
  %v917 = vunpack.c.h.b16 %v146
  %v918 = vunpack.c.l.b16 %v147
  %v919 = vunpack.c.h.b16 %v147
  %v920 = vunpack.c.l.b16 %v148
  %v921 = vunpack.c.h.b16 %v148
  %v922 = vunpack.c.l.b16 %v149
  %v923 = vunpack.c.h.b16 %v149
  %v924 = vunpack.c.l.b16 %v150
  %v925 = vunpack.c.h.b16 %v150
  %v926 = vunpack.c.l.b16 %v151
  %v927 = vunpack.c.h.b16 %v151
  %v928 = vunpack.c.l.b16 %v152
  %v929 = vunpack.c.h.b16 %v152
  %v930 = vunpack.c.l.b16 %v153
  %v931 = vunpack.c.h.b16 %v153
  %v932 = vunpack.c.l.b16 %v154
  %v933 = vunpack.c.h.b16 %v154
  %v934 = vunpack.c.l.b16 %v155
  %v935 = vunpack.c.h.b16 %v155
  %v936 = vunpack.c.l.b16 %v156
  %v937 = vunpack.c.h.b16 %v156
  %v938 = vunpack.c.l.b16 %v157
  %v939 = vunpack.c.h.b16 %v157
  %v940 = vunpack.c.l.b16 %v158
  %v941 = vunpack.c.h.b16 %v158
  %v942 = vunpack.c.l.b16 %v159
  %v943 = vunpack.c.h.b16 %v159
  %v944 = vunpack.c.l.b16 %v160
  %v945 = vunpack.c.h.b16 %v160
  %v946 = vunpack.c.l.b16 %v161
  %v947 = vunpack.c.h.b16 %v161
  %v948 = vunpack.c.l.b16 %v162
  %v949 = vunpack.c.h.b16 %v162
  %v950 = vunpack.c.l.b16 %v163
  %v951 = vunpack.c.h.b16 %v163
  %v952 = vunpack.c.l.b16 %v164
  %v953 = vunpack.c.h.b16 %v164
  %v954 = vunpack.c.l.b16 %v165
  %v955 = vunpack.c.h.b16 %v165
  %v956 = vunpack.c.l.b16 %v166
  %v957 = vunpack.c.h.b16 %v166
  %v958 = vunpack.c.l.b16 %v167
  %v959 = vunpack.c.h.b16 %v167
  %v960 = vunpack.c.l.b16 %v168
  %v961 = vunpack.c.h.b16 %v168
  %v962 = vunpack.c.l.b16 %v169
  %v963 = vunpack.c.h.b16 %v169
  %v964 = vunpack.c.l.b16 %v170
  %v965 = vunpack.c.h.b16 %v170
  %v966 = vunpack.c.l.b16 %v171
  %v967 = vunpack.c.h.b16 %v171
  %v968 = vunpack.c.l.b16 %v172
  %v969 = vunpack.c.h.b16 %v172
  %v970 = vunpack.c.l.b16 %v173
  %v971 = vunpack.c.h.b16 %v173
  %v972 = vunpack.c.l.b16 %v174
  %v973 = vunpack.c.h.b16 %v174
  %v974 = vunpack.c.l.b16 %v175
  %v975 = vunpack.c.h.b16 %v175
  %v976 = vunpack.c.l.b16 %v176
  %v977 = vunpack.c.h.b16 %v176
  %v978 = vunpack.c.l.b16 %v177
  %v979 = vunpack.c.h.b16 %v177
  %v980 = vunpack.c.l.b16 %v178
  %v981 = vunpack.c.h.b16 %v178
  %v982 = vunpack.c.l.b16 %v179
  %v983 = vunpack.c.h.b16 %v179
  %v984 = vunpack.c.l.b16 %v180
  %v985 = vunpack.c.h.b16 %v180
  %v986 = vunpack.c.l.b16 %v181
  %v987 = vunpack.c.h.b16 %v181
  %v988 = vunpack.c.l.b16 %v182
  %v989 = vunpack.c.h.b16 %v182
  %v990 = vunpack.c.l.b16 %v183
  %v991 = vunpack.c.h.b16 %v183
  %v992 = vunpack.c.l.b16 %v184
  %v993 = vunpack.c.h.b16 %v184
  %v994 = vunpack.c.l.b16 %v185
  %v995 = vunpack.c.h.b16 %v185
  %v996 = vunpack.c.l.b16 %v186
  %v997 = vunpack.c.h.b16 %v186
  %v998 = vunpack.c.l.b16 %v187
  %v999 = vunpack.c.h.b16 %v187
  %v1000 = vunpack.c.l.b16 %v188
  %v1001 = vunpack.c.h.b16 %v188
  %v1002 = vunpack.c.l.b16 %v189
  %v1003 = vunpack.c.h.b16 %v189
  %v1004 = vunpack.c.l.b16 %v190
  %v1005 = vunpack.c.h.b16 %v190
  %v1006 = vunpack.c.l.b16 %v191
  %v1007 = vunpack.c.h.b16 %v191
  %v1008 = vunpack.c.l.b16 %v192
  %v1009 = vunpack.c.h.b16 %v192
  %v1010 = vunpack.c.l.b16 %v193
  %v1011 = vunpack.c.h.b16 %v193
  %v1012 = vunpack.c.l.b16 %v194
  %v1013 = vunpack.c.h.b16 %v194
  %v1014 = vunpack.c.l.b16 %v195
  %v1015 = vunpack.c.h.b16 %v195
  %v1016 = vunpack.c.l.b16 %v196
  %v1017 = vunpack.c.h.b16 %v196
  %v1018 = vunpack.c.l.b16 %v197
  %v1019 = vunpack.c.h.b16 %v197
  %v1020 = vunpack.c.l.b16 %v198
  %v1021 = vunpack.c.h.b16 %v198
  %v1022 = vunpack.c.l.b16 %v199
  %v1023 = vunpack.c.h.b16 %v199
  %v1024 = vunpack.c.l.b16 %v200
  %v1025 = vunpack.c.h.b16 %v200
  %v1026 = vunpack.c.l.b16 %v201
  %v1027 = vunpack.c.h.b16 %v201
  %v1028 = vunpack.c.l.b16 %v202
  %v1029 = vunpack.c.h.b16 %v202
  %v1030 = vunpack.c.l.b16 %v203
  %v1031 = vunpack.c.h.b16 %v203
  %v1032 = vunpack.c.l.b16 %v204
  %v1033 = vunpack.c.h.b16 %v204
  %v1034 = vunpack.c.l.b16 %v205
  %v1035 = vunpack.c.h.b16 %v205
  %v1036 = vunpack.c.l.b16 %v206
  %v1037 = vunpack.c.h.b16 %v206
  %v1038 = vunpack.c.l.b16 %v207
  %v1039 = vunpack.c.h.b16 %v207
  %v1040 = vunpack.c.l.b16 %v208
  %v1041 = vunpack.c.h.b16 %v208
  %v1042 = vunpack.c.l.b16 %v209
  %v1043 = vunpack.c.h.b16 %v209
  %v1044 = vunpack.c.l.b16 %v210
  %v1045 = vunpack.c.h.b16 %v210
  %v1046 = vunpack.c.l.b16 %v211
  %v1047 = vunpack.c.h.b16 %v211
  %v1048 = vunpack.c.l.b16 %v212
  %v1049 = vunpack.c.h.b16 %v212
  %v1050 = vunpack.c.l.b16 %v213
  %v1051 = vunpack.c.h.b16 %v213
  %v1052 = vunpack.c.l.b16 %v214
  %v1053 = vunpack.c.h.b16 %v214
  %v1054 = vunpack.c.l.b16 %v215
  %v1055 = vunpack.c.h.b16 %v215
  %v1056 = vunpack.c.l.b16 %v216
  %v1057 = vunpack.c.h.b16 %v216
  %v1058 = vunpack.c.l.b16 %v217
  %v1059 = vunpack.c.h.b16 %v217
  %v1060 = vunpack.c.l.b16 %v218
  %v1061 = vunpack.c.h.b16 %v218
  %v1062 = vunpack.c.l.b16 %v219
  %v1063 = vunpack.c.h.b16 %v219
  %v1064 = vunpack.c.l.b16 %v220
  %v1065 = vunpack.c.h.b16 %v220
  %v1066 = vunpack.c.l.b16 %v221
  %v1067 = vunpack.c.h.b16 %v221
  %v1068 = vunpack.c.l.b16 %v222
  %v1069 = vunpack.c.h.b16 %v222
  %v1070 = vunpack.c.l.b16 %v223
  %v1071 = vunpack.c.h.b16 %v223
  %v1072 = vunpack.c.l.b16 %v224
  %v1073 = vunpack.c.h.b16 %v224
  %v1074 = vunpack.c.l.b16 %v225
  %v1075 = vunpack.c.h.b16 %v225
  %v1076 = vunpack.c.l.b16 %v226
  %v1077 = vunpack.c.h.b16 %v226
  %v1078 = vunpack.c.l.b16 %v227
  %v1079 = vunpack.c.h.b16 %v227
  %v1080 = vunpack.c.l.b16 %v228
  %v1081 = vunpack.c.h.b16 %v228
  %v1082 = vunpack.c.l.b16 %v229
  %v1083 = vunpack.c.h.b16 %v229
  %v1084 = vunpack.c.l.b16 %v230
  %v1085 = vunpack.c.h.b16 %v230
  %v1086 = vunpack.c.l.b16 %v231
  %v1087 = vunpack.c.h.b16 %v231
  %v1088 = vunpack.c.l.b16 %v232
  %v1089 = vunpack.c.h.b16 %v232
  %v1090 = vunpack.c.l.b16 %v233
  %v1091 = vunpack.c.h.b16 %v233
  %v1092 = vunpack.c.l.b16 %v234
  %v1093 = vunpack.c.h.b16 %v234
  %v1094 = vunpack.c.l.b16 %v235
  %v1095 = vunpack.c.h.b16 %v235
  %v1096 = vunpack.c.l.b16 %v236
  %v1097 = vunpack.c.h.b16 %v236
  %v1098 = vunpack.c.l.b16 %v237
  %v1099 = vunpack.c.h.b16 %v237
  %v1100 = vunpack.c.l.b16 %v238
  %v1101 = vunpack.c.h.b16 %v238
  %v1102 = vunpack.c.l.b16 %v239
  %v1103 = vunpack.c.h.b16 %v239
  %v1104 = vunpack.c.l.b16 %v240
  %v1105 = vunpack.c.h.b16 %v240
  %v1106 = vunpack.c.l.b16 %v241
  %v1107 = vunpack.c.h.b16 %v241
  %v1108 = vunpack.c.l.b16 %v242
  %v1109 = vunpack.c.h.b16 %v242
  %v1110 = vunpack.c.l.b16 %v243
  %v1111 = vunpack.c.h.b16 %v243
  %v1112 = vunpack.c.l.b16 %v244
  %v1113 = vunpack.c.h.b16 %v244
  %v1114 = vunpack.c.l.b16 %v245
  %v1115 = vunpack.c.h.b16 %v245
  %v1116 = vunpack.c.l.b16 %v246
  %v1117 = vunpack.c.h.b16 %v246
  %v1118 = vunpack.c.l.b16 %v247
  %v1119 = vunpack.c.h.b16 %v247
  %v1120 = vunpack.c.l.b16 %v248
  %v1121 = vunpack.c.h.b16 %v248
  %v1122 = vunpack.c.l.b16 %v249
  %v1123 = vunpack.c.h.b16 %v249
  %v1124 = vunpack.c.l.b16 %v250
  %v1125 = vunpack.c.h.b16 %v250
  %v1126 = vunpack.c.l.b16 %v251
  %v1127 = vunpack.c.h.b16 %v251
  %v1128 = vunpack.c.l.b16 %v252
  %v1129 = vunpack.c.h.b16 %v252
  %v1130 = vunpack.c.l.b16 %v253
  %v1131 = vunpack.c.h.b16 %v253
  %v1132 = vunpack.c.l.b16 %v254
  %v1133 = vunpack.c.h.b16 %v254
  %v1134 = vunpack.c.l.b16 %v255
  %v1135 = vunpack.c.h.b16 %v255
  %v1136 = vunpack.c.l.b16 %v256
  %v1137 = vunpack.c.h.b16 %v256
  %v1138 = vunpack.c.l.b16 %v257
  %v1139 = vunpack.c.h.b16 %v257
  %v1140 = vunpack.c.l.b16 %v258
  %v1141 = vunpack.c.h.b16 %v258
  %v1142 = vunpack.c.l.b16 %v259
  %v1143 = vunpack.c.h.b16 %v259
  %v1144 = vunpack.c.l.b16 %v260
  %v1145 = vunpack.c.h.b16 %v260
  %v1146 = vunpack.c.l.b16 %v261
  %v1147 = vunpack.c.h.b16 %v261
  %v1148 = vunpack.c.l.b16 %v262
  %v1149 = vunpack.c.h.b16 %v262
  %v1150 = vunpack.c.l.b16 %v263
  %v1151 = vunpack.c.h.b16 %v263
  %v1152 = vunpack.c.l.b16 %v264
  %v1153 = vunpack.c.h.b16 %v264
  %v1154 = vunpack.c.l.b16 %v265
  %v1155 = vunpack.c.h.b16 %v265
  %v1156 = vunpack.c.l.b16 %v266
  %v1157 = vunpack.c.h.b16 %v266
  %v1158 = vunpack.c.l.b16 %v267
  %v1159 = vunpack.c.h.b16 %v267
  %v1160 = vunpack.c.l.b16 %v268
  %v1161 = vunpack.c.h.b16 %v268
  %v1162 = vunpack.c.l.b16 %v269
  %v1163 = vunpack.c.h.b16 %v269
  %v1164 = vunpack.c.l.b16 %v270
  %v1165 = vunpack.c.h.b16 %v270
  %v1166 = vunpack.c.l.b16 %v271
  %v1167 = vunpack.c.h.b16 %v271
  %v1168 = vpack.c.b16 %v658, %v656
  %v1169 = vpack.c.b16 %v659, %v657
  %v1170 = vpack.c.b16 %v662, %v660
  %v1171 = vpack.c.b16 %v663, %v661
  %v1172 = vpack.c.b16 %v666, %v664
  %v1173 = vpack.c.b16 %v667, %v665
  %v1174 = vpack.c.b16 %v670, %v668
  %v1175 = vpack.c.b16 %v671, %v669
  %v1176 = vpack.c.b16 %v674, %v672
  %v1177 = vpack.c.b16 %v675, %v673
  %v1178 = vpack.c.b16 %v678, %v676
  %v1179 = vpack.c.b16 %v679, %v677
  %v1180 = vpack.c.b16 %v682, %v680
  %v1181 = vpack.c.b16 %v683, %v681
  %v1182 = vpack.c.b16 %v686, %v684
  %v1183 = vpack.c.b16 %v687, %v685
  %v1184 = vpack.c.b16 %v690, %v688
  %v1185 = vpack.c.b16 %v691, %v689
  %v1186 = vpack.c.b16 %v694, %v692
  %v1187 = vpack.c.b16 %v695, %v693
  %v1188 = vpack.c.b16 %v698, %v696
  %v1189 = vpack.c.b16 %v699, %v697
  %v1190 = vpack.c.b16 %v702, %v700
  %v1191 = vpack.c.b16 %v703, %v701
  %v1192 = vpack.c.b16 %v706, %v704
  %v1193 = vpack.c.b16 %v707, %v705
  %v1194 = vpack.c.b16 %v710, %v708
  %v1195 = vpack.c.b16 %v711, %v709
  %v1196 = vpack.c.b16 %v714, %v712
  %v1197 = vpack.c.b16 %v715, %v713
  %v1198 = vpack.c.b16 %v718, %v716
  %v1199 = vpack.c.b16 %v719, %v717
  %v1200 = vpack.c.b16 %v722, %v720
  %v1201 = vpack.c.b16 %v723, %v721
  %v1202 = vpack.c.b16 %v726, %v724
  %v1203 = vpack.c.b16 %v727, %v725
  %v1204 = vpack.c.b16 %v730, %v728
  %v1205 = vpack.c.b16 %v731, %v729
  %v1206 = vpack.c.b16 %v734, %v732
  %v1207 = vpack.c.b16 %v735, %v733
  %v1208 = vpack.c.b16 %v738, %v736
  %v1209 = vpack.c.b16 %v739, %v737
  %v1210 = vpack.c.b16 %v742, %v740
  %v1211 = vpack.c.b16 %v743, %v741
  %v1212 = vpack.c.b16 %v746, %v744
  %v1213 = vpack.c.b16 %v747, %v745
  %v1214 = vpack.c.b16 %v750, %v748
  %v1215 = vpack.c.b16 %v751, %v749
  %v1216 = vpack.c.b16 %v754, %v752
  %v1217 = vpack.c.b16 %v755, %v753
  %v1218 = vpack.c.b16 %v758, %v756
  %v1219 = vpack.c.b16 %v759, %v757
  %v1220 = vpack.c.b16 %v762, %v760
  %v1221 = vpack.c.b16 %v763, %v761
  %v1222 = vpack.c.b16 %v766, %v764
  %v1223 = vpack.c.b16 %v767, %v765
  %v1224 = vpack.c.b16 %v770, %v768
  %v1225 = vpack.c.b16 %v771, %v769
  %v1226 = vpack.c.b16 %v774, %v772
  %v1227 = vpack.c.b16 %v775, %v773
  %v1228 = vpack.c.b16 %v778, %v776
  %v1229 = vpack.c.b16 %v779, %v777
  %v1230 = vpack.c.b16 %v782, %v780
  %v1231 = vpack.c.b16 %v783, %v781
  %v1232 = vpack.c.b16 %v786, %v784
  %v1233 = vpack.c.b16 %v787, %v785
  %v1234 = vpack.c.b16 %v790, %v788
  %v1235 = vpack.c.b16 %v791, %v789
  %v1236 = vpack.c.b16 %v794, %v792
  %v1237 = vpack.c.b16 %v795, %v793
  %v1238 = vpack.c.b16 %v798, %v796
  %v1239 = vpack.c.b16 %v799, %v797
  %v1240 = vpack.c.b16 %v802, %v800
  %v1241 = vpack.c.b16 %v803, %v801
  %v1242 = vpack.c.b16 %v806, %v804
  %v1243 = vpack.c.b16 %v807, %v805
  %v1244 = vpack.c.b16 %v810, %v808
  %v1245 = vpack.c.b16 %v811, %v809
  %v1246 = vpack.c.b16 %v814, %v812
  %v1247 = vpack.c.b16 %v815, %v813
  %v1248 = vpack.c.b16 %v818, %v816
  %v1249 = vpack.c.b16 %v819, %v817
  %v1250 = vpack.c.b16 %v822, %v820
  %v1251 = vpack.c.b16 %v823, %v821
  %v1252 = vpack.c.b16 %v826, %v824
  %v1253 = vpack.c.b16 %v827, %v825
  %v1254 = vpack.c.b16 %v830, %v828
  %v1255 = vpack.c.b16 %v831, %v829
  %v1256 = vpack.c.b16 %v834, %v832
  %v1257 = vpack.c.b16 %v835, %v833
  %v1258 = vpack.c.b16 %v838, %v836
  %v1259 = vpack.c.b16 %v839, %v837
  %v1260 = vpack.c.b16 %v842, %v840
  %v1261 = vpack.c.b16 %v843, %v841
  %v1262 = vpack.c.b16 %v846, %v844
  %v1263 = vpack.c.b16 %v847, %v845
  %v1264 = vpack.c.b16 %v850, %v848
  %v1265 = vpack.c.b16 %v851, %v849
  %v1266 = vpack.c.b16 %v854, %v852
  %v1267 = vpack.c.b16 %v855, %v853
  %v1268 = vpack.c.b16 %v858, %v856
  %v1269 = vpack.c.b16 %v859, %v857
  %v1270 = vpack.c.b16 %v862, %v860
  %v1271 = vpack.c.b16 %v863, %v861
  %v1272 = vpack.c.b16 %v866, %v864
  %v1273 = vpack.c.b16 %v867, %v865
  %v1274 = vpack.c.b16 %v870, %v868
  %v1275 = vpack.c.b16 %v871, %v869
  %v1276 = vpack.c.b16 %v874, %v872
  %v1277 = vpack.c.b16 %v875, %v873
  %v1278 = vpack.c.b16 %v878, %v876
  %v1279 = vpack.c.b16 %v879, %v877
  %v1280 = vpack.c.b16 %v882, %v880
  %v1281 = vpack.c.b16 %v883, %v881
  %v1282 = vpack.c.b16 %v886, %v884
  %v1283 = vpack.c.b16 %v887, %v885
  %v1284 = vpack.c.b16 %v890, %v888
  %v1285 = vpack.c.b16 %v891, %v889
  %v1286 = vpack.c.b16 %v894, %v892
  %v1287 = vpack.c.b16 %v895, %v893
  %v1288 = vpack.c.b16 %v898, %v896
  %v1289 = vpack.c.b16 %v899, %v897
  %v1290 = vpack.c.b16 %v902, %v900
  %v1291 = vpack.c.b16 %v903, %v901
  %v1292 = vpack.c.b16 %v906, %v904
  %v1293 = vpack.c.b16 %v907, %v905
  %v1294 = vpack.c.b16 %v910, %v908
  %v1295 = vpack.c.b16 %v911, %v909
  %v1296 = vpack.c.b16 %v914, %v912
  %v1297 = vpack.c.b16 %v915, %v913
  %v1298 = vpack.c.b16 %v918, %v916
  %v1299 = vpack.c.b16 %v919, %v917
  %v1300 = vpack.c.b16 %v922, %v920
  %v1301 = vpack.c.b16 %v923, %v921
  %v1302 = vpack.c.b16 %v926, %v924
  %v1303 = vpack.c.b16 %v927, %v925
  %v1304 = vpack.c.b16 %v930, %v928
  %v1305 = vpack.c.b16 %v931, %v929
  %v1306 = vpack.c.b16 %v934, %v932
  %v1307 = vpack.c.b16 %v935, %v933
  %v1308 = vpack.c.b16 %v938, %v936
  %v1309 = vpack.c.b16 %v939, %v937
  %v1310 = vpack.c.b16 %v942, %v940
  %v1311 = vpack.c.b16 %v943, %v941
  %v1312 = vpack.c.b16 %v946, %v944
  %v1313 = vpack.c.b16 %v947, %v945
  %v1314 = vpack.c.b16 %v950, %v948
  %v1315 = vpack.c.b16 %v951, %v949
  %v1316 = vpack.c.b16 %v954, %v952
  %v1317 = vpack.c.b16 %v955, %v953
  %v1318 = vpack.c.b16 %v958, %v956
  %v1319 = vpack.c.b16 %v959, %v957
  %v1320 = vpack.c.b16 %v962, %v960
  %v1321 = vpack.c.b16 %v963, %v961
  %v1322 = vpack.c.b16 %v966, %v964
  %v1323 = vpack.c.b16 %v967, %v965
  %v1324 = vpack.c.b16 %v970, %v968
  %v1325 = vpack.c.b16 %v971, %v969
  %v1326 = vpack.c.b16 %v974, %v972
  %v1327 = vpack.c.b16 %v975, %v973
  %v1328 = vpack.c.b16 %v978, %v976
  %v1329 = vpack.c.b16 %v979, %v977
  %v1330 = vpack.c.b16 %v982, %v980
  %v1331 = vpack.c.b16 %v983, %v981
  %v1332 = vpack.c.b16 %v986, %v984
  %v1333 = vpack.c.b16 %v987, %v985
  %v1334 = vpack.c.b16 %v990, %v988
  %v1335 = vpack.c.b16 %v991, %v989
  %v1336 = vpack.c.b16 %v994, %v992
  %v1337 = vpack.c.b16 %v995, %v993
  %v1338 = vpack.c.b16 %v998, %v996
  %v1339 = vpack.c.b16 %v999, %v997
  %v1340 = vpack.c.b16 %v1002, %v1000
  %v1341 = vpack.c.b16 %v1003, %v1001
  %v1342 = vpack.c.b16 %v1006, %v1004
  %v1343 = vpack.c.b16 %v1007, %v1005
  %v1344 = vpack.c.b16 %v1010, %v1008
  %v1345 = vpack.c.b16 %v1011, %v1009
  %v1346 = vpack.c.b16 %v1014, %v1012
  %v1347 = vpack.c.b16 %v1015, %v1013
  %v1348 = vpack.c.b16 %v1018, %v1016
  %v1349 = vpack.c.b16 %v1019, %v1017
  %v1350 = vpack.c.b16 %v1022, %v1020
  %v1351 = vpack.c.b16 %v1023, %v1021
  %v1352 = vpack.c.b16 %v1026, %v1024
  %v1353 = vpack.c.b16 %v1027, %v1025
  %v1354 = vpack.c.b16 %v1030, %v1028
  %v1355 = vpack.c.b16 %v1031, %v1029
  %v1356 = vpack.c.b16 %v1034, %v1032
  %v1357 = vpack.c.b16 %v1035, %v1033
  %v1358 = vpack.c.b16 %v1038, %v1036
  %v1359 = vpack.c.b16 %v1039, %v1037
  %v1360 = vpack.c.b16 %v1042, %v1040
  %v1361 = vpack.c.b16 %v1043, %v1041
  %v1362 = vpack.c.b16 %v1046, %v1044
  %v1363 = vpack.c.b16 %v1047, %v1045
  %v1364 = vpack.c.b16 %v1050, %v1048
  %v1365 = vpack.c.b16 %v1051, %v1049
  %v1366 = vpack.c.b16 %v1054, %v1052
  %v1367 = vpack.c.b16 %v1055, %v1053
  %v1368 = vpack.c.b16 %v1058, %v1056
  %v1369 = vpack.c.b16 %v1059, %v1057
  %v1370 = vpack.c.b16 %v1062, %v1060
  %v1371 = vpack.c.b16 %v1063, %v1061
  %v1372 = vpack.c.b16 %v1066, %v1064
  %v1373 = vpack.c.b16 %v1067, %v1065
  %v1374 = vpack.c.b16 %v1070, %v1068
  %v1375 = vpack.c.b16 %v1071, %v1069
  %v1376 = vpack.c.b16 %v1074, %v1072
  %v1377 = vpack.c.b16 %v1075, %v1073
  %v1378 = vpack.c.b16 %v1078, %v1076
  %v1379 = vpack.c.b16 %v1079, %v1077
  %v1380 = vpack.c.b16 %v1082, %v1080
  %v1381 = vpack.c.b16 %v1083, %v1081
  %v1382 = vpack.c.b16 %v1086, %v1084
  %v1383 = vpack.c.b16 %v1087, %v1085
  %v1384 = vpack.c.b16 %v1090, %v1088
  %v1385 = vpack.c.b16 %v1091, %v1089
  %v1386 = vpack.c.b16 %v1094, %v1092
  %v1387 = vpack.c.b16 %v1095, %v1093
  %v1388 = vpack.c.b16 %v1098, %v1096
  %v1389 = vpack.c.b16 %v1099, %v1097
  %v1390 = vpack.c.b16 %v1102, %v1100
  %v1391 = vpack.c.b16 %v1103, %v1101
  %v1392 = vpack.c.b16 %v1106, %v1104
  %v1393 = vpack.c.b16 %v1107, %v1105
  %v1394 = vpack.c.b16 %v1110, %v1108
  %v1395 = vpack.c.b16 %v1111, %v1109
  %v1396 = vpack.c.b16 %v1114, %v1112
  %v1397 = vpack.c.b16 %v1115, %v1113
  %v1398 = vpack.c.b16 %v1118, %v1116
  %v1399 = vpack.c.b16 %v1119, %v1117
  %v1400 = vpack.c.b16 %v1122, %v1120
  %v1401 = vpack.c.b16 %v1123, %v1121
  %v1402 = vpack.c.b16 %v1126, %v1124
  %v1403 = vpack.c.b16 %v1127, %v1125
  %v1404 = vpack.c.b16 %v1130, %v1128
  %v1405 = vpack.c.b16 %v1131, %v1129
  %v1406 = vpack.c.b16 %v1134, %v1132
  %v1407 = vpack.c.b16 %v1135, %v1133
  %v1408 = vpack.c.b16 %v1138, %v1136
  %v1409 = vpack.c.b16 %v1139, %v1137
  %v1410 = vpack.c.b16 %v1142, %v1140
  %v1411 = vpack.c.b16 %v1143, %v1141
  %v1412 = vpack.c.b16 %v1146, %v1144
  %v1413 = vpack.c.b16 %v1147, %v1145
  %v1414 = vpack.c.b16 %v1150, %v1148
  %v1415 = vpack.c.b16 %v1151, %v1149
  %v1416 = vpack.c.b16 %v1154, %v1152
  %v1417 = vpack.c.b16 %v1155, %v1153
  %v1418 = vpack.c.b16 %v1158, %v1156
  %v1419 = vpack.c.b16 %v1159, %v1157
  %v1420 = vpack.c.b16 %v1162, %v1160
  %v1421 = vpack.c.b16 %v1163, %v1161
  %v1422 = vpack.c.b16 %v1166, %v1164
  %v1423 = vpack.c.b16 %v1167, %v1165
  %1680 = vmatprep.subr.bf16.mxu0 %v1183
  %1681 = vmatpush1.bf16.msra.mxu0 %v1182
  %1682 = vmatprep.subr.bf16.mxu0 %v1181
  %1683 = vmatpush1.bf16.msra.mxu0 %v1180
  %1684 = vmatprep.subr.bf16.mxu0 %v1179
  %1685 = vmatpush1.bf16.msra.mxu0 %v1178
  %1686 = vmatprep.subr.bf16.mxu0 %v1177
  %1687 = vmatpush1.bf16.msra.mxu0 %v1176
  %1688 = vmatprep.subr.bf16.mxu0 %v1175
  %1689 = vmatpush1.bf16.msra.mxu0 %v1174
  %1690 = vmatprep.subr.bf16.mxu0 %v1173
  %1691 = vmatpush1.bf16.msra.mxu0 %v1172
  %1692 = vmatprep.subr.bf16.mxu0 %v1171
  %1693 = vmatpush1.bf16.msra.mxu0 %v1170
  %1694 = vmatprep.subr.bf16.mxu0 %v1169
  %1695 = vmatpush1.bf16.msra.mxu0 %v1168
  %1696 = vmatprep.subr.bf16.mxu0 %v1199
  %1697 = vmatpush2.bf16.msra.mxu0 %v1198
  %1698 = vmatprep.subr.bf16.mxu0 %v1197
  %1699 = vmatpush2.bf16.msra.mxu0 %v1196
  %1700 = vmatprep.subr.bf16.mxu0 %v1195
  %1701 = vmatpush2.bf16.msra.mxu0 %v1194
  %1702 = vmatprep.subr.bf16.mxu0 %v1193
  %1703 = vmatpush2.bf16.msra.mxu0 %v1192
  %1704 = vmatprep.subr.bf16.mxu0 %v1191
  %1705 = vmatpush2.bf16.msra.mxu0 %v1190
  %1706 = vmatprep.subr.bf16.mxu0 %v1189
  %1707 = vmatpush2.bf16.msra.mxu0 %v1188
  %1708 = vmatprep.subr.bf16.mxu0 %v1187
  %1709 = vmatpush2.bf16.msra.mxu0 %v1186
  %1710 = vmatprep.subr.bf16.mxu0 %v1185
  %1711 = vmatpush2.bf16.msra.mxu0 %v1184
  %1712 = vmatprep.mubr.bf16.mxu0 %v323
  %1713 = vmatmul.mubr.bf16.gmra.mxu0 %v309
  %v1714 = vpop.f32.mrf.mxu0
  %v1715 = vadd.f32 %v277, %v1714
  %v1716 = vpop.f32.mrf.mxu0
  %v1717 = vadd.f32 %v281, %v1716
  %v1718 = vpop.f32.mrf.mxu0
  %v1719 = vpop.f32.mrf.mxu0
  %1720 = vdwg.mxu0
  %1721 = vmatprep.subr.bf16.mxu0 %v1215
  %1722 = vmatpush1.bf16.msra.mxu0 %v1214
  %1723 = vmatprep.subr.bf16.mxu0 %v1213
  %1724 = vmatpush1.bf16.msra.mxu0 %v1212
  %1725 = vmatprep.subr.bf16.mxu0 %v1211
  %1726 = vmatpush1.bf16.msra.mxu0 %v1210
  %1727 = vmatprep.subr.bf16.mxu0 %v1209
  %1728 = vmatpush1.bf16.msra.mxu0 %v1208
  %1729 = vmatprep.subr.bf16.mxu0 %v1207
  %1730 = vmatpush1.bf16.msra.mxu0 %v1206
  %1731 = vmatprep.subr.bf16.mxu0 %v1205
  %1732 = vmatpush1.bf16.msra.mxu0 %v1204
  %1733 = vmatprep.subr.bf16.mxu0 %v1203
  %1734 = vmatpush1.bf16.msra.mxu0 %v1202
  %1735 = vmatprep.subr.bf16.mxu0 %v1201
  %1736 = vmatpush1.bf16.msra.mxu0 %v1200
  %1737 = vmatprep.subr.bf16.mxu0 %v1231
  %1738 = vmatpush2.bf16.msra.mxu0 %v1230
  %1739 = vmatprep.subr.bf16.mxu0 %v1229
  %1740 = vmatpush2.bf16.msra.mxu0 %v1228
  %1741 = vmatprep.subr.bf16.mxu0 %v1227
  %1742 = vmatpush2.bf16.msra.mxu0 %v1226
  %1743 = vmatprep.subr.bf16.mxu0 %v1225
  %1744 = vmatpush2.bf16.msra.mxu0 %v1224
  %1745 = vmatprep.subr.bf16.mxu0 %v1223
  %1746 = vmatpush2.bf16.msra.mxu0 %v1222
  %1747 = vmatprep.subr.bf16.mxu0 %v1221
  %1748 = vmatpush2.bf16.msra.mxu0 %v1220
  %1749 = vmatprep.subr.bf16.mxu0 %v1219
  %1750 = vmatpush2.bf16.msra.mxu0 %v1218
  %1751 = vmatprep.subr.bf16.mxu0 %v1217
  %1752 = vmatpush2.bf16.msra.mxu0 %v1216
  %1753 = vmatprep.mubr.bf16.mxu0 %v333
  %1754 = vmatmul.mubr.bf16.gmra.mxu0 %v331
  %v1755 = vpop.f32.mrf.mxu0
  %v1756 = vadd.f32 %v1715, %v1755
  %v1757 = vpop.f32.mrf.mxu0
  %v1758 = vadd.f32 %v1717, %v1757
  %v1759 = vpop.f32.mrf.mxu0
  %v1760 = vpop.f32.mrf.mxu0
  %1761 = vdwg.mxu0
  %1762 = vmatprep.subr.bf16.mxu0 %v1247
  %1763 = vmatpush1.bf16.msra.mxu0 %v1246
  %1764 = vmatprep.subr.bf16.mxu0 %v1245
  %1765 = vmatpush1.bf16.msra.mxu0 %v1244
  %1766 = vmatprep.subr.bf16.mxu0 %v1243
  %1767 = vmatpush1.bf16.msra.mxu0 %v1242
  %1768 = vmatprep.subr.bf16.mxu0 %v1241
  %1769 = vmatpush1.bf16.msra.mxu0 %v1240
  %1770 = vmatprep.subr.bf16.mxu0 %v1239
  %1771 = vmatpush1.bf16.msra.mxu0 %v1238
  %1772 = vmatprep.subr.bf16.mxu0 %v1237
  %1773 = vmatpush1.bf16.msra.mxu0 %v1236
  %1774 = vmatprep.subr.bf16.mxu0 %v1235
  %1775 = vmatpush1.bf16.msra.mxu0 %v1234
  %1776 = vmatprep.subr.bf16.mxu0 %v1233
  %1777 = vmatpush1.bf16.msra.mxu0 %v1232
  %1778 = vmatprep.subr.bf16.mxu0 %v1263
  %1779 = vmatpush2.bf16.msra.mxu0 %v1262
  %1780 = vmatprep.subr.bf16.mxu0 %v1261
  %1781 = vmatpush2.bf16.msra.mxu0 %v1260
  %1782 = vmatprep.subr.bf16.mxu0 %v1259
  %1783 = vmatpush2.bf16.msra.mxu0 %v1258
  %1784 = vmatprep.subr.bf16.mxu0 %v1257
  %1785 = vmatpush2.bf16.msra.mxu0 %v1256
  %1786 = vmatprep.subr.bf16.mxu0 %v1255
  %1787 = vmatpush2.bf16.msra.mxu0 %v1254
  %1788 = vmatprep.subr.bf16.mxu0 %v1253
  %1789 = vmatpush2.bf16.msra.mxu0 %v1252
  %1790 = vmatprep.subr.bf16.mxu0 %v1251
  %1791 = vmatpush2.bf16.msra.mxu0 %v1250
  %1792 = vmatprep.subr.bf16.mxu0 %v1249
  %1793 = vmatpush2.bf16.msra.mxu0 %v1248
  %1794 = vmatprep.mubr.bf16.mxu0 %v330
  %1795 = vmatmul.mubr.bf16.gmra.mxu0 %v316
  %v1796 = vpop.f32.mrf.mxu0
  %v1797 = vadd.f32 %v1756, %v1796
  %v1798 = vpop.f32.mrf.mxu0
  %v1799 = vadd.f32 %v1758, %v1798
  %v1800 = vpop.f32.mrf.mxu0
  %v1801 = vpop.f32.mrf.mxu0
  %1802 = vdwg.mxu0
  %1803 = vmatprep.subr.bf16.mxu0 %v1279
  %1804 = vmatpush1.bf16.msra.mxu0 %v1278
  %1805 = vmatprep.subr.bf16.mxu0 %v1277
  %1806 = vmatpush1.bf16.msra.mxu0 %v1276
  %1807 = vmatprep.subr.bf16.mxu0 %v1275
  %1808 = vmatpush1.bf16.msra.mxu0 %v1274
  %1809 = vmatprep.subr.bf16.mxu0 %v1273
  %1810 = vmatpush1.bf16.msra.mxu0 %v1272
  %1811 = vmatprep.subr.bf16.mxu0 %v1271
  %1812 = vmatpush1.bf16.msra.mxu0 %v1270
  %1813 = vmatprep.subr.bf16.mxu0 %v1269
  %1814 = vmatpush1.bf16.msra.mxu0 %v1268
  %1815 = vmatprep.subr.bf16.mxu0 %v1267
  %1816 = vmatpush1.bf16.msra.mxu0 %v1266
  %1817 = vmatprep.subr.bf16.mxu0 %v1265
  %1818 = vmatpush1.bf16.msra.mxu0 %v1264
  %1819 = vmatprep.subr.bf16.mxu0 %v1295
  %1820 = vmatpush2.bf16.msra.mxu0 %v1294
  %1821 = vmatprep.subr.bf16.mxu0 %v1293
  %1822 = vmatpush2.bf16.msra.mxu0 %v1292
  %1823 = vmatprep.subr.bf16.mxu0 %v1291
  %1824 = vmatpush2.bf16.msra.mxu0 %v1290
  %1825 = vmatprep.subr.bf16.mxu0 %v1289
  %1826 = vmatpush2.bf16.msra.mxu0 %v1288
  %1827 = vmatprep.subr.bf16.mxu0 %v1287
  %1828 = vmatpush2.bf16.msra.mxu0 %v1286
  %1829 = vmatprep.subr.bf16.mxu0 %v1285
  %1830 = vmatpush2.bf16.msra.mxu0 %v1284
  %1831 = vmatprep.subr.bf16.mxu0 %v1283
  %1832 = vmatpush2.bf16.msra.mxu0 %v1282
  %1833 = vmatprep.subr.bf16.mxu0 %v1281
  %1834 = vmatpush2.bf16.msra.mxu0 %v1280
  %1835 = vmatprep.mubr.bf16.mxu0 %v334
  %1836 = vmatmul.mubr.bf16.gmra.mxu0 %v332
  %v1837 = vpop.f32.mrf.mxu0
  %v1838 = vadd.f32 %v1797, %v1837
  %v1839 = vpop.f32.mrf.mxu0
  %v1840 = vadd.f32 %v1799, %v1839
  %v1841 = vpop.f32.mrf.mxu0
  %v1842 = vpop.f32.mrf.mxu0
  %1843 = vdwg.mxu0
  %1844 = vmatprep.subr.bf16.mxu0 %v1311
  %1845 = vmatpush1.bf16.msra.mxu0 %v1310
  %1846 = vmatprep.subr.bf16.mxu0 %v1309
  %1847 = vmatpush1.bf16.msra.mxu0 %v1308
  %1848 = vmatprep.subr.bf16.mxu0 %v1307
  %1849 = vmatpush1.bf16.msra.mxu0 %v1306
  %1850 = vmatprep.subr.bf16.mxu0 %v1305
  %1851 = vmatpush1.bf16.msra.mxu0 %v1304
  %1852 = vmatprep.subr.bf16.mxu0 %v1303
  %1853 = vmatpush1.bf16.msra.mxu0 %v1302
  %1854 = vmatprep.subr.bf16.mxu0 %v1301
  %1855 = vmatpush1.bf16.msra.mxu0 %v1300
  %1856 = vmatprep.subr.bf16.mxu0 %v1299
  %1857 = vmatpush1.bf16.msra.mxu0 %v1298
  %1858 = vmatprep.subr.bf16.mxu0 %v1297
  %1859 = vmatpush1.bf16.msra.mxu0 %v1296
  %1860 = vmatprep.subr.bf16.mxu0 %v1327
  %1861 = vmatpush2.bf16.msra.mxu0 %v1326
  %1862 = vmatprep.subr.bf16.mxu0 %v1325
  %1863 = vmatpush2.bf16.msra.mxu0 %v1324
  %1864 = vmatprep.subr.bf16.mxu0 %v1323
  %1865 = vmatpush2.bf16.msra.mxu0 %v1322
  %1866 = vmatprep.subr.bf16.mxu0 %v1321
  %1867 = vmatpush2.bf16.msra.mxu0 %v1320
  %1868 = vmatprep.subr.bf16.mxu0 %v1319
  %1869 = vmatpush2.bf16.msra.mxu0 %v1318
  %1870 = vmatprep.subr.bf16.mxu0 %v1317
  %1871 = vmatpush2.bf16.msra.mxu0 %v1316
  %1872 = vmatprep.subr.bf16.mxu0 %v1315
  %1873 = vmatpush2.bf16.msra.mxu0 %v1314
  %1874 = vmatprep.subr.bf16.mxu0 %v1313
  %1875 = vmatpush2.bf16.msra.mxu0 %v1312
  %1876 = vmatprep.mubr.bf16.mxu0 %v372
  %1877 = vmatmul.mubr.bf16.gmra.mxu0 %v358
  %v1878 = vpop.f32.mrf.mxu0
  %v1879 = vadd.f32 %v1838, %v1878
  %v1880 = vpop.f32.mrf.mxu0
  %v1881 = vadd.f32 %v1840, %v1880
  %v1882 = vpop.f32.mrf.mxu0
  %v1883 = vpop.f32.mrf.mxu0
  %1884 = vdwg.mxu0
  %1885 = vmatprep.subr.bf16.mxu0 %v1343
  %1886 = vmatpush1.bf16.msra.mxu0 %v1342
  %1887 = vmatprep.subr.bf16.mxu0 %v1341
  %1888 = vmatpush1.bf16.msra.mxu0 %v1340
  %1889 = vmatprep.subr.bf16.mxu0 %v1339
  %1890 = vmatpush1.bf16.msra.mxu0 %v1338
  %1891 = vmatprep.subr.bf16.mxu0 %v1337
  %1892 = vmatpush1.bf16.msra.mxu0 %v1336
  %1893 = vmatprep.subr.bf16.mxu0 %v1335
  %1894 = vmatpush1.bf16.msra.mxu0 %v1334
  %1895 = vmatprep.subr.bf16.mxu0 %v1333
  %1896 = vmatpush1.bf16.msra.mxu0 %v1332
  %1897 = vmatprep.subr.bf16.mxu0 %v1331
  %1898 = vmatpush1.bf16.msra.mxu0 %v1330
  %1899 = vmatprep.subr.bf16.mxu0 %v1329
  %1900 = vmatpush1.bf16.msra.mxu0 %v1328
  %1901 = vmatprep.subr.bf16.mxu0 %v1359
  %1902 = vmatpush2.bf16.msra.mxu0 %v1358
  %1903 = vmatprep.subr.bf16.mxu0 %v1357
  %1904 = vmatpush2.bf16.msra.mxu0 %v1356
  %1905 = vmatprep.subr.bf16.mxu0 %v1355
  %1906 = vmatpush2.bf16.msra.mxu0 %v1354
  %1907 = vmatprep.subr.bf16.mxu0 %v1353
  %1908 = vmatpush2.bf16.msra.mxu0 %v1352
  %1909 = vmatprep.subr.bf16.mxu0 %v1351
  %1910 = vmatpush2.bf16.msra.mxu0 %v1350
  %1911 = vmatprep.subr.bf16.mxu0 %v1349
  %1912 = vmatpush2.bf16.msra.mxu0 %v1348
  %1913 = vmatprep.subr.bf16.mxu0 %v1347
  %1914 = vmatpush2.bf16.msra.mxu0 %v1346
  %1915 = vmatprep.subr.bf16.mxu0 %v1345
  %1916 = vmatpush2.bf16.msra.mxu0 %v1344
  %1917 = vmatprep.mubr.bf16.mxu0 %v382
  %1918 = vmatmul.mubr.bf16.gmra.mxu0 %v380
  %v1919 = vpop.f32.mrf.mxu0
  %v1920 = vadd.f32 %v1879, %v1919
  %v1921 = vpop.f32.mrf.mxu0
  %v1922 = vadd.f32 %v1881, %v1921
  %v1923 = vpop.f32.mrf.mxu0
  %v1924 = vpop.f32.mrf.mxu0
  %1925 = vdwg.mxu0
  %1926 = vmatprep.subr.bf16.mxu0 %v1375
  %1927 = vmatpush1.bf16.msra.mxu0 %v1374
  %1928 = vmatprep.subr.bf16.mxu0 %v1373
  %1929 = vmatpush1.bf16.msra.mxu0 %v1372
  %1930 = vmatprep.subr.bf16.mxu0 %v1371
  %1931 = vmatpush1.bf16.msra.mxu0 %v1370
  %1932 = vmatprep.subr.bf16.mxu0 %v1369
  %1933 = vmatpush1.bf16.msra.mxu0 %v1368
  %1934 = vmatprep.subr.bf16.mxu0 %v1367
  %1935 = vmatpush1.bf16.msra.mxu0 %v1366
  %1936 = vmatprep.subr.bf16.mxu0 %v1365
  %1937 = vmatpush1.bf16.msra.mxu0 %v1364
  %1938 = vmatprep.subr.bf16.mxu0 %v1363
  %1939 = vmatpush1.bf16.msra.mxu0 %v1362
  %1940 = vmatprep.subr.bf16.mxu0 %v1361
  %1941 = vmatpush1.bf16.msra.mxu0 %v1360
  %1942 = vmatprep.subr.bf16.mxu0 %v1391
  %1943 = vmatpush2.bf16.msra.mxu0 %v1390
  %1944 = vmatprep.subr.bf16.mxu0 %v1389
  %1945 = vmatpush2.bf16.msra.mxu0 %v1388
  %1946 = vmatprep.subr.bf16.mxu0 %v1387
  %1947 = vmatpush2.bf16.msra.mxu0 %v1386
  %1948 = vmatprep.subr.bf16.mxu0 %v1385
  %1949 = vmatpush2.bf16.msra.mxu0 %v1384
  %1950 = vmatprep.subr.bf16.mxu0 %v1383
  %1951 = vmatpush2.bf16.msra.mxu0 %v1382
  %1952 = vmatprep.subr.bf16.mxu0 %v1381
  %1953 = vmatpush2.bf16.msra.mxu0 %v1380
  %1954 = vmatprep.subr.bf16.mxu0 %v1379
  %1955 = vmatpush2.bf16.msra.mxu0 %v1378
  %1956 = vmatprep.subr.bf16.mxu0 %v1377
  %1957 = vmatpush2.bf16.msra.mxu0 %v1376
  %1958 = vmatprep.mubr.bf16.mxu0 %v379
  %1959 = vmatmul.mubr.bf16.gmra.mxu0 %v365
  %v1960 = vpop.f32.mrf.mxu0
  %v1961 = vadd.f32 %v1920, %v1960
  %v1962 = vpop.f32.mrf.mxu0
  %v1963 = vadd.f32 %v1922, %v1962
  %v1964 = vpop.f32.mrf.mxu0
  %v1965 = vpop.f32.mrf.mxu0
  %1966 = vdwg.mxu0
  %1967 = vmatprep.subr.bf16.mxu0 %v1407
  %1968 = vmatpush1.bf16.msra.mxu0 %v1406
  %1969 = vmatprep.subr.bf16.mxu0 %v1405
  %1970 = vmatpush1.bf16.msra.mxu0 %v1404
  %1971 = vmatprep.subr.bf16.mxu0 %v1403
  %1972 = vmatpush1.bf16.msra.mxu0 %v1402
  %1973 = vmatprep.subr.bf16.mxu0 %v1401
  %1974 = vmatpush1.bf16.msra.mxu0 %v1400
  %1975 = vmatprep.subr.bf16.mxu0 %v1399
  %1976 = vmatpush1.bf16.msra.mxu0 %v1398
  %1977 = vmatprep.subr.bf16.mxu0 %v1397
  %1978 = vmatpush1.bf16.msra.mxu0 %v1396
  %1979 = vmatprep.subr.bf16.mxu0 %v1395
  %1980 = vmatpush1.bf16.msra.mxu0 %v1394
  %1981 = vmatprep.subr.bf16.mxu0 %v1393
  %1982 = vmatpush1.bf16.msra.mxu0 %v1392
  %1983 = vmatprep.subr.bf16.mxu0 %v1423
  %1984 = vmatpush2.bf16.msra.mxu0 %v1422
  %1985 = vmatprep.subr.bf16.mxu0 %v1421
  %1986 = vmatpush2.bf16.msra.mxu0 %v1420
  %1987 = vmatprep.subr.bf16.mxu0 %v1419
  %1988 = vmatpush2.bf16.msra.mxu0 %v1418
  %1989 = vmatprep.subr.bf16.mxu0 %v1417
  %1990 = vmatpush2.bf16.msra.mxu0 %v1416
  %1991 = vmatprep.subr.bf16.mxu0 %v1415
  %1992 = vmatpush2.bf16.msra.mxu0 %v1414
  %1993 = vmatprep.subr.bf16.mxu0 %v1413
  %1994 = vmatpush2.bf16.msra.mxu0 %v1412
  %1995 = vmatprep.subr.bf16.mxu0 %v1411
  %1996 = vmatpush2.bf16.msra.mxu0 %v1410
  %1997 = vmatprep.subr.bf16.mxu0 %v1409
  %1998 = vmatpush2.bf16.msra.mxu0 %v1408
  %1999 = vmatprep.mubr.bf16.mxu0 %v383
  %2000 = vmatmul.mubr.bf16.gmra.mxu0 %v381
  %v2001 = vpop.f32.mrf.mxu0
  %v2002 = vadd.f32 %v1961, %v2001
  %v2003 = vpop.f32.mrf.mxu0
  %v2004 = vadd.f32 %v1963, %v2003
  %v2005 = vpop.f32.mrf.mxu0
  %v2006 = vpop.f32.mrf.mxu0
  %2007 = vdwg.mxu0
  %v2008 = vmax.f32 %v2002, 0.0
  %v2009 = vmax.f32 %v2004, 0.0
  %v2012 = vcombine.low %v2008, %v2009
  %v2014 = vunpack.c.l.s4 1983009808
  %v2015 = vunpack.c.0.s8 %v2014
  %v2016 = vlaneseq
  %v2017 = vshrl.u32 %v2016, 7
  %v2018 = vsub.s32 %v2015, %v2017
  %v2019 = vrot.slane %v2012, %v2018
  %2021 = vst [vmem:[%s3] sm:$0xf] %v2019
  // Predicated region
  $region14: #{simple_cnn_forward.8} parent=0 // pred_check
    _
  $region15: #{simple_cnn_forward.8} parent=0 // pred_check_branch
    %2023 = sbr.rel (0) target = $region17
  $region16: #{simple_cnn_forward.8} parent=0 // pred_region
    _
  $region17: #{simple_cnn_forward.8} parent=0 // pred_fallthru
    _
  // Predicated region
  $region18: #{simple_cnn_forward.8} parent=0 // pred_check
    _
  $region19: #{simple_cnn_forward.8} parent=0 // pred_check_branch
    %2025 = sbr.rel (0) target = $region21
  $region20: #{simple_cnn_forward.8} parent=0 // pred_region
    _
  $region21: #{simple_cnn_forward.8} parent=0 // pred_fallthru
    _

</llo_original>
